<compile_context>
chip_gen: v6e
topology: v6e:2x2x1
jax: 0.10.0
libtpu: 0.0.40
codegen_flags: <defaults>
</compile_context>

<pallas_src>
import math

import jax
import jax.numpy as jnp
from jax.experimental import pallas as pl
from jax.experimental.pallas import tpu as pltpu


# ------------------------------ helpers ------------------------------------ #

def _round_up(x, m):
    return ((x + m - 1) // m) * m


def _pack_gates(a, hs, hs_p):
    """Last-axis gate blocks [i,f,g,o] (width hs) -> [i,f,o,g] (width hs_p, zero pad)."""
    i = a[..., 0 * hs:1 * hs]
    f = a[..., 1 * hs:2 * hs]
    g = a[..., 2 * hs:3 * hs]
    o = a[..., 3 * hs:4 * hs]
    pad = [(0, 0)] * (a.ndim - 1) + [(0, hs_p - hs)]
    return jnp.concatenate(
        [jnp.pad(i, pad), jnp.pad(f, pad), jnp.pad(o, pad), jnp.pad(g, pad)],
        axis=-1)


def _pick_time_chunk(seq, bs_blk, in_sz_p, hs_p, out_itemsize,
                     max_chunk=32, vmem_budget_bytes=24 << 20):
    """Largest multiple-of-8 time chunk (<= max_chunk) whose working set fits VMEM."""
    g4 = 4 * hs_p

    def est_bytes(tc):
        x_in = 2 * bs_blk * tc * in_sz_p * 2              # bf16 x chunk, double-buffered
        hseq_out = 2 * bs_blk * tc * hs_p * out_itemsize  # output chunk, double-buffered
        xw_scratch = bs_blk * tc * g4 * 4                 # f32 projection scratch
        weights = (in_sz_p + hs_p) * g4 * 2 + g4 * 4      # W, U (bf16) + bias (f32)
        small = 8 * bs_blk * hs_p * 4                     # carries, h0/c0, h_T/c_T
        return x_in + hseq_out + xw_scratch + weights + small

    tc = max(8, min((max_chunk // 8) * 8, _round_up(seq, 8)))
    while tc > 8 and est_bytes(tc) > vmem_budget_bytes:
        tc -= 8
    return tc


# ------------------------------ kernel -------------------------------------- #

def _make_lstm_chunk_kernel(t_chunk, hs_p, seq_real, seq_pad):
    """Fused projection + recurrence over one (batch block, time chunk)."""
    h3 = 3 * hs_p
    needs_mask = (seq_pad != seq_real)

    def kernel(x_ref, w_ref, b_ref, u_ref, h0_ref, c0_ref,
               hseq_ref, h_out_ref, c_out_ref,
               xw_sc, h_sc, c_sc):
        chunk = pl.program_id(1)

        # (Re)load the carry at the first chunk of every batch block.
        @pl.when(chunk == 0)
        def _():
            h_sc[...] = h0_ref[...].astype(jnp.float32)
            c_sc[...] = c0_ref[...].astype(jnp.float32)

        bs_blk = x_ref.shape[0]
        in_sz_p = x_ref.shape[2]
        g4 = 4 * hs_p

        # ---- fused input projection: one MXU matmul per chunk -> VMEM scratch.
        x2 = x_ref[...].reshape(bs_blk * t_chunk, in_sz_p)           # bf16
        xw2 = jnp.dot(x2, w_ref[...],
                      preferred_element_type=jnp.float32) + b_ref[...]
        xw_sc[...] = xw2.reshape(bs_blk, t_chunk, g4)

        h = h_sc[...]
        c = c_sc[...]

        # ---- recurrence.  t_chunk is hard-capped (<=32) by the wrapper, so a
        # static unrolled loop keeps code size bounded; per-step VMEM loads and
        # lane-dense per-step stores keep vreg pressure at ~one timestep.
        for t in range(t_chunk):
            gates = xw_sc[:, t, :] + jnp.dot(
                h.astype(jnp.bfloat16), u_ref[...],
                preferred_element_type=jnp.float32)
            sig = jax.nn.sigmoid(gates[:, :h3])        # i | f | o : one EUP pass
            g_t = jnp.tanh(gates[:, h3:])              # g         : one EUP pass
            i_t = sig[:, :hs_p]
            f_t = sig[:, hs_p:2 * hs_p]
            o_t = sig[:, 2 * hs_p:h3]
            c_new = f_t * c + i_t * g_t
            h_new = o_t * jnp.tanh(c_new)
            if needs_mask:
                # Hold the carry on padded tail timesteps so h_T/c_T are exact.
                valid = (chunk * t_chunk + t) < seq_real
                c = jnp.where(valid, c_new, c)
                h = jnp.where(valid, h_new, h)
            else:
                c = c_new
                h = h_new
            # Lane-dense store (128-lane aligned column of the 2-D output slab).
            hseq_ref[:, t * hs_p:(t + 1) * hs_p] = h.astype(hseq_ref.dtype)

        h_sc[...] = h
        c_sc[...] = c
        # Resident output blocks (index constant over the chunk axis); writing
        # every chunk keeps them valid whenever Pallas flushes them.
        h_out_ref[...] = h.astype(h_out_ref.dtype)
        c_out_ref[...] = c.astype(c_out_ref.dtype)

    return kernel


# ------------------------------ wrapper ------------------------------------- #

def custom_lstm_pallas(x, W, U, bias, init_states=None, *,
                       max_t_chunk=32, vmem_budget_bytes=24 << 20):
    """x: (batch, seq, input_sz). Returns (hidden_seq, (h_T, c_T)) like PyTorch."""
    bs, seq, in_sz = x.shape
    HS = U.shape[0]
    out_dtype = x.dtype

    # ---- layout / padding choices.
    HS_P = _round_up(HS, 128)               # lane-dense hidden dim
    G4 = 4 * HS_P
    IN_P = _round_up(in_sz, 8)              # sublane-aligned contraction dim

    bs_p = _round_up(bs, 8)
    if bs_p >= 16:
        bs_p = _round_up(bs_p, 16)
        n_bblk = 2                          # v7x: one batch block per TensorCore
    else:
        n_bblk = 1
    bs_blk = bs_p // n_bblk

    out_isz = jnp.dtype(out_dtype).itemsize
    t_chunk = _pick_time_chunk(seq, bs_blk, IN_P, HS_P, out_isz,
                               max_chunk=max_t_chunk,
                               vmem_budget_bytes=vmem_budget_bytes)
    seq_pad = _round_up(seq, t_chunk)
    n_chunks = seq_pad // t_chunk

    # ---- pad + cast inputs (bf16 for MXU operands, f32 everywhere else).
    x_bf = jnp.pad(
        x, ((0, bs_p - bs), (0, seq_pad - seq), (0, IN_P - in_sz))
    ).astype(jnp.bfloat16)

    W_p = _pack_gates(W.astype(jnp.float32), HS, HS_P)
    W_p = jnp.pad(W_p, ((0, IN_P - in_sz), (0, 0))).astype(jnp.bfloat16)
    U_p = _pack_gates(U.astype(jnp.float32), HS, HS_P)
    U_p = jnp.pad(U_p, ((0, HS_P - HS), (0, 0))).astype(jnp.bfloat16)
    b_p = _pack_gates(bias.astype(jnp.float32).reshape(1, 4 * HS), HS, HS_P)  # (1, G4) f32

    if init_states is None:
        h0 = jnp.zeros((bs_p, HS_P), jnp.float32)
        c0 = jnp.zeros((bs_p, HS_P), jnp.float32)
    else:
        h0_in, c0_in = init_states
        h0 = jnp.pad(h0_in.astype(jnp.float32), ((0, bs_p - bs), (0, HS_P - HS)))
        c0 = jnp.pad(c0_in.astype(jnp.float32), ((0, bs_p - bs), (0, HS_P - HS)))

    kernel = _make_lstm_chunk_kernel(t_chunk, HS_P, seq, seq_pad)

    hseq2, h_T_p, c_T_p = pl.pallas_call(
        kernel,
        out_shape=(
            jax.ShapeDtypeStruct((bs_p, seq_pad * HS_P), out_dtype),   # hidden_seq slab
            jax.ShapeDtypeStruct((bs_p, HS_P), out_dtype),             # h_T
            jax.ShapeDtypeStruct((bs_p, HS_P), out_dtype),             # c_T
        ),
        grid_spec=pltpu.PrefetchScalarGridSpec(
            num_scalar_prefetch=0,
            grid=(n_bblk, n_chunks),
            in_specs=[
                pl.BlockSpec((bs_blk, t_chunk, IN_P), lambda b, c: (b, c, 0)),  # x chunk
                pl.BlockSpec((IN_P, G4), lambda b, c: (0, 0)),                  # W (resident)
                pl.BlockSpec((1, G4), lambda b, c: (0, 0)),                     # bias
                pl.BlockSpec((HS_P, G4), lambda b, c: (0, 0)),                  # U (resident)
                pl.BlockSpec((bs_blk, HS_P), lambda b, c: (b, 0)),              # h0
                pl.BlockSpec((bs_blk, HS_P), lambda b, c: (b, 0)),              # c0
            ],
            out_specs=[
                pl.BlockSpec((bs_blk, t_chunk * HS_P), lambda b, c: (b, c)),    # hidden_seq
                pl.BlockSpec((bs_blk, HS_P), lambda b, c: (b, 0)),              # h_T
                pl.BlockSpec((bs_blk, HS_P), lambda b, c: (b, 0)),              # c_T
            ],
            scratch_shapes=[
                pltpu.VMEM((bs_blk, t_chunk, G4), jnp.float32),   # per-chunk xW
                pltpu.VMEM((bs_blk, HS_P), jnp.float32),          # h carry
                pltpu.VMEM((bs_blk, HS_P), jnp.float32),          # c carry
            ],
        ),
        compiler_params=pltpu.CompilerParams(
            dimension_semantics=("parallel", "arbitrary"),
            vmem_limit_bytes=40 << 20,
        ),
    )(x_bf, W_p, b_p, U_p, h0, c0)

    hidden_seq = hseq2.reshape(bs_p, seq_pad, HS_P)[:bs, :seq, :HS]
    return hidden_seq, (h_T_p[:bs, :HS], c_T_p[:bs, :HS])


# ------------------------------ reference ----------------------------------- #

def custom_lstm_ref(x, W, U, bias, init_states=None):
    """Pure-JAX f32 reference matching the PyTorch forward exactly."""
    bs, seq, _ = x.shape
    HS = U.shape[0]
    if init_states is None:
        h0 = jnp.zeros((bs, HS), x.dtype)
        c0 = jnp.zeros((bs, HS), x.dtype)
    else:
        h0, c0 = init_states

    def step(carry, x_t):
        h_t, c_t = carry
        gates = x_t @ W + h_t @ U + bias
        i_t = jax.nn.sigmoid(gates[:, :HS])
        f_t = jax.nn.sigmoid(gates[:, HS:2 * HS])
        g_t = jnp.tanh(gates[:, 2 * HS:3 * HS])
        o_t = jax.nn.sigmoid(gates[:, 3 * HS:])
        c_t = f_t * c_t + i_t * g_t
        h_t = o_t * jnp.tanh(c_t)
        return (h_t, c_t), h_t

    (h_T, c_T), hs = jax.lax.scan(step, (h0, c0), jnp.transpose(x, (1, 0, 2)))
    return jnp.transpose(hs, (1, 0, 2)), (h_T, c_T)


# ------------------------------ demo / test ---------------------------------- #

if __name__ == "__main__":
    batch, seq, input_sz, hidden_sz = 2, 8, 16, 32

    key = jax.random.PRNGKey(0)
    kx, kw, ku, kb, kh, kc = jax.random.split(key, 6)

    # Parameter init mirroring PyTorch's uniform_(-stdv, stdv).
    stdv = 1.0 / math.sqrt(hidden_sz)
    W = jax.random.uniform(kw, (input_sz, hidden_sz * 4), jnp.float32, -stdv, stdv)
    U = jax.random.uniform(ku, (hidden_sz, hidden_sz * 4), jnp.float32, -stdv, stdv)
    bias = jax.random.uniform(kb, (hidden_sz * 4,), jnp.float32, -stdv, stdv)

    x = jax.random.normal(kx, (batch, seq, input_sz), jnp.float32)

    # bf16 MXU inputs -> loosened tolerances vs. the f32 reference.
    TOL = dict(atol=2e-2, rtol=2e-2)

    # Default (zero) initial states.
    hidden_seq, (h_T, c_T) = custom_lstm_pallas(x, W, U, bias)
    jax.block_until_ready((hidden_seq, h_T, c_T))

    ref_seq, (ref_h, ref_c) = custom_lstm_ref(x, W, U, bias)
    assert hidden_seq.shape == (batch, seq, hidden_sz)
    assert h_T.shape == (batch, hidden_sz) and c_T.shape == (batch, hidden_sz)
    assert jnp.allclose(hidden_seq, ref_seq, **TOL)
    assert jnp.allclose(h_T, ref_h, **TOL)
    assert jnp.allclose(c_T, ref_c, **TOL)

    # Explicit initial states path.
    h0 = jax.random.normal(kh, (batch, hidden_sz), jnp.float32) * 0.1
    c0 = jax.random.normal(kc, (batch, hidden_sz), jnp.float32) * 0.1
    out2, (h2, c2) = custom_lstm_pallas(x, W, U, bias, init_states=(h0, c0))
    jax.block_until_ready((out2, h2, c2))
    ref2, (rh2, rc2) = custom_lstm_ref(x, W, U, bias, init_states=(h0, c0))
    assert jnp.allclose(out2, ref2, **TOL)
    assert jnp.allclose(h2, rh2, **TOL)
    assert jnp.allclose(c2, rc2, **TOL)

    print("KERNEL_OK")
</pallas_src>

<mosaic_0001>
module attributes {stable_mosaic.version = 11 : i64} {
  func.func @kernel(%arg0: i32, %arg1: i32, %arg2: memref<8x8x16xbf16, #tpu.memory_space<vmem>>, %arg3: memref<16x512xbf16, #tpu.memory_space<vmem>>, %arg4: memref<1x512xf32, #tpu.memory_space<vmem>>, %arg5: memref<128x512xbf16, #tpu.memory_space<vmem>>, %arg6: memref<8x128xf32, #tpu.memory_space<vmem>>, %arg7: memref<8x128xf32, #tpu.memory_space<vmem>>, %arg8: memref<8x1024xf32, #tpu.memory_space<vmem>>, %arg9: memref<8x128xf32, #tpu.memory_space<vmem>>, %arg10: memref<8x128xf32, #tpu.memory_space<vmem>>, %arg11: memref<8x8x512xf32, #tpu.memory_space<vmem>>, %arg12: memref<8x128xf32, #tpu.memory_space<vmem>>, %arg13: memref<8x128xf32, #tpu.memory_space<vmem>>) attributes {dimension_semantics = [#tpu.dimension_semantics<parallel>, #tpu.dimension_semantics<arbitrary>], iteration_bounds = array<i64: 1, 1>, scalar_prefetch = 0 : i64, scratch_operands = 3 : i64, tpu.core_type = #tpu.core_type<tc>, window_params = [{transform_indices = @transform_0, window_bounds = array<i64: 8, 8, 16>}, {pipeline_mode = #tpu.pipeline_mode<synchronous>, transform_indices = @transform_1, window_bounds = array<i64: 16, 512>}, {pipeline_mode = #tpu.pipeline_mode<synchronous>, transform_indices = @transform_2, window_bounds = array<i64: 1, 512>}, {pipeline_mode = #tpu.pipeline_mode<synchronous>, transform_indices = @transform_3, window_bounds = array<i64: 128, 512>}, {transform_indices = @transform_4, window_bounds = array<i64: 8, 128>}, {transform_indices = @transform_5, window_bounds = array<i64: 8, 128>}, {transform_indices = @transform_6, window_bounds = array<i64: 8, 1024>}, {transform_indices = @transform_7, window_bounds = array<i64: 8, 128>}, {transform_indices = @transform_8, window_bounds = array<i64: 8, 128>}]} {
    %c0_i32 = arith.constant 0 : i32
    %0 = arith.cmpi eq, %arg1, %c0_i32 : i32
    %1 = arith.extui %0 : i1 to i32
    %c0_i32_0 = arith.constant 0 : i32
    %2 = arith.cmpi ne, %1, %c0_i32_0 : i32
    scf.if %2 {
      %c0_80 = arith.constant 0 : index
      %c0_81 = arith.constant 0 : index
      %202 = vector.load %arg6[%c0_80, %c0_81] : memref<8x128xf32, #tpu.memory_space<vmem>>, vector<8x128xf32>
      %c0_82 = arith.constant 0 : index
      %c0_83 = arith.constant 0 : index
      %203 = vector.load %arg12[%c0_82, %c0_83] : memref<8x128xf32, #tpu.memory_space<vmem>>, vector<8x128xf32>
      tpu.vector_store %arg12[%c0_82, %c0_83], %202 {strides = array<i32>} : memref<8x128xf32, #tpu.memory_space<vmem>>, vector<8x128xf32>,
      %c0_84 = arith.constant 0 : index
      %c0_85 = arith.constant 0 : index
      %204 = vector.load %arg7[%c0_84, %c0_85] : memref<8x128xf32, #tpu.memory_space<vmem>>, vector<8x128xf32>
      %c0_86 = arith.constant 0 : index
      %c0_87 = arith.constant 0 : index
      %205 = vector.load %arg13[%c0_86, %c0_87] : memref<8x128xf32, #tpu.memory_space<vmem>>, vector<8x128xf32>
      tpu.vector_store %arg13[%c0_86, %c0_87], %204 {strides = array<i32>} : memref<8x128xf32, #tpu.memory_space<vmem>>, vector<8x128xf32>,
    } else {
    }
    %c0 = arith.constant 0 : index
    %c0_1 = arith.constant 0 : index
    %c0_2 = arith.constant 0 : index
    %3 = vector.load %arg2[%c0, %c0_1, %c0_2] : memref<8x8x16xbf16, #tpu.memory_space<vmem>>, vector<8x8x16xbf16>
    %4 = vector.shape_cast %3 : vector<8x8x16xbf16> to vector<64x16xbf16>
    %c0_3 = arith.constant 0 : index
    %c0_4 = arith.constant 0 : index
    %5 = vector.load %arg3[%c0_3, %c0_4] : memref<16x512xbf16, #tpu.memory_space<vmem>>, vector<16x512xbf16>
    %cst = arith.constant dense<0.000000e+00> : vector<64x512xf32>
    %6 = tpu.matmul %4, %5, %cst {dimension_numbers = #tpu.dot_dimension_numbers<[1], [0], [0], [1], [0, 0, 1, 1], [], []>} : vector<64x16xbf16>, vector<16x512xbf16>, vector<64x512xf32> -> vector<64x512xf32>
    %c0_5 = arith.constant 0 : index
    %c0_6 = arith.constant 0 : index
    %7 = vector.load %arg4[%c0_5, %c0_6] : memref<1x512xf32, #tpu.memory_space<vmem>>, vector<1x512xf32>
    %8 = vector.broadcast %7 : vector<1x512xf32> to vector<64x512xf32>
    %9 = arith.addf %6, %8 : vector<64x512xf32>
    %10 = vector.shape_cast %9 : vector<64x512xf32> to vector<8x8x512xf32>
    %c0_7 = arith.constant 0 : index
    %c0_8 = arith.constant 0 : index
    %c0_9 = arith.constant 0 : index
    %11 = vector.load %arg11[%c0_7, %c0_8, %c0_9] : memref<8x8x512xf32, #tpu.memory_space<vmem>>, vector<8x8x512xf32>
    tpu.vector_store %arg11[%c0_7, %c0_8, %c0_9], %10 {strides = array<i32>} : memref<8x8x512xf32, #tpu.memory_space<vmem>>, vector<8x8x512xf32>,
    %c0_10 = arith.constant 0 : index
    %c0_11 = arith.constant 0 : index
    %12 = vector.load %arg12[%c0_10, %c0_11] : memref<8x128xf32, #tpu.memory_space<vmem>>, vector<8x128xf32>
    %c0_12 = arith.constant 0 : index
    %c0_13 = arith.constant 0 : index
    %13 = vector.load %arg13[%c0_12, %c0_13] : memref<8x128xf32, #tpu.memory_space<vmem>>, vector<8x128xf32>
    %c0_14 = arith.constant 0 : index
    %c0_15 = arith.constant 0 : index
    %c0_16 = arith.constant 0 : index
    %14 = vector.load %arg11[%c0_14, %c0_15, %c0_16] : memref<8x8x512xf32, #tpu.memory_space<vmem>>, vector<8x1x512xf32>
    %15 = vector.shape_cast %14 : vector<8x1x512xf32> to vector<8x512xf32>
    %16 = arith.truncf %12 : vector<8x128xf32> to vector<8x128xbf16>
    %c0_17 = arith.constant 0 : index
    %c0_18 = arith.constant 0 : index
    %17 = vector.load %arg5[%c0_17, %c0_18] : memref<128x512xbf16, #tpu.memory_space<vmem>>, vector<128x512xbf16>
    %cst_19 = arith.constant dense<0.000000e+00> : vector<8x512xf32>
    %18 = tpu.matmul %16, %17, %cst_19 {dimension_numbers = #tpu.dot_dimension_numbers<[1], [0], [0], [1], [0, 0, 1, 1], [], []>} : vector<8x128xbf16>, vector<128x512xbf16>, vector<8x512xf32> -> vector<8x512xf32>
    %19 = arith.addf %15, %18 : vector<8x512xf32>
    %20 = vector.extract_strided_slice %19 {offsets = [0, 0], sizes = [8, 384], strides = [1, 1]} : vector<8x512xf32> to vector<8x384xf32>
    %21 = arith.negf %20 : vector<8x384xf32>
    %22 = math.exp %21 : vector<8x384xf32>
    %cst_20 = arith.constant 1.000000e+00 : f32
    %23 = vector.broadcast %cst_20 : f32 to vector<8x384xf32>
    %24 = arith.addf %23, %22 : vector<8x384xf32>
    %25 = arith.divf %23, %24 : vector<8x384xf32>
    %26 = vector.extract_strided_slice %19 {offsets = [0, 384], sizes = [8, 128], strides = [1, 1]} : vector<8x512xf32> to vector<8x128xf32>
    %27 = math.tanh %26 : vector<8x128xf32>
    %28 = vector.extract_strided_slice %25 {offsets = [0, 0], sizes = [8, 128], strides = [1, 1]} : vector<8x384xf32> to vector<8x128xf32>
    %29 = vector.extract_strided_slice %25 {offsets = [0, 128], sizes = [8, 128], strides = [1, 1]} : vector<8x384xf32> to vector<8x128xf32>
    %30 = vector.extract_strided_slice %25 {offsets = [0, 256], sizes = [8, 128], strides = [1, 1]} : vector<8x384xf32> to vector<8x128xf32>
    %31 = arith.mulf %29, %13 : vector<8x128xf32>
    %32 = arith.mulf %28, %27 : vector<8x128xf32>
    %33 = arith.addf %31, %32 : vector<8x128xf32>
    %34 = math.tanh %33 : vector<8x128xf32>
    %35 = arith.mulf %30, %34 : vector<8x128xf32>
    %c0_21 = arith.constant 0 : index
    %c0_22 = arith.constant 0 : index
    %36 = vector.load %arg8[%c0_21, %c0_22] : memref<8x1024xf32, #tpu.memory_space<vmem>>, vector<8x128xf32>
    tpu.vector_store %arg8[%c0_21, %c0_22], %35 {strides = array<i32>} : memref<8x1024xf32, #tpu.memory_space<vmem>>, vector<8x128xf32>,
    %c0_23 = arith.constant 0 : index
    %c1 = arith.constant 1 : index
    %c0_24 = arith.constant 0 : index
    %37 = vector.load %arg11[%c0_23, %c1, %c0_24] : memref<8x8x512xf32, #tpu.memory_space<vmem>>, vector<8x1x512xf32>
    %38 = vector.shape_cast %37 : vector<8x1x512xf32> to vector<8x512xf32>
    %39 = arith.truncf %35 : vector<8x128xf32> to vector<8x128xbf16>
    %c0_25 = arith.constant 0 : index
    %c0_26 = arith.constant 0 : index
    %40 = vector.load %arg5[%c0_25, %c0_26] : memref<128x512xbf16, #tpu.memory_space<vmem>>, vector<128x512xbf16>
    %cst_27 = arith.constant dense<0.000000e+00> : vector<8x512xf32>
    %41 = tpu.matmul %39, %40, %cst_27 {dimension_numbers = #tpu.dot_dimension_numbers<[1], [0], [0], [1], [0, 0, 1, 1], [], []>} : vector<8x128xbf16>, vector<128x512xbf16>, vector<8x512xf32> -> vector<8x512xf32>
    %42 = arith.addf %38, %41 : vector<8x512xf32>
    %43 = vector.extract_strided_slice %42 {offsets = [0, 0], sizes = [8, 384], strides = [1, 1]} : vector<8x512xf32> to vector<8x384xf32>
    %44 = arith.negf %43 : vector<8x384xf32>
    %45 = math.exp %44 : vector<8x384xf32>
    %cst_28 = arith.constant 1.000000e+00 : f32
    %46 = vector.broadcast %cst_28 : f32 to vector<8x384xf32>
    %47 = arith.addf %46, %45 : vector<8x384xf32>
    %48 = arith.divf %46, %47 : vector<8x384xf32>
    %49 = vector.extract_strided_slice %42 {offsets = [0, 384], sizes = [8, 128], strides = [1, 1]} : vector<8x512xf32> to vector<8x128xf32>
    %50 = math.tanh %49 : vector<8x128xf32>
    %51 = vector.extract_strided_slice %48 {offsets = [0, 0], sizes = [8, 128], strides = [1, 1]} : vector<8x384xf32> to vector<8x128xf32>
    %52 = vector.extract_strided_slice %48 {offsets = [0, 128], sizes = [8, 128], strides = [1, 1]} : vector<8x384xf32> to vector<8x128xf32>
    %53 = vector.extract_strided_slice %48 {offsets = [0, 256], sizes = [8, 128], strides = [1, 1]} : vector<8x384xf32> to vector<8x128xf32>
    %54 = arith.mulf %52, %33 : vector<8x128xf32>
    %55 = arith.mulf %51, %50 : vector<8x128xf32>
    %56 = arith.addf %54, %55 : vector<8x128xf32>
    %57 = math.tanh %56 : vector<8x128xf32>
    %58 = arith.mulf %53, %57 : vector<8x128xf32>
    %c0_29 = arith.constant 0 : index
    %c128 = arith.constant 128 : index
    %59 = vector.load %arg8[%c0_29, %c128] : memref<8x1024xf32, #tpu.memory_space<vmem>>, vector<8x128xf32>
    tpu.vector_store %arg8[%c0_29, %c128], %58 {strides = array<i32>} : memref<8x1024xf32, #tpu.memory_space<vmem>>, vector<8x128xf32>,
    %c0_30 = arith.constant 0 : index
    %c2 = arith.constant 2 : index
    %c0_31 = arith.constant 0 : index
    %60 = vector.load %arg11[%c0_30, %c2, %c0_31] : memref<8x8x512xf32, #tpu.memory_space<vmem>>, vector<8x1x512xf32>
    %61 = vector.shape_cast %60 : vector<8x1x512xf32> to vector<8x512xf32>
    %62 = arith.truncf %58 : vector<8x128xf32> to vector<8x128xbf16>
    %c0_32 = arith.constant 0 : index
    %c0_33 = arith.constant 0 : index
    %63 = vector.load %arg5[%c0_32, %c0_33] : memref<128x512xbf16, #tpu.memory_space<vmem>>, vector<128x512xbf16>
    %cst_34 = arith.constant dense<0.000000e+00> : vector<8x512xf32>
    %64 = tpu.matmul %62, %63, %cst_34 {dimension_numbers = #tpu.dot_dimension_numbers<[1], [0], [0], [1], [0, 0, 1, 1], [], []>} : vector<8x128xbf16>, vector<128x512xbf16>, vector<8x512xf32> -> vector<8x512xf32>
    %65 = arith.addf %61, %64 : vector<8x512xf32>
    %66 = vector.extract_strided_slice %65 {offsets = [0, 0], sizes = [8, 384], strides = [1, 1]} : vector<8x512xf32> to vector<8x384xf32>
    %67 = arith.negf %66 : vector<8x384xf32>
    %68 = math.exp %67 : vector<8x384xf32>
    %cst_35 = arith.constant 1.000000e+00 : f32
    %69 = vector.broadcast %cst_35 : f32 to vector<8x384xf32>
    %70 = arith.addf %69, %68 : vector<8x384xf32>
    %71 = arith.divf %69, %70 : vector<8x384xf32>
    %72 = vector.extract_strided_slice %65 {offsets = [0, 384], sizes = [8, 128], strides = [1, 1]} : vector<8x512xf32> to vector<8x128xf32>
    %73 = math.tanh %72 : vector<8x128xf32>
    %74 = vector.extract_strided_slice %71 {offsets = [0, 0], sizes = [8, 128], strides = [1, 1]} : vector<8x384xf32> to vector<8x128xf32>
    %75 = vector.extract_strided_slice %71 {offsets = [0, 128], sizes = [8, 128], strides = [1, 1]} : vector<8x384xf32> to vector<8x128xf32>
    %76 = vector.extract_strided_slice %71 {offsets = [0, 256], sizes = [8, 128], strides = [1, 1]} : vector<8x384xf32> to vector<8x128xf32>
    %77 = arith.mulf %75, %56 : vector<8x128xf32>
    %78 = arith.mulf %74, %73 : vector<8x128xf32>
    %79 = arith.addf %77, %78 : vector<8x128xf32>
    %80 = math.tanh %79 : vector<8x128xf32>
    %81 = arith.mulf %76, %80 : vector<8x128xf32>
    %c0_36 = arith.constant 0 : index
    %c256 = arith.constant 256 : index
    %82 = vector.load %arg8[%c0_36, %c256] : memref<8x1024xf32, #tpu.memory_space<vmem>>, vector<8x128xf32>
    tpu.vector_store %arg8[%c0_36, %c256], %81 {strides = array<i32>} : memref<8x1024xf32, #tpu.memory_space<vmem>>, vector<8x128xf32>,
    %c0_37 = arith.constant 0 : index
    %c3 = arith.constant 3 : index
    %c0_38 = arith.constant 0 : index
    %83 = vector.load %arg11[%c0_37, %c3, %c0_38] : memref<8x8x512xf32, #tpu.memory_space<vmem>>, vector<8x1x512xf32>
    %84 = vector.shape_cast %83 : vector<8x1x512xf32> to vector<8x512xf32>
    %85 = arith.truncf %81 : vector<8x128xf32> to vector<8x128xbf16>
    %c0_39 = arith.constant 0 : index
    %c0_40 = arith.constant 0 : index
    %86 = vector.load %arg5[%c0_39, %c0_40] : memref<128x512xbf16, #tpu.memory_space<vmem>>, vector<128x512xbf16>
    %cst_41 = arith.constant dense<0.000000e+00> : vector<8x512xf32>
    %87 = tpu.matmul %85, %86, %cst_41 {dimension_numbers = #tpu.dot_dimension_numbers<[1], [0], [0], [1], [0, 0, 1, 1], [], []>} : vector<8x128xbf16>, vector<128x512xbf16>, vector<8x512xf32> -> vector<8x512xf32>
    %88 = arith.addf %84, %87 : vector<8x512xf32>
    %89 = vector.extract_strided_slice %88 {offsets = [0, 0], sizes = [8, 384], strides = [1, 1]} : vector<8x512xf32> to vector<8x384xf32>
    %90 = arith.negf %89 : vector<8x384xf32>
    %91 = math.exp %90 : vector<8x384xf32>
    %cst_42 = arith.constant 1.000000e+00 : f32
    %92 = vector.broadcast %cst_42 : f32 to vector<8x384xf32>
    %93 = arith.addf %92, %91 : vector<8x384xf32>
    %94 = arith.divf %92, %93 : vector<8x384xf32>
    %95 = vector.extract_strided_slice %88 {offsets = [0, 384], sizes = [8, 128], strides = [1, 1]} : vector<8x512xf32> to vector<8x128xf32>
    %96 = math.tanh %95 : vector<8x128xf32>
    %97 = vector.extract_strided_slice %94 {offsets = [0, 0], sizes = [8, 128], strides = [1, 1]} : vector<8x384xf32> to vector<8x128xf32>
    %98 = vector.extract_strided_slice %94 {offsets = [0, 128], sizes = [8, 128], strides = [1, 1]} : vector<8x384xf32> to vector<8x128xf32>
    %99 = vector.extract_strided_slice %94 {offsets = [0, 256], sizes = [8, 128], strides = [1, 1]} : vector<8x384xf32> to vector<8x128xf32>
    %100 = arith.mulf %98, %79 : vector<8x128xf32>
    %101 = arith.mulf %97, %96 : vector<8x128xf32>
    %102 = arith.addf %100, %101 : vector<8x128xf32>
    %103 = math.tanh %102 : vector<8x128xf32>
    %104 = arith.mulf %99, %103 : vector<8x128xf32>
    %c0_43 = arith.constant 0 : index
    %c384 = arith.constant 384 : index
    %105 = vector.load %arg8[%c0_43, %c384] : memref<8x1024xf32, #tpu.memory_space<vmem>>, vector<8x128xf32>
    tpu.vector_store %arg8[%c0_43, %c384], %104 {strides = array<i32>} : memref<8x1024xf32, #tpu.memory_space<vmem>>, vector<8x128xf32>,
    %c0_44 = arith.constant 0 : index
    %c4 = arith.constant 4 : index
    %c0_45 = arith.constant 0 : index
    %106 = vector.load %arg11[%c0_44, %c4, %c0_45] : memref<8x8x512xf32, #tpu.memory_space<vmem>>, vector<8x1x512xf32>
    %107 = vector.shape_cast %106 : vector<8x1x512xf32> to vector<8x512xf32>
    %108 = arith.truncf %104 : vector<8x128xf32> to vector<8x128xbf16>
    %c0_46 = arith.constant 0 : index
    %c0_47 = arith.constant 0 : index
    %109 = vector.load %arg5[%c0_46, %c0_47] : memref<128x512xbf16, #tpu.memory_space<vmem>>, vector<128x512xbf16>
    %cst_48 = arith.constant dense<0.000000e+00> : vector<8x512xf32>
    %110 = tpu.matmul %108, %109, %cst_48 {dimension_numbers = #tpu.dot_dimension_numbers<[1], [0], [0], [1], [0, 0, 1, 1], [], []>} : vector<8x128xbf16>, vector<128x512xbf16>, vector<8x512xf32> -> vector<8x512xf32>
    %111 = arith.addf %107, %110 : vector<8x512xf32>
    %112 = vector.extract_strided_slice %111 {offsets = [0, 0], sizes = [8, 384], strides = [1, 1]} : vector<8x512xf32> to vector<8x384xf32>
    %113 = arith.negf %112 : vector<8x384xf32>
    %114 = math.exp %113 : vector<8x384xf32>
    %cst_49 = arith.constant 1.000000e+00 : f32
    %115 = vector.broadcast %cst_49 : f32 to vector<8x384xf32>
    %116 = arith.addf %115, %114 : vector<8x384xf32>
    %117 = arith.divf %115, %116 : vector<8x384xf32>
    %118 = vector.extract_strided_slice %111 {offsets = [0, 384], sizes = [8, 128], strides = [1, 1]} : vector<8x512xf32> to vector<8x128xf32>
    %119 = math.tanh %118 : vector<8x128xf32>
    %120 = vector.extract_strided_slice %117 {offsets = [0, 0], sizes = [8, 128], strides = [1, 1]} : vector<8x384xf32> to vector<8x128xf32>
    %121 = vector.extract_strided_slice %117 {offsets = [0, 128], sizes = [8, 128], strides = [1, 1]} : vector<8x384xf32> to vector<8x128xf32>
    %122 = vector.extract_strided_slice %117 {offsets = [0, 256], sizes = [8, 128], strides = [1, 1]} : vector<8x384xf32> to vector<8x128xf32>
    %123 = arith.mulf %121, %102 : vector<8x128xf32>
    %124 = arith.mulf %120, %119 : vector<8x128xf32>
    %125 = arith.addf %123, %124 : vector<8x128xf32>
    %126 = math.tanh %125 : vector<8x128xf32>
    %127 = arith.mulf %122, %126 : vector<8x128xf32>
    %c0_50 = arith.constant 0 : index
    %c512 = arith.constant 512 : index
    %128 = vector.load %arg8[%c0_50, %c512] : memref<8x1024xf32, #tpu.memory_space<vmem>>, vector<8x128xf32>
    tpu.vector_store %arg8[%c0_50, %c512], %127 {strides = array<i32>} : memref<8x1024xf32, #tpu.memory_space<vmem>>, vector<8x128xf32>,
    %c0_51 = arith.constant 0 : index
    %c5 = arith.constant 5 : index
    %c0_52 = arith.constant 0 : index
    %129 = vector.load %arg11[%c0_51, %c5, %c0_52] : memref<8x8x512xf32, #tpu.memory_space<vmem>>, vector<8x1x512xf32>
    %130 = vector.shape_cast %129 : vector<8x1x512xf32> to vector<8x512xf32>
    %131 = arith.truncf %127 : vector<8x128xf32> to vector<8x128xbf16>
    %c0_53 = arith.constant 0 : index
    %c0_54 = arith.constant 0 : index
    %132 = vector.load %arg5[%c0_53, %c0_54] : memref<128x512xbf16, #tpu.memory_space<vmem>>, vector<128x512xbf16>
    %cst_55 = arith.constant dense<0.000000e+00> : vector<8x512xf32>
    %133 = tpu.matmul %131, %132, %cst_55 {dimension_numbers = #tpu.dot_dimension_numbers<[1], [0], [0], [1], [0, 0, 1, 1], [], []>} : vector<8x128xbf16>, vector<128x512xbf16>, vector<8x512xf32> -> vector<8x512xf32>
    %134 = arith.addf %130, %133 : vector<8x512xf32>
    %135 = vector.extract_strided_slice %134 {offsets = [0, 0], sizes = [8, 384], strides = [1, 1]} : vector<8x512xf32> to vector<8x384xf32>
    %136 = arith.negf %135 : vector<8x384xf32>
    %137 = math.exp %136 : vector<8x384xf32>
    %cst_56 = arith.constant 1.000000e+00 : f32
    %138 = vector.broadcast %cst_56 : f32 to vector<8x384xf32>
    %139 = arith.addf %138, %137 : vector<8x384xf32>
    %140 = arith.divf %138, %139 : vector<8x384xf32>
    %141 = vector.extract_strided_slice %134 {offsets = [0, 384], sizes = [8, 128], strides = [1, 1]} : vector<8x512xf32> to vector<8x128xf32>
    %142 = math.tanh %141 : vector<8x128xf32>
    %143 = vector.extract_strided_slice %140 {offsets = [0, 0], sizes = [8, 128], strides = [1, 1]} : vector<8x384xf32> to vector<8x128xf32>
    %144 = vector.extract_strided_slice %140 {offsets = [0, 128], sizes = [8, 128], strides = [1, 1]} : vector<8x384xf32> to vector<8x128xf32>
    %145 = vector.extract_strided_slice %140 {offsets = [0, 256], sizes = [8, 128], strides = [1, 1]} : vector<8x384xf32> to vector<8x128xf32>
    %146 = arith.mulf %144, %125 : vector<8x128xf32>
    %147 = arith.mulf %143, %142 : vector<8x128xf32>
    %148 = arith.addf %146, %147 : vector<8x128xf32>
    %149 = math.tanh %148 : vector<8x128xf32>
    %150 = arith.mulf %145, %149 : vector<8x128xf32>
    %c0_57 = arith.constant 0 : index
    %c640 = arith.constant 640 : index
    %151 = vector.load %arg8[%c0_57, %c640] : memref<8x1024xf32, #tpu.memory_space<vmem>>, vector<8x128xf32>
    tpu.vector_store %arg8[%c0_57, %c640], %150 {strides = array<i32>} : memref<8x1024xf32, #tpu.memory_space<vmem>>, vector<8x128xf32>,
    %c0_58 = arith.constant 0 : index
    %c6 = arith.constant 6 : index
    %c0_59 = arith.constant 0 : index
    %152 = vector.load %arg11[%c0_58, %c6, %c0_59] : memref<8x8x512xf32, #tpu.memory_space<vmem>>, vector<8x1x512xf32>
    %153 = vector.shape_cast %152 : vector<8x1x512xf32> to vector<8x512xf32>
    %154 = arith.truncf %150 : vector<8x128xf32> to vector<8x128xbf16>
    %c0_60 = arith.constant 0 : index
    %c0_61 = arith.constant 0 : index
    %155 = vector.load %arg5[%c0_60, %c0_61] : memref<128x512xbf16, #tpu.memory_space<vmem>>, vector<128x512xbf16>
    %cst_62 = arith.constant dense<0.000000e+00> : vector<8x512xf32>
    %156 = tpu.matmul %154, %155, %cst_62 {dimension_numbers = #tpu.dot_dimension_numbers<[1], [0], [0], [1], [0, 0, 1, 1], [], []>} : vector<8x128xbf16>, vector<128x512xbf16>, vector<8x512xf32> -> vector<8x512xf32>
    %157 = arith.addf %153, %156 : vector<8x512xf32>
    %158 = vector.extract_strided_slice %157 {offsets = [0, 0], sizes = [8, 384], strides = [1, 1]} : vector<8x512xf32> to vector<8x384xf32>
    %159 = arith.negf %158 : vector<8x384xf32>
    %160 = math.exp %159 : vector<8x384xf32>
    %cst_63 = arith.constant 1.000000e+00 : f32
    %161 = vector.broadcast %cst_63 : f32 to vector<8x384xf32>
    %162 = arith.addf %161, %160 : vector<8x384xf32>
    %163 = arith.divf %161, %162 : vector<8x384xf32>
    %164 = vector.extract_strided_slice %157 {offsets = [0, 384], sizes = [8, 128], strides = [1, 1]} : vector<8x512xf32> to vector<8x128xf32>
    %165 = math.tanh %164 : vector<8x128xf32>
    %166 = vector.extract_strided_slice %163 {offsets = [0, 0], sizes = [8, 128], strides = [1, 1]} : vector<8x384xf32> to vector<8x128xf32>
    %167 = vector.extract_strided_slice %163 {offsets = [0, 128], sizes = [8, 128], strides = [1, 1]} : vector<8x384xf32> to vector<8x128xf32>
    %168 = vector.extract_strided_slice %163 {offsets = [0, 256], sizes = [8, 128], strides = [1, 1]} : vector<8x384xf32> to vector<8x128xf32>
    %169 = arith.mulf %167, %148 : vector<8x128xf32>
    %170 = arith.mulf %166, %165 : vector<8x128xf32>
    %171 = arith.addf %169, %170 : vector<8x128xf32>
    %172 = math.tanh %171 : vector<8x128xf32>
    %173 = arith.mulf %168, %172 : vector<8x128xf32>
    %c0_64 = arith.constant 0 : index
    %c768 = arith.constant 768 : index
    %174 = vector.load %arg8[%c0_64, %c768] : memref<8x1024xf32, #tpu.memory_space<vmem>>, vector<8x128xf32>
    tpu.vector_store %arg8[%c0_64, %c768], %173 {strides = array<i32>} : memref<8x1024xf32, #tpu.memory_space<vmem>>, vector<8x128xf32>,
    %c0_65 = arith.constant 0 : index
    %c7 = arith.constant 7 : index
    %c0_66 = arith.constant 0 : index
    %175 = vector.load %arg11[%c0_65, %c7, %c0_66] : memref<8x8x512xf32, #tpu.memory_space<vmem>>, vector<8x1x512xf32>
    %176 = vector.shape_cast %175 : vector<8x1x512xf32> to vector<8x512xf32>
    %177 = arith.truncf %173 : vector<8x128xf32> to vector<8x128xbf16>
    %c0_67 = arith.constant 0 : index
    %c0_68 = arith.constant 0 : index
    %178 = vector.load %arg5[%c0_67, %c0_68] : memref<128x512xbf16, #tpu.memory_space<vmem>>, vector<128x512xbf16>
    %cst_69 = arith.constant dense<0.000000e+00> : vector<8x512xf32>
    %179 = tpu.matmul %177, %178, %cst_69 {dimension_numbers = #tpu.dot_dimension_numbers<[1], [0], [0], [1], [0, 0, 1, 1], [], []>} : vector<8x128xbf16>, vector<128x512xbf16>, vector<8x512xf32> -> vector<8x512xf32>
    %180 = arith.addf %176, %179 : vector<8x512xf32>
    %181 = vector.extract_strided_slice %180 {offsets = [0, 0], sizes = [8, 384], strides = [1, 1]} : vector<8x512xf32> to vector<8x384xf32>
    %182 = arith.negf %181 : vector<8x384xf32>
    %183 = math.exp %182 : vector<8x384xf32>
    %cst_70 = arith.constant 1.000000e+00 : f32
    %184 = vector.broadcast %cst_70 : f32 to vector<8x384xf32>
    %185 = arith.addf %184, %183 : vector<8x384xf32>
    %186 = arith.divf %184, %185 : vector<8x384xf32>
    %187 = vector.extract_strided_slice %180 {offsets = [0, 384], sizes = [8, 128], strides = [1, 1]} : vector<8x512xf32> to vector<8x128xf32>
    %188 = math.tanh %187 : vector<8x128xf32>
    %189 = vector.extract_strided_slice %186 {offsets = [0, 0], sizes = [8, 128], strides = [1, 1]} : vector<8x384xf32> to vector<8x128xf32>
    %190 = vector.extract_strided_slice %186 {offsets = [0, 128], sizes = [8, 128], strides = [1, 1]} : vector<8x384xf32> to vector<8x128xf32>
    %191 = vector.extract_strided_slice %186 {offsets = [0, 256], sizes = [8, 128], strides = [1, 1]} : vector<8x384xf32> to vector<8x128xf32>
    %192 = arith.mulf %190, %171 : vector<8x128xf32>
    %193 = arith.mulf %189, %188 : vector<8x128xf32>
    %194 = arith.addf %192, %193 : vector<8x128xf32>
    %195 = math.tanh %194 : vector<8x128xf32>
    %196 = arith.mulf %191, %195 : vector<8x128xf32>
    %c0_71 = arith.constant 0 : index
    %c896 = arith.constant 896 : index
    %197 = vector.load %arg8[%c0_71, %c896] : memref<8x1024xf32, #tpu.memory_space<vmem>>, vector<8x128xf32>
    tpu.vector_store %arg8[%c0_71, %c896], %196 {strides = array<i32>} : memref<8x1024xf32, #tpu.memory_space<vmem>>, vector<8x128xf32>,
    %c0_72 = arith.constant 0 : index
    %c0_73 = arith.constant 0 : index
    %198 = vector.load %arg12[%c0_72, %c0_73] : memref<8x128xf32, #tpu.memory_space<vmem>>, vector<8x128xf32>
    tpu.vector_store %arg12[%c0_72, %c0_73], %196 {strides = array<i32>} : memref<8x128xf32, #tpu.memory_space<vmem>>, vector<8x128xf32>,
    %c0_74 = arith.constant 0 : index
    %c0_75 = arith.constant 0 : index
    %199 = vector.load %arg13[%c0_74, %c0_75] : memref<8x128xf32, #tpu.memory_space<vmem>>, vector<8x128xf32>
    tpu.vector_store %arg13[%c0_74, %c0_75], %194 {strides = array<i32>} : memref<8x128xf32, #tpu.memory_space<vmem>>, vector<8x128xf32>,
    %c0_76 = arith.constant 0 : index
    %c0_77 = arith.constant 0 : index
    %200 = vector.load %arg9[%c0_76, %c0_77] : memref<8x128xf32, #tpu.memory_space<vmem>>, vector<8x128xf32>
    tpu.vector_store %arg9[%c0_76, %c0_77], %196 {strides = array<i32>} : memref<8x128xf32, #tpu.memory_space<vmem>>, vector<8x128xf32>,
    %c0_78 = arith.constant 0 : index
    %c0_79 = arith.constant 0 : index
    %201 = vector.load %arg10[%c0_78, %c0_79] : memref<8x128xf32, #tpu.memory_space<vmem>>, vector<8x128xf32>
    tpu.vector_store %arg10[%c0_78, %c0_79], %194 {strides = array<i32>} : memref<8x128xf32, #tpu.memory_space<vmem>>, vector<8x128xf32>,
    return
  }
  func.func @transform_0(%arg0: i32, %arg1: i32) -> (i32, i32, i32) {
    %c0_i32 = arith.constant 0 : i32
    %c0_i32_0 = arith.constant 0 : i32
    return %arg0, %arg1, %c0_i32 : i32, i32, i32
  }
  func.func @transform_1(%arg0: i32, %arg1: i32) -> (i32, i32) {
    %c0_i32 = arith.constant 0 : i32
    %c0_i32_0 = arith.constant 0 : i32
    %c0_i32_1 = arith.constant 0 : i32
    return %c0_i32, %c0_i32_0 : i32, i32
  }
  func.func @transform_2(%arg0: i32, %arg1: i32) -> (i32, i32) {
    %c0_i32 = arith.constant 0 : i32
    %c0_i32_0 = arith.constant 0 : i32
    %c0_i32_1 = arith.constant 0 : i32
    return %c0_i32, %c0_i32_0 : i32, i32
  }
  func.func @transform_3(%arg0: i32, %arg1: i32) -> (i32, i32) {
    %c0_i32 = arith.constant 0 : i32
    %c0_i32_0 = arith.constant 0 : i32
    %c0_i32_1 = arith.constant 0 : i32
    return %c0_i32, %c0_i32_0 : i32, i32
  }
  func.func @transform_4(%arg0: i32, %arg1: i32) -> (i32, i32) {
    %c0_i32 = arith.constant 0 : i32
    %c0_i32_0 = arith.constant 0 : i32
    return %arg0, %c0_i32 : i32, i32
  }
  func.func @transform_5(%arg0: i32, %arg1: i32) -> (i32, i32) {
    %c0_i32 = arith.constant 0 : i32
    %c0_i32_0 = arith.constant 0 : i32
    return %arg0, %c0_i32 : i32, i32
  }
  func.func @transform_6(%arg0: i32, %arg1: i32) -> (i32, i32) {
    %c0_i32 = arith.constant 0 : i32
    return %arg0, %arg1 : i32, i32
  }
  func.func @transform_7(%arg0: i32, %arg1: i32) -> (i32, i32) {
    %c0_i32 = arith.constant 0 : i32
    %c0_i32_0 = arith.constant 0 : i32
    return %arg0, %c0_i32 : i32, i32
  }
  func.func @transform_8(%arg0: i32, %arg1: i32) -> (i32, i32) {
    %c0_i32 = arith.constant 0 : i32
    %c0_i32_0 = arith.constant 0 : i32
    return %arg0, %c0_i32 : i32, i32
  }
}

</mosaic_0001>

<llo_original>
// kernel: tpu_custom_call.1
$region0: #{tpu_custom_call.1}
  #allocation0 [shape = 'u32[]', space=smem, size = 0x4, offset = 0x4, fixed_abs, tag = 'smem constant byte address 0x4 - core index']
  #allocation1 [shape = 'u32[144,128]{1,0:T(1,128)}', space=vmem, size = 0x12000, scoped, tag = 'internal scratch']
  #allocation2 [shape = 'f32[8,8,512]{2,1,0:T(8,128)}', space=vmem, size = 0x20000, scoped, tag = 'scratch operand']
  #allocation3 [shape = 'f32[8,128]{1,0:T(8,128)}', space=vmem, size = 0x1000, scoped, tag = 'scratch operand']
  #allocation4 [shape = 'f32[8,128]{1,0:T(8,128)}', space=vmem, size = 0x1000, scoped, tag = 'scratch operand']
  %s0 = inlined_call_operand.hbm [shape: bf16[8,8,16], index: 0, kind: input, shape index: {}]
  %s1 = inlined_call_operand.hbm [shape: bf16[16,512], index: 1, kind: input, shape index: {}]
  %s2 = inlined_call_operand.hbm [shape: f32[1,512], index: 2, kind: input, shape index: {}]
  %s3 = inlined_call_operand.hbm [shape: bf16[128,512], index: 3, kind: input, shape index: {}]
  %s4 = inlined_call_operand.hbm [shape: f32[8,128], index: 4, kind: input, shape index: {}]
  %s5 = inlined_call_operand.vmem [shape: f32[8,128], index: 5, kind: input, shape index: {}]
  %s6 = inlined_call_operand.hbm [shape: f32[8,1024], index: 6, kind: output, shape index: {0}]
  %s7 = inlined_call_operand.hbm [shape: f32[8,128], index: 7, kind: output, shape index: {1}]
  %s8 = inlined_call_operand.hbm [shape: f32[8,128], index: 8, kind: output, shape index: {2}]
  %9 = xla_tuple %s6, %s7, %s8
  %s10 = sld [smem:[#allocation0]]
  $region74: #{tpu_custom_call.1} parent=0
    _
  %s12 = ssub.s32 1, %s10
  %s13 = scalar_select 0, %s12, %s10
  $region1: #{tpu_custom_call.1} parent=0
    #allocation5 [shape = 'u8[16384]{0}', space=vmem, size = 0x4000, scoped, tag = 'input window, operand 0, single buffered']
    #allocation6 [shape = 's32[1]{0}', space=sflag, size = 0x4, scoped, tag = 'scoped memory for tpu_custom_call.1']
    #allocation7 [shape = 's32[1]{0}', space=sflag, size = 0x4, scoped, tag = 'scoped memory for tpu_custom_call.1']
    #allocation8 [shape = 'u8[16384]{0}', space=vmem, size = 0x4000, scoped, tag = 'input window, operand 1, single buffered']
    #allocation9 [shape = 's32[1]{0}', space=sflag, size = 0x4, scoped, tag = 'scoped memory for tpu_custom_call.1']
    #allocation10 [shape = 'u8[2048]{0}', space=vmem, size = 0x800, scoped, tag = 'input window, operand 2, single buffered']
    #allocation11 [shape = 'u8[131072]{0}', space=vmem, size = 0x20000, scoped, tag = 'input window, operand 3, single buffered']
    #allocation12 [shape = 's32[1]{0}', space=sflag, size = 0x4, scoped, tag = 'scoped memory for tpu_custom_call.1']
    #allocation13 [shape = 'u8[4096]{0}', space=vmem, size = 0x1000, scoped, tag = 'input window, operand 4, single buffered']
    #allocation14 [shape = 'u8[32768]{0}', space=vmem, size = 0x8000, scoped, tag = 'output window, operand 0, single buffered']
    #allocation15 [shape = 'u8[4096]{0}', space=vmem, size = 0x1000, scoped, tag = 'output window, operand 1, single buffered']
    #allocation16 [shape = 's32[1]{0}', space=sflag, size = 0x4, scoped, tag = 'scoped memory for tpu_custom_call.1']
    #allocation17 [shape = 'u8[4096]{0}', space=vmem, size = 0x1000, scoped, tag = 'output window, operand 2, single buffered']
    %14 = vsyncpa [#allocation6], 0
    %15 = vsyncpa [#allocation9], 0
    %16 = vsyncpa [#allocation12], 0
    %17 = vsyncpa [#allocation7], 0
    %18 = vsyncpa [#allocation16], 0
    // Predicated region
    $region2: #{tpu_custom_call.1} parent=1 // pred_check
      _
    $region3: #{tpu_custom_call.1} parent=1 // pred_check_branch
      %20 = sbr.rel (0) target = $region5
    $region4: #{tpu_custom_call.1} parent=1 // pred_region
      %s22 = ssub.s32 512, 512
      %23 = vsyncadd [#allocation6], %s22
      %s24 = sshll.u32 [#allocation5], 4
      %s25 = int_to_ptr.vmem [resolvable:$true] %s24
      %30 = dma.hbm_to_vmem [thread:$0]  %s0, 512, %s25, [#allocation6], 64, 64, 4
    $region5: #{tpu_custom_call.1} parent=1 // pred_fallthru
      _
    // Predicated region
    $region6: #{tpu_custom_call.1} parent=1 // pred_check
      _
    $region7: #{tpu_custom_call.1} parent=1 // pred_check_branch
      %32 = sbr.rel (0) target = $region9
    $region8: #{tpu_custom_call.1} parent=1 // pred_region
      %s34 = ssub.s32 512, 512
      %35 = vsyncadd [#allocation9], %s34
      %s36 = sshll.u32 [#allocation8], 4
      %s37 = int_to_ptr.vmem [resolvable:$true] %s36
      %42 = dma.hbm_to_vmem [thread:$0]  %s1, 512, %s37, [#allocation9], 256, 256, 16
    $region9: #{tpu_custom_call.1} parent=1 // pred_fallthru
      _
    // Predicated region
    $region10: #{tpu_custom_call.1} parent=1 // pred_check
      _
    $region11: #{tpu_custom_call.1} parent=1 // pred_check_branch
      %44 = sbr.rel (0) target = $region13
    $region12: #{tpu_custom_call.1} parent=1 // pred_region
      %s46 = ssub.s32 64, 64
      %47 = vsyncadd [#allocation9], %s46
      %s49 = sshll.u32 [#allocation10], 4
      %s50 = int_to_ptr.vmem [resolvable:$true] %s49
      %52 = dma.hbm_to_vmem [thread:$0]  %s2, 64, %s50, [#allocation9]
    $region13: #{tpu_custom_call.1} parent=1 // pred_fallthru
      _
    // Predicated region
    $region14: #{tpu_custom_call.1} parent=1 // pred_check
      _
    $region15: #{tpu_custom_call.1} parent=1 // pred_check_branch
      %54 = sbr.rel (0) target = $region17
    $region16: #{tpu_custom_call.1} parent=1 // pred_region
      %s56 = ssub.s32 4096, 4096
      %57 = vsyncadd [#allocation12], %s56
      %s58 = sshll.u32 [#allocation11], 4
      %s59 = int_to_ptr.vmem [resolvable:$true] %s58
      %64 = dma.hbm_to_vmem [thread:$0]  %s3, 4096, %s59, [#allocation12], 256, 256, 16
    $region17: #{tpu_custom_call.1} parent=1 // pred_fallthru
      _
    // Predicated region
    $region18: #{tpu_custom_call.1} parent=1 // pred_check
      _
    $region19: #{tpu_custom_call.1} parent=1 // pred_check_branch
      %66 = sbr.rel (0) target = $region21
    $region20: #{tpu_custom_call.1} parent=1 // pred_region
      %s68 = ssub.s32 128, 128
      %69 = vsyncadd [#allocation12], %s68
      %s71 = sshll.u32 [#allocation13], 4
      %s72 = int_to_ptr.vmem [resolvable:$true] %s71
      %74 = dma.hbm_to_vmem [thread:$0]  %s4, 128, %s72, [#allocation12]
    $region21: #{tpu_custom_call.1} parent=1 // pred_fallthru
      _
    // Predicated region
    $region22: #{tpu_custom_call.1} parent=1 // pred_check
      _
    $region23: #{tpu_custom_call.1} parent=1 // pred_check_branch
      %76 = sbr.rel (0) target = $region25
    $region24: #{tpu_custom_call.1} parent=1 // pred_region
      _
    $region25: #{tpu_custom_call.1} parent=1 // pred_fallthru
      _
    // Predicated region
    $region26: #{tpu_custom_call.1} parent=1 // pred_check
      _
    $region27: #{tpu_custom_call.1} parent=1 // pred_check_branch
      %78 = sbr.rel (0) target = $region29
    $region28: #{tpu_custom_call.1} parent=1 // pred_region
      %79 = dma.done [#allocation6], 512
    $region29: #{tpu_custom_call.1} parent=1 // pred_fallthru
      _
    // Predicated region
    $region30: #{tpu_custom_call.1} parent=1 // pred_check
      _
    $region31: #{tpu_custom_call.1} parent=1 // pred_check_branch
      %81 = sbr.rel (0) target = $region33
    $region32: #{tpu_custom_call.1} parent=1 // pred_region
      %82 = dma.done [#allocation9], 512
    $region33: #{tpu_custom_call.1} parent=1 // pred_fallthru
      _
    // Predicated region
    $region34: #{tpu_custom_call.1} parent=1 // pred_check
      _
    $region35: #{tpu_custom_call.1} parent=1 // pred_check_branch
      %84 = sbr.rel (0) target = $region37
    $region36: #{tpu_custom_call.1} parent=1 // pred_region
      %85 = dma.done [#allocation9], 64
    $region37: #{tpu_custom_call.1} parent=1 // pred_fallthru
      _
    // Predicated region
    $region38: #{tpu_custom_call.1} parent=1 // pred_check
      _
    $region39: #{tpu_custom_call.1} parent=1 // pred_check_branch
      %87 = sbr.rel (0) target = $region41
    $region40: #{tpu_custom_call.1} parent=1 // pred_region
      %88 = dma.done [#allocation12], 4096
    $region41: #{tpu_custom_call.1} parent=1 // pred_fallthru
      _
    // Predicated region
    $region42: #{tpu_custom_call.1} parent=1 // pred_check
      _
    $region43: #{tpu_custom_call.1} parent=1 // pred_check_branch
      %90 = sbr.rel (0) target = $region45
    $region44: #{tpu_custom_call.1} parent=1 // pred_region
      %91 = dma.done [#allocation12], 128
    $region45: #{tpu_custom_call.1} parent=1 // pred_fallthru
      _
    %p93 = scmp.eq.s32.totalorder 0, 0
    // Predicated region
    $region46: #{tpu_custom_call.1} parent=1 // pred_check
      %p94 = pneg %p93
    $region47: #{tpu_custom_call.1} parent=1 // pred_check_branch
      %96 = sbr.rel (%p94) target = $region49
    $region48: #{tpu_custom_call.1} parent=1 // pred_region
      %v97 = vld [vmem:[#allocation13] sm:$0xff]
      %98 = vst [vmem:[#allocation3] sm:$0xff] %v97
      %v99 = vld [vmem:[%s5] sm:$0xff]
      %100 = vst [vmem:[#allocation4] sm:$0xff] %v99
    $region49: #{tpu_custom_call.1} parent=1 // pred_fallthru
      _
    %v101 = vld [vmem:[#allocation5] sm:$0xf]
    %v102 = vld [vmem:[#allocation5 + $0x4] sm:$0xf]
    %v103 = vld [vmem:[#allocation5 + $0x8] sm:$0xf]
    %v104 = vld [vmem:[#allocation5 + $0xc] sm:$0xf]
    %v105 = vld [vmem:[#allocation5 + $0x10] sm:$0xf]
    %v106 = vld [vmem:[#allocation5 + $0x14] sm:$0xf]
    %v107 = vld [vmem:[#allocation5 + $0x18] sm:$0xf]
    %v108 = vld [vmem:[#allocation5 + $0x1c] sm:$0xf]
    %v109 = vld [vmem:[#allocation8] sm:$0xff]
    %v110 = vld [vmem:[#allocation8 + $0x8] sm:$0xff]
    %v111 = vld [vmem:[#allocation8 + $0x10] sm:$0xff]
    %v112 = vld [vmem:[#allocation8 + $0x18] sm:$0xff]
    %v113 = vld [vmem:[#allocation10] sm:$0xf]
    %v115 = vlaneseq
    %v116 = vshrl.u32 %v115, 7
    %v117 = vsub.s32 0, %v116
    %v118 = vrot.slane %v113, %v117
    %v119 = vlaneseq
    %v120 = vshrl.u32 %v119, 7
    %v121 = vsub.s32 1, %v120
    %v122 = vrot.slane %v113, %v121
    %v123 = vlaneseq
    %v124 = vshrl.u32 %v123, 7
    %v125 = vsub.s32 2, %v124
    %v126 = vrot.slane %v113, %v125
    %v127 = vlaneseq
    %v128 = vshrl.u32 %v127, 7
    %v129 = vsub.s32 3, %v128
    %v130 = vrot.slane %v113, %v129
    %v143 = vunpack.c.l.b16 %v101
    %v144 = vunpack.c.l.b16 %v102
    %v145 = vunpack.c.l.b16 %v103
    %v146 = vunpack.c.l.b16 %v104
    %v147 = vunpack.c.l.b16 %v105
    %v148 = vunpack.c.l.b16 %v106
    %v149 = vunpack.c.l.b16 %v107
    %v150 = vunpack.c.l.b16 %v108
    %v151 = vpack.c.b16 %v144, %v143
    %v152 = vpack.c.b16 %v146, %v145
    %v153 = vpack.c.b16 %v148, %v147
    %v154 = vpack.c.b16 %v150, %v149
    %v159 = vunpack.c.l.b16 %v109
    %v160 = vunpack.c.h.b16 %v109
    %v161 = vunpack.c.l.b16 %v110
    %v162 = vunpack.c.h.b16 %v110
    %v163 = vunpack.c.l.b16 %v111
    %v164 = vunpack.c.h.b16 %v111
    %v165 = vunpack.c.l.b16 %v112
    %v166 = vunpack.c.h.b16 %v112
    %v167 = vpack.c.b16 %v163, %v159
    %v168 = vpack.c.b16 %v164, %v160
    %v169 = vpack.c.b16 %v165, %v161
    %v170 = vpack.c.b16 %v166, %v162
    %vm175 = vcmask 130048
    %v177 = vsel %vm175, %v151, 0
    %v180 = vsel %vm175, %v152, 0
    %v183 = vsel %vm175, %v153, 0
    %v186 = vsel %vm175, %v154, 0
    %188 = vmatprep.subr.bf16.mxu0 0
    %189 = vmatpush1.bf16.msra.mxu0 0
    %190 = vmatprep.subr.bf16.mxu0 0
    %191 = vmatpush1.bf16.msra.mxu0 0
    %192 = vmatprep.subr.bf16.mxu0 0
    %193 = vmatpush1.bf16.msra.mxu0 0
    %194 = vmatprep.subr.bf16.mxu0 0
    %195 = vmatpush1.bf16.msra.mxu0 0
    %196 = vmatprep.subr.bf16.mxu0 0
    %197 = vmatpush1.bf16.msra.mxu0 0
    %198 = vmatprep.subr.bf16.mxu0 0
    %199 = vmatpush1.bf16.msra.mxu0 0
    %200 = vmatprep.subr.bf16.mxu0 0
    %201 = vmatpush1.bf16.msra.mxu0 0
    %202 = vmatprep.subr.bf16.mxu0 %v168
    %203 = vmatpush1.bf16.msra.mxu0 %v167
    %204 = vmatprep.subr.bf16.mxu0 0
    %205 = vmatpush2.bf16.msra.mxu0 0
    %206 = vmatprep.subr.bf16.mxu0 0
    %207 = vmatpush2.bf16.msra.mxu0 0
    %208 = vmatprep.subr.bf16.mxu0 0
    %209 = vmatpush2.bf16.msra.mxu0 0
    %210 = vmatprep.subr.bf16.mxu0 0
    %211 = vmatpush2.bf16.msra.mxu0 0
    %212 = vmatprep.subr.bf16.mxu0 0
    %213 = vmatpush2.bf16.msra.mxu0 0
    %214 = vmatprep.subr.bf16.mxu0 0
    %215 = vmatpush2.bf16.msra.mxu0 0
    %216 = vmatprep.subr.bf16.mxu0 0
    %217 = vmatpush2.bf16.msra.mxu0 0
    %218 = vmatprep.subr.bf16.mxu0 0
    %219 = vmatpush2.bf16.msra.mxu0 0
    %220 = vmatprep.mubr.bf16.mxu0 0
    %221 = vmatmul.mubr.bf16.gmra.mxu0 %v177
    %v222 = vpop.f32.mrf.mxu0
    %v223 = vadd.f32 %v118, %v222
    %v224 = vpop.f32.mrf.mxu0
    %v225 = vadd.f32 %v122, %v224
    %v226 = vpop.f32.mrf.mxu0
    %v227 = vadd.f32 %v118, %v226
    %v228 = vpop.f32.mrf.mxu0
    %v229 = vadd.f32 %v122, %v228
    %230 = vmatprep.mubr.bf16.mxu0 0
    %231 = vmatmul.mubr.bf16.gmra.mxu0 %v180
    %v232 = vpop.f32.mrf.mxu0
    %v233 = vadd.f32 %v118, %v232
    %v234 = vpop.f32.mrf.mxu0
    %v235 = vadd.f32 %v122, %v234
    %v236 = vpop.f32.mrf.mxu0
    %v237 = vadd.f32 %v118, %v236
    %v238 = vpop.f32.mrf.mxu0
    %v239 = vadd.f32 %v122, %v238
    %240 = vmatprep.mubr.bf16.mxu0 0
    %241 = vmatmul.mubr.bf16.gmra.mxu0 %v183
    %v242 = vpop.f32.mrf.mxu0
    %v243 = vadd.f32 %v118, %v242
    %v244 = vpop.f32.mrf.mxu0
    %v245 = vadd.f32 %v122, %v244
    %v246 = vpop.f32.mrf.mxu0
    %v247 = vadd.f32 %v118, %v246
    %v248 = vpop.f32.mrf.mxu0
    %v249 = vadd.f32 %v122, %v248
    %250 = vmatprep.mubr.bf16.mxu0 0
    %251 = vmatmul.mubr.bf16.gmra.mxu0 %v186
    %v252 = vpop.f32.mrf.mxu0
    %v253 = vadd.f32 %v118, %v252
    %v254 = vpop.f32.mrf.mxu0
    %v255 = vadd.f32 %v122, %v254
    %v256 = vpop.f32.mrf.mxu0
    %v257 = vadd.f32 %v118, %v256
    %v258 = vpop.f32.mrf.mxu0
    %v259 = vadd.f32 %v122, %v258
    %260 = vdwg.mxu0
    %261 = vmatprep.subr.bf16.mxu0 0
    %262 = vmatpush1.bf16.msra.mxu0 0
    %263 = vmatprep.subr.bf16.mxu0 0
    %264 = vmatpush1.bf16.msra.mxu0 0
    %265 = vmatprep.subr.bf16.mxu0 0
    %266 = vmatpush1.bf16.msra.mxu0 0
    %267 = vmatprep.subr.bf16.mxu0 0
    %268 = vmatpush1.bf16.msra.mxu0 0
    %269 = vmatprep.subr.bf16.mxu0 0
    %270 = vmatpush1.bf16.msra.mxu0 0
    %271 = vmatprep.subr.bf16.mxu0 0
    %272 = vmatpush1.bf16.msra.mxu0 0
    %273 = vmatprep.subr.bf16.mxu0 0
    %274 = vmatpush1.bf16.msra.mxu0 0
    %275 = vmatprep.subr.bf16.mxu0 %v170
    %276 = vmatpush1.bf16.msra.mxu0 %v169
    %277 = vmatprep.subr.bf16.mxu0 0
    %278 = vmatpush2.bf16.msra.mxu0 0
    %279 = vmatprep.subr.bf16.mxu0 0
    %280 = vmatpush2.bf16.msra.mxu0 0
    %281 = vmatprep.subr.bf16.mxu0 0
    %282 = vmatpush2.bf16.msra.mxu0 0
    %283 = vmatprep.subr.bf16.mxu0 0
    %284 = vmatpush2.bf16.msra.mxu0 0
    %285 = vmatprep.subr.bf16.mxu0 0
    %286 = vmatpush2.bf16.msra.mxu0 0
    %287 = vmatprep.subr.bf16.mxu0 0
    %288 = vmatpush2.bf16.msra.mxu0 0
    %289 = vmatprep.subr.bf16.mxu0 0
    %290 = vmatpush2.bf16.msra.mxu0 0
    %291 = vmatprep.subr.bf16.mxu0 0
    %292 = vmatpush2.bf16.msra.mxu0 0
    %293 = vmatprep.mubr.bf16.mxu0 0
    %294 = vmatmul.mubr.bf16.gmra.mxu0 %v177
    %v295 = vpop.f32.mrf.mxu0
    %v296 = vadd.f32 %v126, %v295
    %v297 = vpop.f32.mrf.mxu0
    %v298 = vadd.f32 %v130, %v297
    %v299 = vpop.f32.mrf.mxu0
    %v300 = vadd.f32 %v126, %v299
    %v301 = vpop.f32.mrf.mxu0
    %v302 = vadd.f32 %v130, %v301
    %303 = vmatprep.mubr.bf16.mxu0 0
    %304 = vmatmul.mubr.bf16.gmra.mxu0 %v180
    %v305 = vpop.f32.mrf.mxu0
    %v306 = vadd.f32 %v126, %v305
    %v307 = vpop.f32.mrf.mxu0
    %v308 = vadd.f32 %v130, %v307
    %v309 = vpop.f32.mrf.mxu0
    %v310 = vadd.f32 %v126, %v309
    %v311 = vpop.f32.mrf.mxu0
    %v312 = vadd.f32 %v130, %v311
    %313 = vmatprep.mubr.bf16.mxu0 0
    %314 = vmatmul.mubr.bf16.gmra.mxu0 %v183
    %v315 = vpop.f32.mrf.mxu0
    %v316 = vadd.f32 %v126, %v315
    %v317 = vpop.f32.mrf.mxu0
    %v318 = vadd.f32 %v130, %v317
    %v319 = vpop.f32.mrf.mxu0
    %v320 = vadd.f32 %v126, %v319
    %v321 = vpop.f32.mrf.mxu0
    %v322 = vadd.f32 %v130, %v321
    %323 = vmatprep.mubr.bf16.mxu0 0
    %324 = vmatmul.mubr.bf16.gmra.mxu0 %v186
    %v325 = vpop.f32.mrf.mxu0
    %v326 = vadd.f32 %v126, %v325
    %v327 = vpop.f32.mrf.mxu0
    %v328 = vadd.f32 %v130, %v327
    %v329 = vpop.f32.mrf.mxu0
    %v330 = vadd.f32 %v126, %v329
    %v331 = vpop.f32.mrf.mxu0
    %v332 = vadd.f32 %v130, %v331
    %333 = vdwg.mxu0
    %334 = vst [vmem:[#allocation2] sm:$0xff] %v223
    %335 = vst [vmem:[#allocation2 + $0x8] sm:$0xff] %v225
    %336 = vst [vmem:[#allocation2 + $0x10] sm:$0xff] %v296
    %337 = vst [vmem:[#allocation2 + $0x18] sm:$0xff] %v298
    %338 = vst [vmem:[#allocation2 + $0x20] sm:$0xff] %v227
    %339 = vst [vmem:[#allocation2 + $0x28] sm:$0xff] %v229
    %340 = vst [vmem:[#allocation2 + $0x30] sm:$0xff] %v300
    %341 = vst [vmem:[#allocation2 + $0x38] sm:$0xff] %v302
    %342 = vst [vmem:[#allocation2 + $0x40] sm:$0xff] %v233
    %343 = vst [vmem:[#allocation2 + $0x48] sm:$0xff] %v235
    %344 = vst [vmem:[#allocation2 + $0x50] sm:$0xff] %v306
    %345 = vst [vmem:[#allocation2 + $0x58] sm:$0xff] %v308
    %346 = vst [vmem:[#allocation2 + $0x60] sm:$0xff] %v237
    %347 = vst [vmem:[#allocation2 + $0x68] sm:$0xff] %v239
    %348 = vst [vmem:[#allocation2 + $0x70] sm:$0xff] %v310
    %349 = vst [vmem:[#allocation2 + $0x78] sm:$0xff] %v312
    %350 = vst [vmem:[#allocation2 + $0x80] sm:$0xff] %v243
    %351 = vst [vmem:[#allocation2 + $0x88] sm:$0xff] %v245
    %352 = vst [vmem:[#allocation2 + $0x90] sm:$0xff] %v316
    %353 = vst [vmem:[#allocation2 + $0x98] sm:$0xff] %v318
    %354 = vst [vmem:[#allocation2 + $0xa0] sm:$0xff] %v247
    %355 = vst [vmem:[#allocation2 + $0xa8] sm:$0xff] %v249
    %356 = vst [vmem:[#allocation2 + $0xb0] sm:$0xff] %v320
    %357 = vst [vmem:[#allocation2 + $0xb8] sm:$0xff] %v322
    %358 = vst [vmem:[#allocation2 + $0xc0] sm:$0xff] %v253
    %359 = vst [vmem:[#allocation2 + $0xc8] sm:$0xff] %v255
    %360 = vst [vmem:[#allocation2 + $0xd0] sm:$0xff] %v326
    %361 = vst [vmem:[#allocation2 + $0xd8] sm:$0xff] %v328
    %362 = vst [vmem:[#allocation2 + $0xe0] sm:$0xff] %v257
    %363 = vst [vmem:[#allocation2 + $0xe8] sm:$0xff] %v259
    %364 = vst [vmem:[#allocation2 + $0xf0] sm:$0xff] %v330
    %365 = vst [vmem:[#allocation2 + $0xf8] sm:$0xff] %v332
    %v366 = vld [vmem:[#allocation3] sm:$0xff]
    %v367 = vld [vmem:[#allocation4] sm:$0xff]
    %v368 = vld [vmem:[#allocation2] ss:$8 sm:$0xf]
    %s369 = scalar_lea.vmem [#allocation2], 32
    %v370 = vld [vmem:[%s369] ss:$8 sm:$0xf]
    %s371 = scalar_lea.vmem [#allocation2], 64
    %v372 = vld [vmem:[%s371] ss:$8 sm:$0xf]
    %s373 = scalar_lea.vmem [#allocation2], 96
    %v374 = vld [vmem:[%s373] ss:$8 sm:$0xf]
    %s375 = scalar_lea.vmem [#allocation2], 128
    %v376 = vld [vmem:[%s375] ss:$8 sm:$0xf]
    %s377 = scalar_lea.vmem [#allocation2], 160
    %v378 = vld [vmem:[%s377] ss:$8 sm:$0xf]
    %s379 = scalar_lea.vmem [#allocation2], 192
    %v380 = vld [vmem:[%s379] ss:$8 sm:$0xf]
    %s381 = scalar_lea.vmem [#allocation2], 224
    %v382 = vld [vmem:[%s381] ss:$8 sm:$0xf]
    %v383 = vpack.c.bf16 %v366, %v366
    %v384 = vld [vmem:[#allocation11] sm:$0xff]
    %v385 = vld [vmem:[#allocation11 + $0x8] sm:$0xff]
    %v386 = vld [vmem:[#allocation11 + $0x10] sm:$0xff]
    %v387 = vld [vmem:[#allocation11 + $0x18] sm:$0xff]
    %v388 = vld [vmem:[#allocation11 + $0x20] sm:$0xff]
    %v389 = vld [vmem:[#allocation11 + $0x28] sm:$0xff]
    %v390 = vld [vmem:[#allocation11 + $0x30] sm:$0xff]
    %v391 = vld [vmem:[#allocation11 + $0x38] sm:$0xff]
    %v392 = vld [vmem:[#allocation11 + $0x40] sm:$0xff]
    %v393 = vld [vmem:[#allocation11 + $0x48] sm:$0xff]
    %v394 = vld [vmem:[#allocation11 + $0x50] sm:$0xff]
    %v395 = vld [vmem:[#allocation11 + $0x58] sm:$0xff]
    %v396 = vld [vmem:[#allocation11 + $0x60] sm:$0xff]
    %v397 = vld [vmem:[#allocation11 + $0x68] sm:$0xff]
    %v398 = vld [vmem:[#allocation11 + $0x70] sm:$0xff]
    %v399 = vld [vmem:[#allocation11 + $0x78] sm:$0xff]
    %v400 = vld [vmem:[#allocation11 + $0x80] sm:$0xff]
    %v401 = vld [vmem:[#allocation11 + $0x88] sm:$0xff]
    %v402 = vld [vmem:[#allocation11 + $0x90] sm:$0xff]
    %v403 = vld [vmem:[#allocation11 + $0x98] sm:$0xff]
    %v404 = vld [vmem:[#allocation11 + $0xa0] sm:$0xff]
    %v405 = vld [vmem:[#allocation11 + $0xa8] sm:$0xff]
    %v406 = vld [vmem:[#allocation11 + $0xb0] sm:$0xff]
    %v407 = vld [vmem:[#allocation11 + $0xb8] sm:$0xff]
    %v408 = vld [vmem:[#allocation11 + $0xc0] sm:$0xff]
    %v409 = vld [vmem:[#allocation11 + $0xc8] sm:$0xff]
    %v410 = vld [vmem:[#allocation11 + $0xd0] sm:$0xff]
    %v411 = vld [vmem:[#allocation11 + $0xd8] sm:$0xff]
    %v412 = vld [vmem:[#allocation11 + $0xe0] sm:$0xff]
    %v413 = vld [vmem:[#allocation11 + $0xe8] sm:$0xff]
    %v414 = vld [vmem:[#allocation11 + $0xf0] sm:$0xff]
    %v415 = vld [vmem:[#allocation11 + $0xf8] sm:$0xff]
    %v448 = vunpack.c.l.b16 %v384
    %v449 = vunpack.c.h.b16 %v384
    %v450 = vunpack.c.l.b16 %v385
    %v451 = vunpack.c.h.b16 %v385
    %v452 = vunpack.c.l.b16 %v386
    %v453 = vunpack.c.h.b16 %v386
    %v454 = vunpack.c.l.b16 %v387
    %v455 = vunpack.c.h.b16 %v387
    %v456 = vunpack.c.l.b16 %v388
    %v457 = vunpack.c.h.b16 %v388
    %v458 = vunpack.c.l.b16 %v389
    %v459 = vunpack.c.h.b16 %v389
    %v460 = vunpack.c.l.b16 %v390
    %v461 = vunpack.c.h.b16 %v390
    %v462 = vunpack.c.l.b16 %v391
    %v463 = vunpack.c.h.b16 %v391
    %v464 = vunpack.c.l.b16 %v392
    %v465 = vunpack.c.h.b16 %v392
    %v466 = vunpack.c.l.b16 %v393
    %v467 = vunpack.c.h.b16 %v393
    %v468 = vunpack.c.l.b16 %v394
    %v469 = vunpack.c.h.b16 %v394
    %v470 = vunpack.c.l.b16 %v395
    %v471 = vunpack.c.h.b16 %v395
    %v472 = vunpack.c.l.b16 %v396
    %v473 = vunpack.c.h.b16 %v396
    %v474 = vunpack.c.l.b16 %v397
    %v475 = vunpack.c.h.b16 %v397
    %v476 = vunpack.c.l.b16 %v398
    %v477 = vunpack.c.h.b16 %v398
    %v478 = vunpack.c.l.b16 %v399
    %v479 = vunpack.c.h.b16 %v399
    %v480 = vunpack.c.l.b16 %v400
    %v481 = vunpack.c.h.b16 %v400
    %v482 = vunpack.c.l.b16 %v401
    %v483 = vunpack.c.h.b16 %v401
    %v484 = vunpack.c.l.b16 %v402
    %v485 = vunpack.c.h.b16 %v402
    %v486 = vunpack.c.l.b16 %v403
    %v487 = vunpack.c.h.b16 %v403
    %v488 = vunpack.c.l.b16 %v404
    %v489 = vunpack.c.h.b16 %v404
    %v490 = vunpack.c.l.b16 %v405
    %v491 = vunpack.c.h.b16 %v405
    %v492 = vunpack.c.l.b16 %v406
    %v493 = vunpack.c.h.b16 %v406
    %v494 = vunpack.c.l.b16 %v407
    %v495 = vunpack.c.h.b16 %v407
    %v496 = vunpack.c.l.b16 %v408
    %v497 = vunpack.c.h.b16 %v408
    %v498 = vunpack.c.l.b16 %v409
    %v499 = vunpack.c.h.b16 %v409
    %v500 = vunpack.c.l.b16 %v410
    %v501 = vunpack.c.h.b16 %v410
    %v502 = vunpack.c.l.b16 %v411
    %v503 = vunpack.c.h.b16 %v411
    %v504 = vunpack.c.l.b16 %v412
    %v505 = vunpack.c.h.b16 %v412
    %v506 = vunpack.c.l.b16 %v413
    %v507 = vunpack.c.h.b16 %v413
    %v508 = vunpack.c.l.b16 %v414
    %v509 = vunpack.c.h.b16 %v414
    %v510 = vunpack.c.l.b16 %v415
    %v511 = vunpack.c.h.b16 %v415
    %v512 = vpack.c.b16 %v452, %v448
    %v513 = vpack.c.b16 %v453, %v449
    %v514 = vpack.c.b16 %v454, %v450
    %v515 = vpack.c.b16 %v455, %v451
    %v516 = vpack.c.b16 %v460, %v456
    %v517 = vpack.c.b16 %v461, %v457
    %v518 = vpack.c.b16 %v462, %v458
    %v519 = vpack.c.b16 %v463, %v459
    %v520 = vpack.c.b16 %v468, %v464
    %v521 = vpack.c.b16 %v469, %v465
    %v522 = vpack.c.b16 %v470, %v466
    %v523 = vpack.c.b16 %v471, %v467
    %v524 = vpack.c.b16 %v476, %v472
    %v525 = vpack.c.b16 %v477, %v473
    %v526 = vpack.c.b16 %v478, %v474
    %v527 = vpack.c.b16 %v479, %v475
    %v528 = vpack.c.b16 %v484, %v480
    %v529 = vpack.c.b16 %v485, %v481
    %v530 = vpack.c.b16 %v486, %v482
    %v531 = vpack.c.b16 %v487, %v483
    %v532 = vpack.c.b16 %v492, %v488
    %v533 = vpack.c.b16 %v493, %v489
    %v534 = vpack.c.b16 %v494, %v490
    %v535 = vpack.c.b16 %v495, %v491
    %v536 = vpack.c.b16 %v500, %v496
    %v537 = vpack.c.b16 %v501, %v497
    %v538 = vpack.c.b16 %v502, %v498
    %v539 = vpack.c.b16 %v503, %v499
    %v540 = vpack.c.b16 %v508, %v504
    %v541 = vpack.c.b16 %v509, %v505
    %v542 = vpack.c.b16 %v510, %v506
    %v543 = vpack.c.b16 %v511, %v507
    %576 = vmatprep.subr.bf16.mxu0 %v541
    %577 = vmatpush1.bf16.msra.mxu0 %v540
    %578 = vmatprep.subr.bf16.mxu0 %v537
    %579 = vmatpush1.bf16.msra.mxu0 %v536
    %580 = vmatprep.subr.bf16.mxu0 %v533
    %581 = vmatpush1.bf16.msra.mxu0 %v532
    %582 = vmatprep.subr.bf16.mxu0 %v529
    %583 = vmatpush1.bf16.msra.mxu0 %v528
    %584 = vmatprep.subr.bf16.mxu0 %v525
    %585 = vmatpush1.bf16.msra.mxu0 %v524
    %586 = vmatprep.subr.bf16.mxu0 %v521
    %587 = vmatpush1.bf16.msra.mxu0 %v520
    %588 = vmatprep.subr.bf16.mxu0 %v517
    %589 = vmatpush1.bf16.msra.mxu0 %v516
    %590 = vmatprep.subr.bf16.mxu0 %v513
    %591 = vmatpush1.bf16.msra.mxu0 %v512
    %592 = vmatprep.subr.bf16.mxu0 0
    %593 = vmatpush2.bf16.msra.mxu0 0
    %594 = vmatprep.subr.bf16.mxu0 0
    %595 = vmatpush2.bf16.msra.mxu0 0
    %596 = vmatprep.subr.bf16.mxu0 0
    %597 = vmatpush2.bf16.msra.mxu0 0
    %598 = vmatprep.subr.bf16.mxu0 0
    %599 = vmatpush2.bf16.msra.mxu0 0
    %600 = vmatprep.subr.bf16.mxu0 0
    %601 = vmatpush2.bf16.msra.mxu0 0
    %602 = vmatprep.subr.bf16.mxu0 0
    %603 = vmatpush2.bf16.msra.mxu0 0
    %604 = vmatprep.subr.bf16.mxu0 0
    %605 = vmatpush2.bf16.msra.mxu0 0
    %606 = vmatprep.subr.bf16.mxu0 0
    %607 = vmatpush2.bf16.msra.mxu0 0
    %608 = vmatprep.mubr.bf16.mxu0 0
    %609 = vmatmul.mubr.bf16.gmra.mxu0 %v383
    %v610 = vpop.f32.mrf.mxu0
    %v611 = vadd.f32 0.0, %v610
    %v612 = vpop.f32.mrf.mxu0
    %v613 = vadd.f32 0.0, %v612
    %v614 = vpop.f32.mrf.mxu0
    %v615 = vpop.f32.mrf.mxu0
    %616 = vdwg.mxu0
    %617 = vmatprep.subr.bf16.mxu0 %v543
    %618 = vmatpush1.bf16.msra.mxu0 %v542
    %619 = vmatprep.subr.bf16.mxu0 %v539
    %620 = vmatpush1.bf16.msra.mxu0 %v538
    %621 = vmatprep.subr.bf16.mxu0 %v535
    %622 = vmatpush1.bf16.msra.mxu0 %v534
    %623 = vmatprep.subr.bf16.mxu0 %v531
    %624 = vmatpush1.bf16.msra.mxu0 %v530
    %625 = vmatprep.subr.bf16.mxu0 %v527
    %626 = vmatpush1.bf16.msra.mxu0 %v526
    %627 = vmatprep.subr.bf16.mxu0 %v523
    %628 = vmatpush1.bf16.msra.mxu0 %v522
    %629 = vmatprep.subr.bf16.mxu0 %v519
    %630 = vmatpush1.bf16.msra.mxu0 %v518
    %631 = vmatprep.subr.bf16.mxu0 %v515
    %632 = vmatpush1.bf16.msra.mxu0 %v514
    %633 = vmatprep.subr.bf16.mxu0 0
    %634 = vmatpush2.bf16.msra.mxu0 0
    %635 = vmatprep.subr.bf16.mxu0 0
    %636 = vmatpush2.bf16.msra.mxu0 0
    %637 = vmatprep.subr.bf16.mxu0 0
    %638 = vmatpush2.bf16.msra.mxu0 0
    %639 = vmatprep.subr.bf16.mxu0 0
    %640 = vmatpush2.bf16.msra.mxu0 0
    %641 = vmatprep.subr.bf16.mxu0 0
    %642 = vmatpush2.bf16.msra.mxu0 0
    %643 = vmatprep.subr.bf16.mxu0 0
    %644 = vmatpush2.bf16.msra.mxu0 0
    %645 = vmatprep.subr.bf16.mxu0 0
    %646 = vmatpush2.bf16.msra.mxu0 0
    %647 = vmatprep.subr.bf16.mxu0 0
    %648 = vmatpush2.bf16.msra.mxu0 0
    %649 = vmatprep.mubr.bf16.mxu0 0
    %650 = vmatmul.mubr.bf16.gmra.mxu0 %v383
    %v651 = vpop.f32.mrf.mxu0
    %v652 = vadd.f32 0.0, %v651
    %v653 = vpop.f32.mrf.mxu0
    %v654 = vadd.f32 0.0, %v653
    %v655 = vpop.f32.mrf.mxu0
    %v656 = vpop.f32.mrf.mxu0
    %657 = vdwg.mxu0
    %v662 = vcombine.low %v611, %v613
    %v663 = vcombine.high %v611, %v613
    %v664 = vcombine.low %v652, %v654
    %v665 = vcombine.high %v652, %v654
    %v667 = vunpack.c.l.s4 1966171168
    %v668 = vunpack.c.0.s8 %v667
    %v669 = vlaneseq
    %v670 = vshrl.u32 %v669, 7
    %v671 = vsub.s32 %v668, %v670
    %v672 = vrot.slane %v662, %v671
    %v674 = vunpack.c.l.s4 1966171168
    %v675 = vunpack.c.0.s8 %v674
    %v676 = vlaneseq
    %v677 = vshrl.u32 %v676, 7
    %v678 = vsub.s32 %v675, %v677
    %v679 = vrot.slane %v663, %v678
    %v681 = vunpack.c.l.s4 1966171168
    %v682 = vunpack.c.0.s8 %v681
    %v683 = vlaneseq
    %v684 = vshrl.u32 %v683, 7
    %v685 = vsub.s32 %v682, %v684
    %v686 = vrot.slane %v664, %v685
    %v688 = vunpack.c.l.s4 1966171168
    %v689 = vunpack.c.0.s8 %v688
    %v690 = vlaneseq
    %v691 = vshrl.u32 %v690, 7
    %v692 = vsub.s32 %v689, %v691
    %v693 = vrot.slane %v665, %v692
    %v694 = vcombine.low %v672, %v686
    %v695 = vcombine.high %v672, %v686
    %v696 = vcombine.low %v679, %v693
    %v697 = vcombine.high %v679, %v693
    %v699 = vunpack.c.l.s4 1966171168
    %v700 = vunpack.c.0.s8 %v699
    %v701 = vlaneseq
    %v702 = vshrl.u32 %v701, 7
    %v703 = vsub.s32 %v700, %v702
    %v704 = vrot.slane %v694, %v703
    %v706 = vunpack.c.l.s4 1966171168
    %v707 = vunpack.c.0.s8 %v706
    %v708 = vlaneseq
    %v709 = vshrl.u32 %v708, 7
    %v710 = vsub.s32 %v707, %v709
    %v711 = vrot.slane %v696, %v710
    %v713 = vunpack.c.l.s4 1966171168
    %v714 = vunpack.c.0.s8 %v713
    %v715 = vlaneseq
    %v716 = vshrl.u32 %v715, 7
    %v717 = vsub.s32 %v714, %v716
    %v718 = vrot.slane %v695, %v717
    %v720 = vunpack.c.l.s4 1966171168
    %v721 = vunpack.c.0.s8 %v720
    %v722 = vlaneseq
    %v723 = vshrl.u32 %v722, 7
    %v724 = vsub.s32 %v721, %v723
    %v725 = vrot.slane %v697, %v724
    %v726 = vcombine.high %v704, %v704
    %v727 = vcombine.high %v711, %v711
    %v728 = vcombine.high %v718, %v718
    %v729 = vcombine.high %v725, %v725
    %v738 = vadd.f32 %v368, %v704
    %v739 = vadd.f32 %v370, %v718
    %v740 = vadd.f32 %v372, %v726
    %v741 = vadd.f32 %v374, %v728
    %v742 = vadd.f32 %v376, %v711
    %v743 = vadd.f32 %v378, %v725
    %v744 = vadd.f32 %v380, %v727
    %v745 = vadd.f32 %v382, %v729
    %v746 = vxor.u32 %v738, 2147483648
    %v747 = vxor.u32 %v739, 2147483648
    %v748 = vxor.u32 %v740, 2147483648
    %v749 = vxor.u32 %v741, 2147483648
    %v750 = vxor.u32 %v742, 2147483648
    %v751 = vxor.u32 %v743, 2147483648
    %v752 = vxor.u32 %v744, 2147483648
    %v753 = vxor.u32 %v745, 2147483648
    %v754 = vmul.f32 %v746, 1.442695
    %v755 = vpow.pop %v754
    %v756 = vmul.f32 %v747, 1.442695
    %v757 = vpow.pop %v756
    %v758 = vmul.f32 %v748, 1.442695
    %v759 = vpow.pop %v758
    %v760 = vmul.f32 %v749, 1.442695
    %v761 = vpow.pop %v760
    %v762 = vmul.f32 %v750, 1.442695
    %v763 = vpow.pop %v762
    %v764 = vmul.f32 %v751, 1.442695
    %v765 = vpow.pop %v764
    %v766 = vmul.f32 %v752, 1.442695
    %v767 = vpow.pop %v766
    %v768 = vmul.f32 %v753, 1.442695
    %v769 = vpow.pop %v768
    %v770 = vadd.f32 %v755, 1.0
    %v771 = vadd.f32 %v757, 1.0
    %v772 = vadd.f32 %v759, 1.0
    %v773 = vadd.f32 %v761, 1.0
    %v774 = vadd.f32 %v763, 1.0
    %v775 = vadd.f32 %v765, 1.0
    %v776 = vadd.f32 %v767, 1.0
    %v777 = vadd.f32 %v769, 1.0
    %v778 = vrcp.pop %v770
    %v779 = vmul.f32 1.0, %v778
    %v780 = vrcp.pop %v771
    %v781 = vmul.f32 1.0, %v780
    %v782 = vrcp.pop %v772
    %v783 = vmul.f32 1.0, %v782
    %v784 = vrcp.pop %v773
    %v785 = vmul.f32 1.0, %v784
    %v786 = vrcp.pop %v774
    %v787 = vmul.f32 1.0, %v786
    %v788 = vrcp.pop %v775
    %v789 = vmul.f32 1.0, %v788
    %v790 = vrcp.pop %v776
    %v791 = vmul.f32 1.0, %v790
    %v792 = vrcp.pop %v777
    %v793 = vmul.f32 1.0, %v792
    %v802 = vrot.slane %v738, 3
    %v803 = vrot.slane %v739, 3
    %v804 = vrot.slane %v740, 3
    %v805 = vrot.slane %v741, 3
    %v806 = vrot.slane %v742, 3
    %v807 = vrot.slane %v743, 3
    %v808 = vrot.slane %v744, 3
    %v809 = vrot.slane %v745, 3
    %v818 = vtanh.pop %v802
    %v819 = vtanh.pop %v803
    %v820 = vtanh.pop %v804
    %v821 = vtanh.pop %v805
    %v822 = vtanh.pop %v806
    %v823 = vtanh.pop %v807
    %v824 = vtanh.pop %v808
    %v825 = vtanh.pop %v809
    %v834 = vrot.slane %v779, 1
    %v835 = vrot.slane %v781, 1
    %v836 = vrot.slane %v783, 1
    %v837 = vrot.slane %v785, 1
    %v838 = vrot.slane %v787, 1
    %v839 = vrot.slane %v789, 1
    %v840 = vrot.slane %v791, 1
    %v841 = vrot.slane %v793, 1
    %v851 = vcombine.high %v367, %v367
    %v853 = vunpack.c.l.s4 1966171168
    %v854 = vunpack.c.0.s8 %v853
    %v855 = vlaneseq
    %v856 = vshrl.u32 %v855, 7
    %v857 = vsub.s32 %v854, %v856
    %v858 = vrot.slane %v367, %v857
    %v860 = vunpack.c.l.s4 1966171168
    %v861 = vunpack.c.0.s8 %v860
    %v862 = vlaneseq
    %v863 = vshrl.u32 %v862, 7
    %v864 = vsub.s32 %v861, %v863
    %v865 = vrot.slane %v851, %v864
    %v866 = vcombine.high %v858, %v858
    %v867 = vcombine.high %v865, %v865
    %v869 = vunpack.c.l.s4 1966171168
    %v870 = vunpack.c.0.s8 %v869
    %v871 = vlaneseq
    %v872 = vshrl.u32 %v871, 7
    %v873 = vsub.s32 %v870, %v872
    %v874 = vrot.slane %v858, %v873
    %v876 = vunpack.c.l.s4 1966171168
    %v877 = vunpack.c.0.s8 %v876
    %v878 = vlaneseq
    %v879 = vshrl.u32 %v878, 7
    %v880 = vsub.s32 %v877, %v879
    %v881 = vrot.slane %v865, %v880
    %v883 = vunpack.c.l.s4 1966171168
    %v884 = vunpack.c.0.s8 %v883
    %v885 = vlaneseq
    %v886 = vshrl.u32 %v885, 7
    %v887 = vsub.s32 %v884, %v886
    %v888 = vrot.slane %v866, %v887
    %v890 = vunpack.c.l.s4 1966171168
    %v891 = vunpack.c.0.s8 %v890
    %v892 = vlaneseq
    %v893 = vshrl.u32 %v892, 7
    %v894 = vsub.s32 %v891, %v893
    %v895 = vrot.slane %v867, %v894
    %v896 = vcombine.high %v874, %v874
    %v897 = vcombine.high %v881, %v881
    %v898 = vcombine.high %v888, %v888
    %v899 = vcombine.high %v895, %v895
    %v908 = vmul.f32 %v834, %v874
    %v909 = vmul.f32 %v835, %v888
    %v910 = vmul.f32 %v836, %v896
    %v911 = vmul.f32 %v837, %v898
    %v912 = vmul.f32 %v838, %v881
    %v913 = vmul.f32 %v839, %v895
    %v914 = vmul.f32 %v840, %v897
    %v915 = vmul.f32 %v841, %v899
    %v916 = vmul.f32 %v779, %v818
    %v917 = vmul.f32 %v781, %v819
    %v918 = vmul.f32 %v783, %v820
    %v919 = vmul.f32 %v785, %v821
    %v920 = vmul.f32 %v787, %v822
    %v921 = vmul.f32 %v789, %v823
    %v922 = vmul.f32 %v791, %v824
    %v923 = vmul.f32 %v793, %v825
    %v924 = vadd.f32 %v908, %v916
    %v925 = vadd.f32 %v909, %v917
    %v926 = vadd.f32 %v910, %v918
    %v927 = vadd.f32 %v911, %v919
    %v928 = vadd.f32 %v912, %v920
    %v929 = vadd.f32 %v913, %v921
    %v930 = vadd.f32 %v914, %v922
    %v931 = vadd.f32 %v915, %v923
    %v932 = vtanh.pop %v924
    %v933 = vtanh.pop %v925
    %v934 = vtanh.pop %v926
    %v935 = vtanh.pop %v927
    %v936 = vtanh.pop %v928
    %v937 = vtanh.pop %v929
    %v938 = vtanh.pop %v930
    %v939 = vtanh.pop %v931
    %v940 = vrot.slane %v779, 2
    %v941 = vrot.slane %v781, 2
    %v942 = vrot.slane %v783, 2
    %v943 = vrot.slane %v785, 2
    %v944 = vrot.slane %v787, 2
    %v945 = vrot.slane %v789, 2
    %v946 = vrot.slane %v791, 2
    %v947 = vrot.slane %v793, 2
    %v956 = vmul.f32 %v940, %v932
    %v957 = vmul.f32 %v941, %v933
    %v958 = vmul.f32 %v942, %v934
    %v959 = vmul.f32 %v943, %v935
    %v960 = vmul.f32 %v944, %v936
    %v961 = vmul.f32 %v945, %v937
    %v962 = vmul.f32 %v946, %v938
    %v963 = vmul.f32 %v947, %v939
    %v972 = vcombine.low %v956, %v957
    %v973 = vcombine.low %v958, %v959
    %v974 = vcombine.low %v960, %v961
    %v975 = vcombine.low %v962, %v963
    %v977 = vunpack.c.l.s4 1966171168
    %v978 = vunpack.c.0.s8 %v977
    %v979 = vlaneseq
    %v980 = vshrl.u32 %v979, 7
    %v981 = vsub.s32 %v978, %v980
    %v982 = vrot.slane %v972, %v981
    %v984 = vunpack.c.l.s4 1966171168
    %v985 = vunpack.c.0.s8 %v984
    %v986 = vlaneseq
    %v987 = vshrl.u32 %v986, 7
    %v988 = vsub.s32 %v985, %v987
    %v989 = vrot.slane %v973, %v988
    %v991 = vunpack.c.l.s4 1966171168
    %v992 = vunpack.c.0.s8 %v991
    %v993 = vlaneseq
    %v994 = vshrl.u32 %v993, 7
    %v995 = vsub.s32 %v992, %v994
    %v996 = vrot.slane %v974, %v995
    %v998 = vunpack.c.l.s4 1966171168
    %v999 = vunpack.c.0.s8 %v998
    %v1000 = vlaneseq
    %v1001 = vshrl.u32 %v1000, 7
    %v1002 = vsub.s32 %v999, %v1001
    %v1003 = vrot.slane %v975, %v1002
    %v1004 = vcombine.low %v982, %v989
    %v1005 = vcombine.low %v996, %v1003
    %v1007 = vunpack.c.l.s4 1966171168
    %v1008 = vunpack.c.0.s8 %v1007
    %v1009 = vlaneseq
    %v1010 = vshrl.u32 %v1009, 7
    %v1011 = vsub.s32 %v1008, %v1010
    %v1012 = vrot.slane %v1004, %v1011
    %v1014 = vunpack.c.l.s4 1966171168
    %v1015 = vunpack.c.0.s8 %v1014
    %v1016 = vlaneseq
    %v1017 = vshrl.u32 %v1016, 7
    %v1018 = vsub.s32 %v1015, %v1017
    %v1019 = vrot.slane %v1005, %v1018
    %v1020 = vcombine.low %v1012, %v1019
    %1022 = vst [vmem:[#allocation14] sm:$0xff] %v1020
    %s1023 = scalar_lea.vmem [#allocation2], 1
    %v1024 = vld [vmem:[%s1023] ss:$8 sm:$0xf]
    %s1025 = scalar_lea.vmem [#allocation2], 33
    %v1026 = vld [vmem:[%s1025] ss:$8 sm:$0xf]
    %s1027 = scalar_lea.vmem [#allocation2], 65
    %v1028 = vld [vmem:[%s1027] ss:$8 sm:$0xf]
    %s1029 = scalar_lea.vmem [#allocation2], 97
    %v1030 = vld [vmem:[%s1029] ss:$8 sm:$0xf]
    %s1031 = scalar_lea.vmem [#allocation2], 129
    %v1032 = vld [vmem:[%s1031] ss:$8 sm:$0xf]
    %s1033 = scalar_lea.vmem [#allocation2], 161
    %v1034 = vld [vmem:[%s1033] ss:$8 sm:$0xf]
    %s1035 = scalar_lea.vmem [#allocation2], 193
    %v1036 = vld [vmem:[%s1035] ss:$8 sm:$0xf]
    %s1037 = scalar_lea.vmem [#allocation2], 225
    %v1038 = vld [vmem:[%s1037] ss:$8 sm:$0xf]
    %v1039 = vpack.c.bf16 %v956, %v956
    %v1040 = vpack.c.bf16 %v957, %v957
    %v1041 = vpack.c.bf16 %v958, %v958
    %v1042 = vpack.c.bf16 %v959, %v959
    %v1043 = vpack.c.bf16 %v960, %v960
    %v1044 = vpack.c.bf16 %v961, %v961
    %v1045 = vpack.c.bf16 %v962, %v962
    %v1046 = vpack.c.bf16 %v963, %v963
    %v1047 = vld [vmem:[#allocation11] sm:$0xff]
    %v1048 = vld [vmem:[#allocation11 + $0x8] sm:$0xff]
    %v1049 = vld [vmem:[#allocation11 + $0x10] sm:$0xff]
    %v1050 = vld [vmem:[#allocation11 + $0x18] sm:$0xff]
    %v1051 = vld [vmem:[#allocation11 + $0x20] sm:$0xff]
    %v1052 = vld [vmem:[#allocation11 + $0x28] sm:$0xff]
    %v1053 = vld [vmem:[#allocation11 + $0x30] sm:$0xff]
    %v1054 = vld [vmem:[#allocation11 + $0x38] sm:$0xff]
    %v1055 = vld [vmem:[#allocation11 + $0x40] sm:$0xff]
    %v1056 = vld [vmem:[#allocation11 + $0x48] sm:$0xff]
    %v1057 = vld [vmem:[#allocation11 + $0x50] sm:$0xff]
    %v1058 = vld [vmem:[#allocation11 + $0x58] sm:$0xff]
    %v1059 = vld [vmem:[#allocation11 + $0x60] sm:$0xff]
    %v1060 = vld [vmem:[#allocation11 + $0x68] sm:$0xff]
    %v1061 = vld [vmem:[#allocation11 + $0x70] sm:$0xff]
    %v1062 = vld [vmem:[#allocation11 + $0x78] sm:$0xff]
    %v1063 = vld [vmem:[#allocation11 + $0x80] sm:$0xff]
    %v1064 = vld [vmem:[#allocation11 + $0x88] sm:$0xff]
    %v1065 = vld [vmem:[#allocation11 + $0x90] sm:$0xff]
    %v1066 = vld [vmem:[#allocation11 + $0x98] sm:$0xff]
    %v1067 = vld [vmem:[#allocation11 + $0xa0] sm:$0xff]
    %v1068 = vld [vmem:[#allocation11 + $0xa8] sm:$0xff]
    %v1069 = vld [vmem:[#allocation11 + $0xb0] sm:$0xff]
    %v1070 = vld [vmem:[#allocation11 + $0xb8] sm:$0xff]
    %v1071 = vld [vmem:[#allocation11 + $0xc0] sm:$0xff]
    %v1072 = vld [vmem:[#allocation11 + $0xc8] sm:$0xff]
    %v1073 = vld [vmem:[#allocation11 + $0xd0] sm:$0xff]
    %v1074 = vld [vmem:[#allocation11 + $0xd8] sm:$0xff]
    %v1075 = vld [vmem:[#allocation11 + $0xe0] sm:$0xff]
    %v1076 = vld [vmem:[#allocation11 + $0xe8] sm:$0xff]
    %v1077 = vld [vmem:[#allocation11 + $0xf0] sm:$0xff]
    %v1078 = vld [vmem:[#allocation11 + $0xf8] sm:$0xff]
    %v1087 = vunpack.c.l.b16 %v1039
    %v1088 = vunpack.c.l.b16 %v1040
    %v1089 = vunpack.c.l.b16 %v1041
    %v1090 = vunpack.c.l.b16 %v1042
    %v1091 = vunpack.c.l.b16 %v1043
    %v1092 = vunpack.c.l.b16 %v1044
    %v1093 = vunpack.c.l.b16 %v1045
    %v1094 = vunpack.c.l.b16 %v1046
    %v1095 = vrot.slane %v1088, 7
    %vm1096 = vcmask 1041409
    %v1097 = vsel %vm1096, %v1095, %v1087
    %v1098 = vrot.slane %v1089, 6
    %vm1099 = vcmask 1042434
    %v1100 = vsel %vm1099, %v1098, %v1097
    %v1101 = vrot.slane %v1090, 5
    %vm1102 = vcmask 1043459
    %v1103 = vsel %vm1102, %v1101, %v1100
    %v1104 = vrot.slane %v1091, 4
    %vm1105 = vcmask 1044484
    %v1106 = vsel %vm1105, %v1104, %v1103
    %v1107 = vrot.slane %v1092, 3
    %vm1108 = vcmask 1045509
    %v1109 = vsel %vm1108, %v1107, %v1106
    %v1110 = vrot.slane %v1093, 2
    %vm1111 = vcmask 1046534
    %v1112 = vsel %vm1111, %v1110, %v1109
    %v1113 = vrot.slane %v1094, 1
    %vm1114 = vcmask 1047559
    %v1115 = vsel %vm1114, %v1113, %v1112
    %v1116 = vpack.c.b16 %v1115, %v1115
    %v1150 = vunpack.c.l.b16 %v1047
    %v1151 = vunpack.c.h.b16 %v1047
    %v1152 = vunpack.c.l.b16 %v1048
    %v1153 = vunpack.c.h.b16 %v1048
    %v1154 = vunpack.c.l.b16 %v1049
    %v1155 = vunpack.c.h.b16 %v1049
    %v1156 = vunpack.c.l.b16 %v1050
    %v1157 = vunpack.c.h.b16 %v1050
    %v1158 = vunpack.c.l.b16 %v1051
    %v1159 = vunpack.c.h.b16 %v1051
    %v1160 = vunpack.c.l.b16 %v1052
    %v1161 = vunpack.c.h.b16 %v1052
    %v1162 = vunpack.c.l.b16 %v1053
    %v1163 = vunpack.c.h.b16 %v1053
    %v1164 = vunpack.c.l.b16 %v1054
    %v1165 = vunpack.c.h.b16 %v1054
    %v1166 = vunpack.c.l.b16 %v1055
    %v1167 = vunpack.c.h.b16 %v1055
    %v1168 = vunpack.c.l.b16 %v1056
    %v1169 = vunpack.c.h.b16 %v1056
    %v1170 = vunpack.c.l.b16 %v1057
    %v1171 = vunpack.c.h.b16 %v1057
    %v1172 = vunpack.c.l.b16 %v1058
    %v1173 = vunpack.c.h.b16 %v1058
    %v1174 = vunpack.c.l.b16 %v1059
    %v1175 = vunpack.c.h.b16 %v1059
    %v1176 = vunpack.c.l.b16 %v1060
    %v1177 = vunpack.c.h.b16 %v1060
    %v1178 = vunpack.c.l.b16 %v1061
    %v1179 = vunpack.c.h.b16 %v1061
    %v1180 = vunpack.c.l.b16 %v1062
    %v1181 = vunpack.c.h.b16 %v1062
    %v1182 = vunpack.c.l.b16 %v1063
    %v1183 = vunpack.c.h.b16 %v1063
    %v1184 = vunpack.c.l.b16 %v1064
    %v1185 = vunpack.c.h.b16 %v1064
    %v1186 = vunpack.c.l.b16 %v1065
    %v1187 = vunpack.c.h.b16 %v1065
    %v1188 = vunpack.c.l.b16 %v1066
    %v1189 = vunpack.c.h.b16 %v1066
    %v1190 = vunpack.c.l.b16 %v1067
    %v1191 = vunpack.c.h.b16 %v1067
    %v1192 = vunpack.c.l.b16 %v1068
    %v1193 = vunpack.c.h.b16 %v1068
    %v1194 = vunpack.c.l.b16 %v1069
    %v1195 = vunpack.c.h.b16 %v1069
    %v1196 = vunpack.c.l.b16 %v1070
    %v1197 = vunpack.c.h.b16 %v1070
    %v1198 = vunpack.c.l.b16 %v1071
    %v1199 = vunpack.c.h.b16 %v1071
    %v1200 = vunpack.c.l.b16 %v1072
    %v1201 = vunpack.c.h.b16 %v1072
    %v1202 = vunpack.c.l.b16 %v1073
    %v1203 = vunpack.c.h.b16 %v1073
    %v1204 = vunpack.c.l.b16 %v1074
    %v1205 = vunpack.c.h.b16 %v1074
    %v1206 = vunpack.c.l.b16 %v1075
    %v1207 = vunpack.c.h.b16 %v1075
    %v1208 = vunpack.c.l.b16 %v1076
    %v1209 = vunpack.c.h.b16 %v1076
    %v1210 = vunpack.c.l.b16 %v1077
    %v1211 = vunpack.c.h.b16 %v1077
    %v1212 = vunpack.c.l.b16 %v1078
    %v1213 = vunpack.c.h.b16 %v1078
    %v1214 = vpack.c.b16 %v1154, %v1150
    %v1215 = vpack.c.b16 %v1155, %v1151
    %v1216 = vpack.c.b16 %v1156, %v1152
    %v1217 = vpack.c.b16 %v1157, %v1153
    %v1218 = vpack.c.b16 %v1162, %v1158
    %v1219 = vpack.c.b16 %v1163, %v1159
    %v1220 = vpack.c.b16 %v1164, %v1160
    %v1221 = vpack.c.b16 %v1165, %v1161
    %v1222 = vpack.c.b16 %v1170, %v1166
    %v1223 = vpack.c.b16 %v1171, %v1167
    %v1224 = vpack.c.b16 %v1172, %v1168
    %v1225 = vpack.c.b16 %v1173, %v1169
    %v1226 = vpack.c.b16 %v1178, %v1174
    %v1227 = vpack.c.b16 %v1179, %v1175
    %v1228 = vpack.c.b16 %v1180, %v1176
    %v1229 = vpack.c.b16 %v1181, %v1177
    %v1230 = vpack.c.b16 %v1186, %v1182
    %v1231 = vpack.c.b16 %v1187, %v1183
    %v1232 = vpack.c.b16 %v1188, %v1184
    %v1233 = vpack.c.b16 %v1189, %v1185
    %v1234 = vpack.c.b16 %v1194, %v1190
    %v1235 = vpack.c.b16 %v1195, %v1191
    %v1236 = vpack.c.b16 %v1196, %v1192
    %v1237 = vpack.c.b16 %v1197, %v1193
    %v1238 = vpack.c.b16 %v1202, %v1198
    %v1239 = vpack.c.b16 %v1203, %v1199
    %v1240 = vpack.c.b16 %v1204, %v1200
    %v1241 = vpack.c.b16 %v1205, %v1201
    %v1242 = vpack.c.b16 %v1210, %v1206
    %v1243 = vpack.c.b16 %v1211, %v1207
    %v1244 = vpack.c.b16 %v1212, %v1208
    %v1245 = vpack.c.b16 %v1213, %v1209
    %1278 = vmatprep.subr.bf16.mxu0 %v1243
    %1279 = vmatpush1.bf16.msra.mxu0 %v1242
    %1280 = vmatprep.subr.bf16.mxu0 %v1239
    %1281 = vmatpush1.bf16.msra.mxu0 %v1238
    %1282 = vmatprep.subr.bf16.mxu0 %v1235
    %1283 = vmatpush1.bf16.msra.mxu0 %v1234
    %1284 = vmatprep.subr.bf16.mxu0 %v1231
    %1285 = vmatpush1.bf16.msra.mxu0 %v1230
    %1286 = vmatprep.subr.bf16.mxu0 %v1227
    %1287 = vmatpush1.bf16.msra.mxu0 %v1226
    %1288 = vmatprep.subr.bf16.mxu0 %v1223
    %1289 = vmatpush1.bf16.msra.mxu0 %v1222
    %1290 = vmatprep.subr.bf16.mxu0 %v1219
    %1291 = vmatpush1.bf16.msra.mxu0 %v1218
    %1292 = vmatprep.subr.bf16.mxu0 %v1215
    %1293 = vmatpush1.bf16.msra.mxu0 %v1214
    %1294 = vmatprep.subr.bf16.mxu0 0
    %1295 = vmatpush2.bf16.msra.mxu0 0
    %1296 = vmatprep.subr.bf16.mxu0 0
    %1297 = vmatpush2.bf16.msra.mxu0 0
    %1298 = vmatprep.subr.bf16.mxu0 0
    %1299 = vmatpush2.bf16.msra.mxu0 0
    %1300 = vmatprep.subr.bf16.mxu0 0
    %1301 = vmatpush2.bf16.msra.mxu0 0
    %1302 = vmatprep.subr.bf16.mxu0 0
    %1303 = vmatpush2.bf16.msra.mxu0 0
    %1304 = vmatprep.subr.bf16.mxu0 0
    %1305 = vmatpush2.bf16.msra.mxu0 0
    %1306 = vmatprep.subr.bf16.mxu0 0
    %1307 = vmatpush2.bf16.msra.mxu0 0
    %1308 = vmatprep.subr.bf16.mxu0 0
    %1309 = vmatpush2.bf16.msra.mxu0 0
    %1310 = vmatprep.mubr.bf16.mxu0 0
    %1311 = vmatmul.mubr.bf16.gmra.mxu0 %v1116
    %v1312 = vpop.f32.mrf.mxu0
    %v1313 = vadd.f32 0.0, %v1312
    %v1314 = vpop.f32.mrf.mxu0
    %v1315 = vadd.f32 0.0, %v1314
    %v1316 = vpop.f32.mrf.mxu0
    %v1317 = vpop.f32.mrf.mxu0
    %1318 = vdwg.mxu0
    %1319 = vmatprep.subr.bf16.mxu0 %v1245
    %1320 = vmatpush1.bf16.msra.mxu0 %v1244
    %1321 = vmatprep.subr.bf16.mxu0 %v1241
    %1322 = vmatpush1.bf16.msra.mxu0 %v1240
    %1323 = vmatprep.subr.bf16.mxu0 %v1237
    %1324 = vmatpush1.bf16.msra.mxu0 %v1236
    %1325 = vmatprep.subr.bf16.mxu0 %v1233
    %1326 = vmatpush1.bf16.msra.mxu0 %v1232
    %1327 = vmatprep.subr.bf16.mxu0 %v1229
    %1328 = vmatpush1.bf16.msra.mxu0 %v1228
    %1329 = vmatprep.subr.bf16.mxu0 %v1225
    %1330 = vmatpush1.bf16.msra.mxu0 %v1224
    %1331 = vmatprep.subr.bf16.mxu0 %v1221
    %1332 = vmatpush1.bf16.msra.mxu0 %v1220
    %1333 = vmatprep.subr.bf16.mxu0 %v1217
    %1334 = vmatpush1.bf16.msra.mxu0 %v1216
    %1335 = vmatprep.subr.bf16.mxu0 0
    %1336 = vmatpush2.bf16.msra.mxu0 0
    %1337 = vmatprep.subr.bf16.mxu0 0
    %1338 = vmatpush2.bf16.msra.mxu0 0
    %1339 = vmatprep.subr.bf16.mxu0 0
    %1340 = vmatpush2.bf16.msra.mxu0 0
    %1341 = vmatprep.subr.bf16.mxu0 0
    %1342 = vmatpush2.bf16.msra.mxu0 0
    %1343 = vmatprep.subr.bf16.mxu0 0
    %1344 = vmatpush2.bf16.msra.mxu0 0
    %1345 = vmatprep.subr.bf16.mxu0 0
    %1346 = vmatpush2.bf16.msra.mxu0 0
    %1347 = vmatprep.subr.bf16.mxu0 0
    %1348 = vmatpush2.bf16.msra.mxu0 0
    %1349 = vmatprep.subr.bf16.mxu0 0
    %1350 = vmatpush2.bf16.msra.mxu0 0
    %1351 = vmatprep.mubr.bf16.mxu0 0
    %1352 = vmatmul.mubr.bf16.gmra.mxu0 %v1116
    %v1353 = vpop.f32.mrf.mxu0
    %v1354 = vadd.f32 0.0, %v1353
    %v1355 = vpop.f32.mrf.mxu0
    %v1356 = vadd.f32 0.0, %v1355
    %v1357 = vpop.f32.mrf.mxu0
    %v1358 = vpop.f32.mrf.mxu0
    %1359 = vdwg.mxu0
    %v1364 = vcombine.low %v1313, %v1315
    %v1365 = vcombine.high %v1313, %v1315
    %v1366 = vcombine.low %v1354, %v1356
    %v1367 = vcombine.high %v1354, %v1356
    %v1369 = vunpack.c.l.s4 1966171168
    %v1370 = vunpack.c.0.s8 %v1369
    %v1371 = vlaneseq
    %v1372 = vshrl.u32 %v1371, 7
    %v1373 = vsub.s32 %v1370, %v1372
    %v1374 = vrot.slane %v1364, %v1373
    %v1376 = vunpack.c.l.s4 1966171168
    %v1377 = vunpack.c.0.s8 %v1376
    %v1378 = vlaneseq
    %v1379 = vshrl.u32 %v1378, 7
    %v1380 = vsub.s32 %v1377, %v1379
    %v1381 = vrot.slane %v1365, %v1380
    %v1383 = vunpack.c.l.s4 1966171168
    %v1384 = vunpack.c.0.s8 %v1383
    %v1385 = vlaneseq
    %v1386 = vshrl.u32 %v1385, 7
    %v1387 = vsub.s32 %v1384, %v1386
    %v1388 = vrot.slane %v1366, %v1387
    %v1390 = vunpack.c.l.s4 1966171168
    %v1391 = vunpack.c.0.s8 %v1390
    %v1392 = vlaneseq
    %v1393 = vshrl.u32 %v1392, 7
    %v1394 = vsub.s32 %v1391, %v1393
    %v1395 = vrot.slane %v1367, %v1394
    %v1396 = vcombine.low %v1374, %v1388
    %v1397 = vcombine.high %v1374, %v1388
    %v1398 = vcombine.low %v1381, %v1395
    %v1399 = vcombine.high %v1381, %v1395
    %v1401 = vunpack.c.l.s4 1966171168
    %v1402 = vunpack.c.0.s8 %v1401
    %v1403 = vlaneseq
    %v1404 = vshrl.u32 %v1403, 7
    %v1405 = vsub.s32 %v1402, %v1404
    %v1406 = vrot.slane %v1396, %v1405
    %v1408 = vunpack.c.l.s4 1966171168
    %v1409 = vunpack.c.0.s8 %v1408
    %v1410 = vlaneseq
    %v1411 = vshrl.u32 %v1410, 7
    %v1412 = vsub.s32 %v1409, %v1411
    %v1413 = vrot.slane %v1398, %v1412
    %v1415 = vunpack.c.l.s4 1966171168
    %v1416 = vunpack.c.0.s8 %v1415
    %v1417 = vlaneseq
    %v1418 = vshrl.u32 %v1417, 7
    %v1419 = vsub.s32 %v1416, %v1418
    %v1420 = vrot.slane %v1397, %v1419
    %v1422 = vunpack.c.l.s4 1966171168
    %v1423 = vunpack.c.0.s8 %v1422
    %v1424 = vlaneseq
    %v1425 = vshrl.u32 %v1424, 7
    %v1426 = vsub.s32 %v1423, %v1425
    %v1427 = vrot.slane %v1399, %v1426
    %v1428 = vcombine.high %v1406, %v1406
    %v1429 = vcombine.high %v1413, %v1413
    %v1430 = vcombine.high %v1420, %v1420
    %v1431 = vcombine.high %v1427, %v1427
    %v1440 = vadd.f32 %v1024, %v1406
    %v1441 = vadd.f32 %v1026, %v1420
    %v1442 = vadd.f32 %v1028, %v1428
    %v1443 = vadd.f32 %v1030, %v1430
    %v1444 = vadd.f32 %v1032, %v1413
    %v1445 = vadd.f32 %v1034, %v1427
    %v1446 = vadd.f32 %v1036, %v1429
    %v1447 = vadd.f32 %v1038, %v1431
    %v1448 = vxor.u32 %v1440, 2147483648
    %v1449 = vxor.u32 %v1441, 2147483648
    %v1450 = vxor.u32 %v1442, 2147483648
    %v1451 = vxor.u32 %v1443, 2147483648
    %v1452 = vxor.u32 %v1444, 2147483648
    %v1453 = vxor.u32 %v1445, 2147483648
    %v1454 = vxor.u32 %v1446, 2147483648
    %v1455 = vxor.u32 %v1447, 2147483648
    %v1456 = vmul.f32 %v1448, 1.442695
    %v1457 = vpow.pop %v1456
    %v1458 = vmul.f32 %v1449, 1.442695
    %v1459 = vpow.pop %v1458
    %v1460 = vmul.f32 %v1450, 1.442695
    %v1461 = vpow.pop %v1460
    %v1462 = vmul.f32 %v1451, 1.442695
    %v1463 = vpow.pop %v1462
    %v1464 = vmul.f32 %v1452, 1.442695
    %v1465 = vpow.pop %v1464
    %v1466 = vmul.f32 %v1453, 1.442695
    %v1467 = vpow.pop %v1466
    %v1468 = vmul.f32 %v1454, 1.442695
    %v1469 = vpow.pop %v1468
    %v1470 = vmul.f32 %v1455, 1.442695
    %v1471 = vpow.pop %v1470
    %v1472 = vadd.f32 %v1457, 1.0
    %v1473 = vadd.f32 %v1459, 1.0
    %v1474 = vadd.f32 %v1461, 1.0
    %v1475 = vadd.f32 %v1463, 1.0
    %v1476 = vadd.f32 %v1465, 1.0
    %v1477 = vadd.f32 %v1467, 1.0
    %v1478 = vadd.f32 %v1469, 1.0
    %v1479 = vadd.f32 %v1471, 1.0
    %v1480 = vrcp.pop %v1472
    %v1481 = vmul.f32 1.0, %v1480
    %v1482 = vrcp.pop %v1473
    %v1483 = vmul.f32 1.0, %v1482
    %v1484 = vrcp.pop %v1474
    %v1485 = vmul.f32 1.0, %v1484
    %v1486 = vrcp.pop %v1475
    %v1487 = vmul.f32 1.0, %v1486
    %v1488 = vrcp.pop %v1476
    %v1489 = vmul.f32 1.0, %v1488
    %v1490 = vrcp.pop %v1477
    %v1491 = vmul.f32 1.0, %v1490
    %v1492 = vrcp.pop %v1478
    %v1493 = vmul.f32 1.0, %v1492
    %v1494 = vrcp.pop %v1479
    %v1495 = vmul.f32 1.0, %v1494
    %v1504 = vrot.slane %v1440, 3
    %v1505 = vrot.slane %v1441, 3
    %v1506 = vrot.slane %v1442, 3
    %v1507 = vrot.slane %v1443, 3
    %v1508 = vrot.slane %v1444, 3
    %v1509 = vrot.slane %v1445, 3
    %v1510 = vrot.slane %v1446, 3
    %v1511 = vrot.slane %v1447, 3
    %v1520 = vtanh.pop %v1504
    %v1521 = vtanh.pop %v1505
    %v1522 = vtanh.pop %v1506
    %v1523 = vtanh.pop %v1507
    %v1524 = vtanh.pop %v1508
    %v1525 = vtanh.pop %v1509
    %v1526 = vtanh.pop %v1510
    %v1527 = vtanh.pop %v1511
    %v1536 = vrot.slane %v1481, 1
    %v1537 = vrot.slane %v1483, 1
    %v1538 = vrot.slane %v1485, 1
    %v1539 = vrot.slane %v1487, 1
    %v1540 = vrot.slane %v1489, 1
    %v1541 = vrot.slane %v1491, 1
    %v1542 = vrot.slane %v1493, 1
    %v1543 = vrot.slane %v1495, 1
    %v1552 = vmul.f32 %v1536, %v924
    %v1553 = vmul.f32 %v1537, %v925
    %v1554 = vmul.f32 %v1538, %v926
    %v1555 = vmul.f32 %v1539, %v927
    %v1556 = vmul.f32 %v1540, %v928
    %v1557 = vmul.f32 %v1541, %v929
    %v1558 = vmul.f32 %v1542, %v930
    %v1559 = vmul.f32 %v1543, %v931
    %v1560 = vmul.f32 %v1481, %v1520
    %v1561 = vmul.f32 %v1483, %v1521
    %v1562 = vmul.f32 %v1485, %v1522
    %v1563 = vmul.f32 %v1487, %v1523
    %v1564 = vmul.f32 %v1489, %v1524
    %v1565 = vmul.f32 %v1491, %v1525
    %v1566 = vmul.f32 %v1493, %v1526
    %v1567 = vmul.f32 %v1495, %v1527
    %v1568 = vadd.f32 %v1552, %v1560
    %v1569 = vadd.f32 %v1553, %v1561
    %v1570 = vadd.f32 %v1554, %v1562
    %v1571 = vadd.f32 %v1555, %v1563
    %v1572 = vadd.f32 %v1556, %v1564
    %v1573 = vadd.f32 %v1557, %v1565
    %v1574 = vadd.f32 %v1558, %v1566
    %v1575 = vadd.f32 %v1559, %v1567
    %v1576 = vtanh.pop %v1568
    %v1577 = vtanh.pop %v1569
    %v1578 = vtanh.pop %v1570
    %v1579 = vtanh.pop %v1571
    %v1580 = vtanh.pop %v1572
    %v1581 = vtanh.pop %v1573
    %v1582 = vtanh.pop %v1574
    %v1583 = vtanh.pop %v1575
    %v1584 = vrot.slane %v1481, 2
    %v1585 = vrot.slane %v1483, 2
    %v1586 = vrot.slane %v1485, 2
    %v1587 = vrot.slane %v1487, 2
    %v1588 = vrot.slane %v1489, 2
    %v1589 = vrot.slane %v1491, 2
    %v1590 = vrot.slane %v1493, 2
    %v1591 = vrot.slane %v1495, 2
    %v1600 = vmul.f32 %v1584, %v1576
    %v1601 = vmul.f32 %v1585, %v1577
    %v1602 = vmul.f32 %v1586, %v1578
    %v1603 = vmul.f32 %v1587, %v1579
    %v1604 = vmul.f32 %v1588, %v1580
    %v1605 = vmul.f32 %v1589, %v1581
    %v1606 = vmul.f32 %v1590, %v1582
    %v1607 = vmul.f32 %v1591, %v1583
    %v1616 = vcombine.low %v1600, %v1601
    %v1617 = vcombine.low %v1602, %v1603
    %v1618 = vcombine.low %v1604, %v1605
    %v1619 = vcombine.low %v1606, %v1607
    %v1621 = vunpack.c.l.s4 1966171168
    %v1622 = vunpack.c.0.s8 %v1621
    %v1623 = vlaneseq
    %v1624 = vshrl.u32 %v1623, 7
    %v1625 = vsub.s32 %v1622, %v1624
    %v1626 = vrot.slane %v1616, %v1625
    %v1628 = vunpack.c.l.s4 1966171168
    %v1629 = vunpack.c.0.s8 %v1628
    %v1630 = vlaneseq
    %v1631 = vshrl.u32 %v1630, 7
    %v1632 = vsub.s32 %v1629, %v1631
    %v1633 = vrot.slane %v1617, %v1632
    %v1635 = vunpack.c.l.s4 1966171168
    %v1636 = vunpack.c.0.s8 %v1635
    %v1637 = vlaneseq
    %v1638 = vshrl.u32 %v1637, 7
    %v1639 = vsub.s32 %v1636, %v1638
    %v1640 = vrot.slane %v1618, %v1639
    %v1642 = vunpack.c.l.s4 1966171168
    %v1643 = vunpack.c.0.s8 %v1642
    %v1644 = vlaneseq
    %v1645 = vshrl.u32 %v1644, 7
    %v1646 = vsub.s32 %v1643, %v1645
    %v1647 = vrot.slane %v1619, %v1646
    %v1648 = vcombine.low %v1626, %v1633
    %v1649 = vcombine.low %v1640, %v1647
    %v1651 = vunpack.c.l.s4 1966171168
    %v1652 = vunpack.c.0.s8 %v1651
    %v1653 = vlaneseq
    %v1654 = vshrl.u32 %v1653, 7
    %v1655 = vsub.s32 %v1652, %v1654
    %v1656 = vrot.slane %v1648, %v1655
    %v1658 = vunpack.c.l.s4 1966171168
    %v1659 = vunpack.c.0.s8 %v1658
    %v1660 = vlaneseq
    %v1661 = vshrl.u32 %v1660, 7
    %v1662 = vsub.s32 %v1659, %v1661
    %v1663 = vrot.slane %v1649, %v1662
    %v1664 = vcombine.low %v1656, %v1663
    %1666 = vst [vmem:[#allocation14 + $0x8] sm:$0xff] %v1664
    %s1667 = scalar_lea.vmem [#allocation2], 2
    %v1668 = vld [vmem:[%s1667] ss:$8 sm:$0xf]
    %s1669 = scalar_lea.vmem [#allocation2], 34
    %v1670 = vld [vmem:[%s1669] ss:$8 sm:$0xf]
    %s1671 = scalar_lea.vmem [#allocation2], 66
    %v1672 = vld [vmem:[%s1671] ss:$8 sm:$0xf]
    %s1673 = scalar_lea.vmem [#allocation2], 98
    %v1674 = vld [vmem:[%s1673] ss:$8 sm:$0xf]
    %s1675 = scalar_lea.vmem [#allocation2], 130
    %v1676 = vld [vmem:[%s1675] ss:$8 sm:$0xf]
    %s1677 = scalar_lea.vmem [#allocation2], 162
    %v1678 = vld [vmem:[%s1677] ss:$8 sm:$0xf]
    %s1679 = scalar_lea.vmem [#allocation2], 194
    %v1680 = vld [vmem:[%s1679] ss:$8 sm:$0xf]
    %s1681 = scalar_lea.vmem [#allocation2], 226
    %v1682 = vld [vmem:[%s1681] ss:$8 sm:$0xf]
    %v1683 = vpack.c.bf16 %v1600, %v1600
    %v1684 = vpack.c.bf16 %v1601, %v1601
    %v1685 = vpack.c.bf16 %v1602, %v1602
    %v1686 = vpack.c.bf16 %v1603, %v1603
    %v1687 = vpack.c.bf16 %v1604, %v1604
    %v1688 = vpack.c.bf16 %v1605, %v1605
    %v1689 = vpack.c.bf16 %v1606, %v1606
    %v1690 = vpack.c.bf16 %v1607, %v1607
    %v1691 = vld [vmem:[#allocation11] sm:$0xff]
    %v1692 = vld [vmem:[#allocation11 + $0x8] sm:$0xff]
    %v1693 = vld [vmem:[#allocation11 + $0x10] sm:$0xff]
    %v1694 = vld [vmem:[#allocation11 + $0x18] sm:$0xff]
    %v1695 = vld [vmem:[#allocation11 + $0x20] sm:$0xff]
    %v1696 = vld [vmem:[#allocation11 + $0x28] sm:$0xff]
    %v1697 = vld [vmem:[#allocation11 + $0x30] sm:$0xff]
    %v1698 = vld [vmem:[#allocation11 + $0x38] sm:$0xff]
    %v1699 = vld [vmem:[#allocation11 + $0x40] sm:$0xff]
    %v1700 = vld [vmem:[#allocation11 + $0x48] sm:$0xff]
    %v1701 = vld [vmem:[#allocation11 + $0x50] sm:$0xff]
    %v1702 = vld [vmem:[#allocation11 + $0x58] sm:$0xff]
    %v1703 = vld [vmem:[#allocation11 + $0x60] sm:$0xff]
    %v1704 = vld [vmem:[#allocation11 + $0x68] sm:$0xff]
    %v1705 = vld [vmem:[#allocation11 + $0x70] sm:$0xff]
    %v1706 = vld [vmem:[#allocation11 + $0x78] sm:$0xff]
    %v1707 = vld [vmem:[#allocation11 + $0x80] sm:$0xff]
    %v1708 = vld [vmem:[#allocation11 + $0x88] sm:$0xff]
    %v1709 = vld [vmem:[#allocation11 + $0x90] sm:$0xff]
    %v1710 = vld [vmem:[#allocation11 + $0x98] sm:$0xff]
    %v1711 = vld [vmem:[#allocation11 + $0xa0] sm:$0xff]
    %v1712 = vld [vmem:[#allocation11 + $0xa8] sm:$0xff]
    %v1713 = vld [vmem:[#allocation11 + $0xb0] sm:$0xff]
    %v1714 = vld [vmem:[#allocation11 + $0xb8] sm:$0xff]
    %v1715 = vld [vmem:[#allocation11 + $0xc0] sm:$0xff]
    %v1716 = vld [vmem:[#allocation11 + $0xc8] sm:$0xff]
    %v1717 = vld [vmem:[#allocation11 + $0xd0] sm:$0xff]
    %v1718 = vld [vmem:[#allocation11 + $0xd8] sm:$0xff]
    %v1719 = vld [vmem:[#allocation11 + $0xe0] sm:$0xff]
    %v1720 = vld [vmem:[#allocation11 + $0xe8] sm:$0xff]
    %v1721 = vld [vmem:[#allocation11 + $0xf0] sm:$0xff]
    %v1722 = vld [vmem:[#allocation11 + $0xf8] sm:$0xff]
    %v1731 = vunpack.c.l.b16 %v1683
    %v1732 = vunpack.c.l.b16 %v1684
    %v1733 = vunpack.c.l.b16 %v1685
    %v1734 = vunpack.c.l.b16 %v1686
    %v1735 = vunpack.c.l.b16 %v1687
    %v1736 = vunpack.c.l.b16 %v1688
    %v1737 = vunpack.c.l.b16 %v1689
    %v1738 = vunpack.c.l.b16 %v1690
    %v1739 = vrot.slane %v1732, 7
    %v1740 = vsel %vm1096, %v1739, %v1731
    %v1741 = vrot.slane %v1733, 6
    %v1742 = vsel %vm1099, %v1741, %v1740
    %v1743 = vrot.slane %v1734, 5
    %v1744 = vsel %vm1102, %v1743, %v1742
    %v1745 = vrot.slane %v1735, 4
    %v1746 = vsel %vm1105, %v1745, %v1744
    %v1747 = vrot.slane %v1736, 3
    %v1748 = vsel %vm1108, %v1747, %v1746
    %v1749 = vrot.slane %v1737, 2
    %v1750 = vsel %vm1111, %v1749, %v1748
    %v1751 = vrot.slane %v1738, 1
    %v1752 = vsel %vm1114, %v1751, %v1750
    %v1753 = vpack.c.b16 %v1752, %v1752
    %v1787 = vunpack.c.l.b16 %v1691
    %v1788 = vunpack.c.h.b16 %v1691
    %v1789 = vunpack.c.l.b16 %v1692
    %v1790 = vunpack.c.h.b16 %v1692
    %v1791 = vunpack.c.l.b16 %v1693
    %v1792 = vunpack.c.h.b16 %v1693
    %v1793 = vunpack.c.l.b16 %v1694
    %v1794 = vunpack.c.h.b16 %v1694
    %v1795 = vunpack.c.l.b16 %v1695
    %v1796 = vunpack.c.h.b16 %v1695
    %v1797 = vunpack.c.l.b16 %v1696
    %v1798 = vunpack.c.h.b16 %v1696
    %v1799 = vunpack.c.l.b16 %v1697
    %v1800 = vunpack.c.h.b16 %v1697
    %v1801 = vunpack.c.l.b16 %v1698
    %v1802 = vunpack.c.h.b16 %v1698
    %v1803 = vunpack.c.l.b16 %v1699
    %v1804 = vunpack.c.h.b16 %v1699
    %v1805 = vunpack.c.l.b16 %v1700
    %v1806 = vunpack.c.h.b16 %v1700
    %v1807 = vunpack.c.l.b16 %v1701
    %v1808 = vunpack.c.h.b16 %v1701
    %v1809 = vunpack.c.l.b16 %v1702
    %v1810 = vunpack.c.h.b16 %v1702
    %v1811 = vunpack.c.l.b16 %v1703
    %v1812 = vunpack.c.h.b16 %v1703
    %v1813 = vunpack.c.l.b16 %v1704
    %v1814 = vunpack.c.h.b16 %v1704
    %v1815 = vunpack.c.l.b16 %v1705
    %v1816 = vunpack.c.h.b16 %v1705
    %v1817 = vunpack.c.l.b16 %v1706
    %v1818 = vunpack.c.h.b16 %v1706
    %v1819 = vunpack.c.l.b16 %v1707
    %v1820 = vunpack.c.h.b16 %v1707
    %v1821 = vunpack.c.l.b16 %v1708
    %v1822 = vunpack.c.h.b16 %v1708
    %v1823 = vunpack.c.l.b16 %v1709
    %v1824 = vunpack.c.h.b16 %v1709
    %v1825 = vunpack.c.l.b16 %v1710
    %v1826 = vunpack.c.h.b16 %v1710
    %v1827 = vunpack.c.l.b16 %v1711
    %v1828 = vunpack.c.h.b16 %v1711
    %v1829 = vunpack.c.l.b16 %v1712
    %v1830 = vunpack.c.h.b16 %v1712
    %v1831 = vunpack.c.l.b16 %v1713
    %v1832 = vunpack.c.h.b16 %v1713
    %v1833 = vunpack.c.l.b16 %v1714
    %v1834 = vunpack.c.h.b16 %v1714
    %v1835 = vunpack.c.l.b16 %v1715
    %v1836 = vunpack.c.h.b16 %v1715
    %v1837 = vunpack.c.l.b16 %v1716
    %v1838 = vunpack.c.h.b16 %v1716
    %v1839 = vunpack.c.l.b16 %v1717
    %v1840 = vunpack.c.h.b16 %v1717
    %v1841 = vunpack.c.l.b16 %v1718
    %v1842 = vunpack.c.h.b16 %v1718
    %v1843 = vunpack.c.l.b16 %v1719
    %v1844 = vunpack.c.h.b16 %v1719
    %v1845 = vunpack.c.l.b16 %v1720
    %v1846 = vunpack.c.h.b16 %v1720
    %v1847 = vunpack.c.l.b16 %v1721
    %v1848 = vunpack.c.h.b16 %v1721
    %v1849 = vunpack.c.l.b16 %v1722
    %v1850 = vunpack.c.h.b16 %v1722
    %v1851 = vpack.c.b16 %v1791, %v1787
    %v1852 = vpack.c.b16 %v1792, %v1788
    %v1853 = vpack.c.b16 %v1793, %v1789
    %v1854 = vpack.c.b16 %v1794, %v1790
    %v1855 = vpack.c.b16 %v1799, %v1795
    %v1856 = vpack.c.b16 %v1800, %v1796
    %v1857 = vpack.c.b16 %v1801, %v1797
    %v1858 = vpack.c.b16 %v1802, %v1798
    %v1859 = vpack.c.b16 %v1807, %v1803
    %v1860 = vpack.c.b16 %v1808, %v1804
    %v1861 = vpack.c.b16 %v1809, %v1805
    %v1862 = vpack.c.b16 %v1810, %v1806
    %v1863 = vpack.c.b16 %v1815, %v1811
    %v1864 = vpack.c.b16 %v1816, %v1812
    %v1865 = vpack.c.b16 %v1817, %v1813
    %v1866 = vpack.c.b16 %v1818, %v1814
    %v1867 = vpack.c.b16 %v1823, %v1819
    %v1868 = vpack.c.b16 %v1824, %v1820
    %v1869 = vpack.c.b16 %v1825, %v1821
    %v1870 = vpack.c.b16 %v1826, %v1822
    %v1871 = vpack.c.b16 %v1831, %v1827
    %v1872 = vpack.c.b16 %v1832, %v1828
    %v1873 = vpack.c.b16 %v1833, %v1829
    %v1874 = vpack.c.b16 %v1834, %v1830
    %v1875 = vpack.c.b16 %v1839, %v1835
    %v1876 = vpack.c.b16 %v1840, %v1836
    %v1877 = vpack.c.b16 %v1841, %v1837
    %v1878 = vpack.c.b16 %v1842, %v1838
    %v1879 = vpack.c.b16 %v1847, %v1843
    %v1880 = vpack.c.b16 %v1848, %v1844
    %v1881 = vpack.c.b16 %v1849, %v1845
    %v1882 = vpack.c.b16 %v1850, %v1846
    %1915 = vmatprep.subr.bf16.mxu0 %v1880
    %1916 = vmatpush1.bf16.msra.mxu0 %v1879
    %1917 = vmatprep.subr.bf16.mxu0 %v1876
    %1918 = vmatpush1.bf16.msra.mxu0 %v1875
    %1919 = vmatprep.subr.bf16.mxu0 %v1872
    %1920 = vmatpush1.bf16.msra.mxu0 %v1871
    %1921 = vmatprep.subr.bf16.mxu0 %v1868
    %1922 = vmatpush1.bf16.msra.mxu0 %v1867
    %1923 = vmatprep.subr.bf16.mxu0 %v1864
    %1924 = vmatpush1.bf16.msra.mxu0 %v1863
    %1925 = vmatprep.subr.bf16.mxu0 %v1860
    %1926 = vmatpush1.bf16.msra.mxu0 %v1859
    %1927 = vmatprep.subr.bf16.mxu0 %v1856
    %1928 = vmatpush1.bf16.msra.mxu0 %v1855
    %1929 = vmatprep.subr.bf16.mxu0 %v1852
    %1930 = vmatpush1.bf16.msra.mxu0 %v1851
    %1931 = vmatprep.subr.bf16.mxu0 0
    %1932 = vmatpush2.bf16.msra.mxu0 0
    %1933 = vmatprep.subr.bf16.mxu0 0
    %1934 = vmatpush2.bf16.msra.mxu0 0
    %1935 = vmatprep.subr.bf16.mxu0 0
    %1936 = vmatpush2.bf16.msra.mxu0 0
    %1937 = vmatprep.subr.bf16.mxu0 0
    %1938 = vmatpush2.bf16.msra.mxu0 0
    %1939 = vmatprep.subr.bf16.mxu0 0
    %1940 = vmatpush2.bf16.msra.mxu0 0
    %1941 = vmatprep.subr.bf16.mxu0 0
    %1942 = vmatpush2.bf16.msra.mxu0 0
    %1943 = vmatprep.subr.bf16.mxu0 0
    %1944 = vmatpush2.bf16.msra.mxu0 0
    %1945 = vmatprep.subr.bf16.mxu0 0
    %1946 = vmatpush2.bf16.msra.mxu0 0
    %1947 = vmatprep.mubr.bf16.mxu0 0
    %1948 = vmatmul.mubr.bf16.gmra.mxu0 %v1753
    %v1949 = vpop.f32.mrf.mxu0
    %v1950 = vadd.f32 0.0, %v1949
    %v1951 = vpop.f32.mrf.mxu0
    %v1952 = vadd.f32 0.0, %v1951
    %v1953 = vpop.f32.mrf.mxu0
    %v1954 = vpop.f32.mrf.mxu0
    %1955 = vdwg.mxu0
    %1956 = vmatprep.subr.bf16.mxu0 %v1882
    %1957 = vmatpush1.bf16.msra.mxu0 %v1881
    %1958 = vmatprep.subr.bf16.mxu0 %v1878
    %1959 = vmatpush1.bf16.msra.mxu0 %v1877
    %1960 = vmatprep.subr.bf16.mxu0 %v1874
    %1961 = vmatpush1.bf16.msra.mxu0 %v1873
    %1962 = vmatprep.subr.bf16.mxu0 %v1870
    %1963 = vmatpush1.bf16.msra.mxu0 %v1869
    %1964 = vmatprep.subr.bf16.mxu0 %v1866
    %1965 = vmatpush1.bf16.msra.mxu0 %v1865
    %1966 = vmatprep.subr.bf16.mxu0 %v1862
    %1967 = vmatpush1.bf16.msra.mxu0 %v1861
    %1968 = vmatprep.subr.bf16.mxu0 %v1858
    %1969 = vmatpush1.bf16.msra.mxu0 %v1857
    %1970 = vmatprep.subr.bf16.mxu0 %v1854
    %1971 = vmatpush1.bf16.msra.mxu0 %v1853
    %1972 = vmatprep.subr.bf16.mxu0 0
    %1973 = vmatpush2.bf16.msra.mxu0 0
    %1974 = vmatprep.subr.bf16.mxu0 0
    %1975 = vmatpush2.bf16.msra.mxu0 0
    %1976 = vmatprep.subr.bf16.mxu0 0
    %1977 = vmatpush2.bf16.msra.mxu0 0
    %1978 = vmatprep.subr.bf16.mxu0 0
    %1979 = vmatpush2.bf16.msra.mxu0 0
    %1980 = vmatprep.subr.bf16.mxu0 0
    %1981 = vmatpush2.bf16.msra.mxu0 0
    %1982 = vmatprep.subr.bf16.mxu0 0
    %1983 = vmatpush2.bf16.msra.mxu0 0
    %1984 = vmatprep.subr.bf16.mxu0 0
    %1985 = vmatpush2.bf16.msra.mxu0 0
    %1986 = vmatprep.subr.bf16.mxu0 0
    %1987 = vmatpush2.bf16.msra.mxu0 0
    %1988 = vmatprep.mubr.bf16.mxu0 0
    %1989 = vmatmul.mubr.bf16.gmra.mxu0 %v1753
    %v1990 = vpop.f32.mrf.mxu0
    %v1991 = vadd.f32 0.0, %v1990
    %v1992 = vpop.f32.mrf.mxu0
    %v1993 = vadd.f32 0.0, %v1992
    %v1994 = vpop.f32.mrf.mxu0
    %v1995 = vpop.f32.mrf.mxu0
    %1996 = vdwg.mxu0
    %v2001 = vcombine.low %v1950, %v1952
    %v2002 = vcombine.high %v1950, %v1952
    %v2003 = vcombine.low %v1991, %v1993
    %v2004 = vcombine.high %v1991, %v1993
    %v2006 = vunpack.c.l.s4 1966171168
    %v2007 = vunpack.c.0.s8 %v2006
    %v2008 = vlaneseq
    %v2009 = vshrl.u32 %v2008, 7
    %v2010 = vsub.s32 %v2007, %v2009
    %v2011 = vrot.slane %v2001, %v2010
    %v2013 = vunpack.c.l.s4 1966171168
    %v2014 = vunpack.c.0.s8 %v2013
    %v2015 = vlaneseq
    %v2016 = vshrl.u32 %v2015, 7
    %v2017 = vsub.s32 %v2014, %v2016
    %v2018 = vrot.slane %v2002, %v2017
    %v2020 = vunpack.c.l.s4 1966171168
    %v2021 = vunpack.c.0.s8 %v2020
    %v2022 = vlaneseq
    %v2023 = vshrl.u32 %v2022, 7
    %v2024 = vsub.s32 %v2021, %v2023
    %v2025 = vrot.slane %v2003, %v2024
    %v2027 = vunpack.c.l.s4 1966171168
    %v2028 = vunpack.c.0.s8 %v2027
    %v2029 = vlaneseq
    %v2030 = vshrl.u32 %v2029, 7
    %v2031 = vsub.s32 %v2028, %v2030
    %v2032 = vrot.slane %v2004, %v2031
    %v2033 = vcombine.low %v2011, %v2025
    %v2034 = vcombine.high %v2011, %v2025
    %v2035 = vcombine.low %v2018, %v2032
    %v2036 = vcombine.high %v2018, %v2032
    %v2038 = vunpack.c.l.s4 1966171168
    %v2039 = vunpack.c.0.s8 %v2038
    %v2040 = vlaneseq
    %v2041 = vshrl.u32 %v2040, 7
    %v2042 = vsub.s32 %v2039, %v2041
    %v2043 = vrot.slane %v2033, %v2042
    %v2045 = vunpack.c.l.s4 1966171168
    %v2046 = vunpack.c.0.s8 %v2045
    %v2047 = vlaneseq
    %v2048 = vshrl.u32 %v2047, 7
    %v2049 = vsub.s32 %v2046, %v2048
    %v2050 = vrot.slane %v2035, %v2049
    %v2052 = vunpack.c.l.s4 1966171168
    %v2053 = vunpack.c.0.s8 %v2052
    %v2054 = vlaneseq
    %v2055 = vshrl.u32 %v2054, 7
    %v2056 = vsub.s32 %v2053, %v2055
    %v2057 = vrot.slane %v2034, %v2056
    %v2059 = vunpack.c.l.s4 1966171168
    %v2060 = vunpack.c.0.s8 %v2059
    %v2061 = vlaneseq
    %v2062 = vshrl.u32 %v2061, 7
    %v2063 = vsub.s32 %v2060, %v2062
    %v2064 = vrot.slane %v2036, %v2063
    %v2065 = vcombine.high %v2043, %v2043
    %v2066 = vcombine.high %v2050, %v2050
    %v2067 = vcombine.high %v2057, %v2057
    %v2068 = vcombine.high %v2064, %v2064
    %v2077 = vadd.f32 %v1668, %v2043
    %v2078 = vadd.f32 %v1670, %v2057
    %v2079 = vadd.f32 %v1672, %v2065
    %v2080 = vadd.f32 %v1674, %v2067
    %v2081 = vadd.f32 %v1676, %v2050
    %v2082 = vadd.f32 %v1678, %v2064
    %v2083 = vadd.f32 %v1680, %v2066
    %v2084 = vadd.f32 %v1682, %v2068
    %v2085 = vxor.u32 %v2077, 2147483648
    %v2086 = vxor.u32 %v2078, 2147483648
    %v2087 = vxor.u32 %v2079, 2147483648
    %v2088 = vxor.u32 %v2080, 2147483648
    %v2089 = vxor.u32 %v2081, 2147483648
    %v2090 = vxor.u32 %v2082, 2147483648
    %v2091 = vxor.u32 %v2083, 2147483648
    %v2092 = vxor.u32 %v2084, 2147483648
    %v2093 = vmul.f32 %v2085, 1.442695
    %v2094 = vpow.pop %v2093
    %v2095 = vmul.f32 %v2086, 1.442695
    %v2096 = vpow.pop %v2095
    %v2097 = vmul.f32 %v2087, 1.442695
    %v2098 = vpow.pop %v2097
    %v2099 = vmul.f32 %v2088, 1.442695
    %v2100 = vpow.pop %v2099
    %v2101 = vmul.f32 %v2089, 1.442695
    %v2102 = vpow.pop %v2101
    %v2103 = vmul.f32 %v2090, 1.442695
    %v2104 = vpow.pop %v2103
    %v2105 = vmul.f32 %v2091, 1.442695
    %v2106 = vpow.pop %v2105
    %v2107 = vmul.f32 %v2092, 1.442695
    %v2108 = vpow.pop %v2107
    %v2109 = vadd.f32 %v2094, 1.0
    %v2110 = vadd.f32 %v2096, 1.0
    %v2111 = vadd.f32 %v2098, 1.0
    %v2112 = vadd.f32 %v2100, 1.0
    %v2113 = vadd.f32 %v2102, 1.0
    %v2114 = vadd.f32 %v2104, 1.0
    %v2115 = vadd.f32 %v2106, 1.0
    %v2116 = vadd.f32 %v2108, 1.0
    %v2117 = vrcp.pop %v2109
    %v2118 = vmul.f32 1.0, %v2117
    %v2119 = vrcp.pop %v2110
    %v2120 = vmul.f32 1.0, %v2119
    %v2121 = vrcp.pop %v2111
    %v2122 = vmul.f32 1.0, %v2121
    %v2123 = vrcp.pop %v2112
    %v2124 = vmul.f32 1.0, %v2123
    %v2125 = vrcp.pop %v2113
    %v2126 = vmul.f32 1.0, %v2125
    %v2127 = vrcp.pop %v2114
    %v2128 = vmul.f32 1.0, %v2127
    %v2129 = vrcp.pop %v2115
    %v2130 = vmul.f32 1.0, %v2129
    %v2131 = vrcp.pop %v2116
    %v2132 = vmul.f32 1.0, %v2131
    %v2141 = vrot.slane %v2077, 3
    %v2142 = vrot.slane %v2078, 3
    %v2143 = vrot.slane %v2079, 3
    %v2144 = vrot.slane %v2080, 3
    %v2145 = vrot.slane %v2081, 3
    %v2146 = vrot.slane %v2082, 3
    %v2147 = vrot.slane %v2083, 3
    %v2148 = vrot.slane %v2084, 3
    %v2157 = vtanh.pop %v2141
    %v2158 = vtanh.pop %v2142
    %v2159 = vtanh.pop %v2143
    %v2160 = vtanh.pop %v2144
    %v2161 = vtanh.pop %v2145
    %v2162 = vtanh.pop %v2146
    %v2163 = vtanh.pop %v2147
    %v2164 = vtanh.pop %v2148
    %v2173 = vrot.slane %v2118, 1
    %v2174 = vrot.slane %v2120, 1
    %v2175 = vrot.slane %v2122, 1
    %v2176 = vrot.slane %v2124, 1
    %v2177 = vrot.slane %v2126, 1
    %v2178 = vrot.slane %v2128, 1
    %v2179 = vrot.slane %v2130, 1
    %v2180 = vrot.slane %v2132, 1
    %v2189 = vmul.f32 %v2173, %v1568
    %v2190 = vmul.f32 %v2174, %v1569
    %v2191 = vmul.f32 %v2175, %v1570
    %v2192 = vmul.f32 %v2176, %v1571
    %v2193 = vmul.f32 %v2177, %v1572
    %v2194 = vmul.f32 %v2178, %v1573
    %v2195 = vmul.f32 %v2179, %v1574
    %v2196 = vmul.f32 %v2180, %v1575
    %v2197 = vmul.f32 %v2118, %v2157
    %v2198 = vmul.f32 %v2120, %v2158
    %v2199 = vmul.f32 %v2122, %v2159
    %v2200 = vmul.f32 %v2124, %v2160
    %v2201 = vmul.f32 %v2126, %v2161
    %v2202 = vmul.f32 %v2128, %v2162
    %v2203 = vmul.f32 %v2130, %v2163
    %v2204 = vmul.f32 %v2132, %v2164
    %v2205 = vadd.f32 %v2189, %v2197
    %v2206 = vadd.f32 %v2190, %v2198
    %v2207 = vadd.f32 %v2191, %v2199
    %v2208 = vadd.f32 %v2192, %v2200
    %v2209 = vadd.f32 %v2193, %v2201
    %v2210 = vadd.f32 %v2194, %v2202
    %v2211 = vadd.f32 %v2195, %v2203
    %v2212 = vadd.f32 %v2196, %v2204
    %v2213 = vtanh.pop %v2205
    %v2214 = vtanh.pop %v2206
    %v2215 = vtanh.pop %v2207
    %v2216 = vtanh.pop %v2208
    %v2217 = vtanh.pop %v2209
    %v2218 = vtanh.pop %v2210
    %v2219 = vtanh.pop %v2211
    %v2220 = vtanh.pop %v2212
    %v2221 = vrot.slane %v2118, 2
    %v2222 = vrot.slane %v2120, 2
    %v2223 = vrot.slane %v2122, 2
    %v2224 = vrot.slane %v2124, 2
    %v2225 = vrot.slane %v2126, 2
    %v2226 = vrot.slane %v2128, 2
    %v2227 = vrot.slane %v2130, 2
    %v2228 = vrot.slane %v2132, 2
    %v2237 = vmul.f32 %v2221, %v2213
    %v2238 = vmul.f32 %v2222, %v2214
    %v2239 = vmul.f32 %v2223, %v2215
    %v2240 = vmul.f32 %v2224, %v2216
    %v2241 = vmul.f32 %v2225, %v2217
    %v2242 = vmul.f32 %v2226, %v2218
    %v2243 = vmul.f32 %v2227, %v2219
    %v2244 = vmul.f32 %v2228, %v2220
    %v2253 = vcombine.low %v2237, %v2238
    %v2254 = vcombine.low %v2239, %v2240
    %v2255 = vcombine.low %v2241, %v2242
    %v2256 = vcombine.low %v2243, %v2244
    %v2258 = vunpack.c.l.s4 1966171168
    %v2259 = vunpack.c.0.s8 %v2258
    %v2260 = vlaneseq
    %v2261 = vshrl.u32 %v2260, 7
    %v2262 = vsub.s32 %v2259, %v2261
    %v2263 = vrot.slane %v2253, %v2262
    %v2265 = vunpack.c.l.s4 1966171168
    %v2266 = vunpack.c.0.s8 %v2265
    %v2267 = vlaneseq
    %v2268 = vshrl.u32 %v2267, 7
    %v2269 = vsub.s32 %v2266, %v2268
    %v2270 = vrot.slane %v2254, %v2269
    %v2272 = vunpack.c.l.s4 1966171168
    %v2273 = vunpack.c.0.s8 %v2272
    %v2274 = vlaneseq
    %v2275 = vshrl.u32 %v2274, 7
    %v2276 = vsub.s32 %v2273, %v2275
    %v2277 = vrot.slane %v2255, %v2276
    %v2279 = vunpack.c.l.s4 1966171168
    %v2280 = vunpack.c.0.s8 %v2279
    %v2281 = vlaneseq
    %v2282 = vshrl.u32 %v2281, 7
    %v2283 = vsub.s32 %v2280, %v2282
    %v2284 = vrot.slane %v2256, %v2283
    %v2285 = vcombine.low %v2263, %v2270
    %v2286 = vcombine.low %v2277, %v2284
    %v2288 = vunpack.c.l.s4 1966171168
    %v2289 = vunpack.c.0.s8 %v2288
    %v2290 = vlaneseq
    %v2291 = vshrl.u32 %v2290, 7
    %v2292 = vsub.s32 %v2289, %v2291
    %v2293 = vrot.slane %v2285, %v2292
    %v2295 = vunpack.c.l.s4 1966171168
    %v2296 = vunpack.c.0.s8 %v2295
    %v2297 = vlaneseq
    %v2298 = vshrl.u32 %v2297, 7
    %v2299 = vsub.s32 %v2296, %v2298
    %v2300 = vrot.slane %v2286, %v2299
    %v2301 = vcombine.low %v2293, %v2300
    %2303 = vst [vmem:[#allocation14 + $0x10] sm:$0xff] %v2301
    %s2304 = scalar_lea.vmem [#allocation2], 3
    %v2305 = vld [vmem:[%s2304] ss:$8 sm:$0xf]
    %s2306 = scalar_lea.vmem [#allocation2], 35
    %v2307 = vld [vmem:[%s2306] ss:$8 sm:$0xf]
    %s2308 = scalar_lea.vmem [#allocation2], 67
    %v2309 = vld [vmem:[%s2308] ss:$8 sm:$0xf]
    %s2310 = scalar_lea.vmem [#allocation2], 99
    %v2311 = vld [vmem:[%s2310] ss:$8 sm:$0xf]
    %s2312 = scalar_lea.vmem [#allocation2], 131
    %v2313 = vld [vmem:[%s2312] ss:$8 sm:$0xf]
    %s2314 = scalar_lea.vmem [#allocation2], 163
    %v2315 = vld [vmem:[%s2314] ss:$8 sm:$0xf]
    %s2316 = scalar_lea.vmem [#allocation2], 195
    %v2317 = vld [vmem:[%s2316] ss:$8 sm:$0xf]
    %s2318 = scalar_lea.vmem [#allocation2], 227
    %v2319 = vld [vmem:[%s2318] ss:$8 sm:$0xf]
    %v2320 = vpack.c.bf16 %v2237, %v2237
    %v2321 = vpack.c.bf16 %v2238, %v2238
    %v2322 = vpack.c.bf16 %v2239, %v2239
    %v2323 = vpack.c.bf16 %v2240, %v2240
    %v2324 = vpack.c.bf16 %v2241, %v2241
    %v2325 = vpack.c.bf16 %v2242, %v2242
    %v2326 = vpack.c.bf16 %v2243, %v2243
    %v2327 = vpack.c.bf16 %v2244, %v2244
    %v2328 = vld [vmem:[#allocation11] sm:$0xff]
    %v2329 = vld [vmem:[#allocation11 + $0x8] sm:$0xff]
    %v2330 = vld [vmem:[#allocation11 + $0x10] sm:$0xff]
    %v2331 = vld [vmem:[#allocation11 + $0x18] sm:$0xff]
    %v2332 = vld [vmem:[#allocation11 + $0x20] sm:$0xff]
    %v2333 = vld [vmem:[#allocation11 + $0x28] sm:$0xff]
    %v2334 = vld [vmem:[#allocation11 + $0x30] sm:$0xff]
    %v2335 = vld [vmem:[#allocation11 + $0x38] sm:$0xff]
    %v2336 = vld [vmem:[#allocation11 + $0x40] sm:$0xff]
    %v2337 = vld [vmem:[#allocation11 + $0x48] sm:$0xff]
    %v2338 = vld [vmem:[#allocation11 + $0x50] sm:$0xff]
    %v2339 = vld [vmem:[#allocation11 + $0x58] sm:$0xff]
    %v2340 = vld [vmem:[#allocation11 + $0x60] sm:$0xff]
    %v2341 = vld [vmem:[#allocation11 + $0x68] sm:$0xff]
    %v2342 = vld [vmem:[#allocation11 + $0x70] sm:$0xff]
    %v2343 = vld [vmem:[#allocation11 + $0x78] sm:$0xff]
    %v2344 = vld [vmem:[#allocation11 + $0x80] sm:$0xff]
    %v2345 = vld [vmem:[#allocation11 + $0x88] sm:$0xff]
    %v2346 = vld [vmem:[#allocation11 + $0x90] sm:$0xff]
    %v2347 = vld [vmem:[#allocation11 + $0x98] sm:$0xff]
    %v2348 = vld [vmem:[#allocation11 + $0xa0] sm:$0xff]
    %v2349 = vld [vmem:[#allocation11 + $0xa8] sm:$0xff]
    %v2350 = vld [vmem:[#allocation11 + $0xb0] sm:$0xff]
    %v2351 = vld [vmem:[#allocation11 + $0xb8] sm:$0xff]
    %v2352 = vld [vmem:[#allocation11 + $0xc0] sm:$0xff]
    %v2353 = vld [vmem:[#allocation11 + $0xc8] sm:$0xff]
    %v2354 = vld [vmem:[#allocation11 + $0xd0] sm:$0xff]
    %v2355 = vld [vmem:[#allocation11 + $0xd8] sm:$0xff]
    %v2356 = vld [vmem:[#allocation11 + $0xe0] sm:$0xff]
    %v2357 = vld [vmem:[#allocation11 + $0xe8] sm:$0xff]
    %v2358 = vld [vmem:[#allocation11 + $0xf0] sm:$0xff]
    %v2359 = vld [vmem:[#allocation11 + $0xf8] sm:$0xff]
    %v2368 = vunpack.c.l.b16 %v2320
    %v2369 = vunpack.c.l.b16 %v2321
    %v2370 = vunpack.c.l.b16 %v2322
    %v2371 = vunpack.c.l.b16 %v2323
    %v2372 = vunpack.c.l.b16 %v2324
    %v2373 = vunpack.c.l.b16 %v2325
    %v2374 = vunpack.c.l.b16 %v2326
    %v2375 = vunpack.c.l.b16 %v2327
    %v2376 = vrot.slane %v2369, 7
    %v2377 = vsel %vm1096, %v2376, %v2368
    %v2378 = vrot.slane %v2370, 6
    %v2379 = vsel %vm1099, %v2378, %v2377
    %v2380 = vrot.slane %v2371, 5
    %v2381 = vsel %vm1102, %v2380, %v2379
    %v2382 = vrot.slane %v2372, 4
    %v2383 = vsel %vm1105, %v2382, %v2381
    %v2384 = vrot.slane %v2373, 3
    %v2385 = vsel %vm1108, %v2384, %v2383
    %v2386 = vrot.slane %v2374, 2
    %v2387 = vsel %vm1111, %v2386, %v2385
    %v2388 = vrot.slane %v2375, 1
    %v2389 = vsel %vm1114, %v2388, %v2387
    %v2390 = vpack.c.b16 %v2389, %v2389
    %v2424 = vunpack.c.l.b16 %v2328
    %v2425 = vunpack.c.h.b16 %v2328
    %v2426 = vunpack.c.l.b16 %v2329
    %v2427 = vunpack.c.h.b16 %v2329
    %v2428 = vunpack.c.l.b16 %v2330
    %v2429 = vunpack.c.h.b16 %v2330
    %v2430 = vunpack.c.l.b16 %v2331
    %v2431 = vunpack.c.h.b16 %v2331
    %v2432 = vunpack.c.l.b16 %v2332
    %v2433 = vunpack.c.h.b16 %v2332
    %v2434 = vunpack.c.l.b16 %v2333
    %v2435 = vunpack.c.h.b16 %v2333
    %v2436 = vunpack.c.l.b16 %v2334
    %v2437 = vunpack.c.h.b16 %v2334
    %v2438 = vunpack.c.l.b16 %v2335
    %v2439 = vunpack.c.h.b16 %v2335
    %v2440 = vunpack.c.l.b16 %v2336
    %v2441 = vunpack.c.h.b16 %v2336
    %v2442 = vunpack.c.l.b16 %v2337
    %v2443 = vunpack.c.h.b16 %v2337
    %v2444 = vunpack.c.l.b16 %v2338
    %v2445 = vunpack.c.h.b16 %v2338
    %v2446 = vunpack.c.l.b16 %v2339
    %v2447 = vunpack.c.h.b16 %v2339
    %v2448 = vunpack.c.l.b16 %v2340
    %v2449 = vunpack.c.h.b16 %v2340
    %v2450 = vunpack.c.l.b16 %v2341
    %v2451 = vunpack.c.h.b16 %v2341
    %v2452 = vunpack.c.l.b16 %v2342
    %v2453 = vunpack.c.h.b16 %v2342
    %v2454 = vunpack.c.l.b16 %v2343
    %v2455 = vunpack.c.h.b16 %v2343
    %v2456 = vunpack.c.l.b16 %v2344
    %v2457 = vunpack.c.h.b16 %v2344
    %v2458 = vunpack.c.l.b16 %v2345
    %v2459 = vunpack.c.h.b16 %v2345
    %v2460 = vunpack.c.l.b16 %v2346
    %v2461 = vunpack.c.h.b16 %v2346
    %v2462 = vunpack.c.l.b16 %v2347
    %v2463 = vunpack.c.h.b16 %v2347
    %v2464 = vunpack.c.l.b16 %v2348
    %v2465 = vunpack.c.h.b16 %v2348
    %v2466 = vunpack.c.l.b16 %v2349
    %v2467 = vunpack.c.h.b16 %v2349
    %v2468 = vunpack.c.l.b16 %v2350
    %v2469 = vunpack.c.h.b16 %v2350
    %v2470 = vunpack.c.l.b16 %v2351
    %v2471 = vunpack.c.h.b16 %v2351
    %v2472 = vunpack.c.l.b16 %v2352
    %v2473 = vunpack.c.h.b16 %v2352
    %v2474 = vunpack.c.l.b16 %v2353
    %v2475 = vunpack.c.h.b16 %v2353
    %v2476 = vunpack.c.l.b16 %v2354
    %v2477 = vunpack.c.h.b16 %v2354
    %v2478 = vunpack.c.l.b16 %v2355
    %v2479 = vunpack.c.h.b16 %v2355
    %v2480 = vunpack.c.l.b16 %v2356
    %v2481 = vunpack.c.h.b16 %v2356
    %v2482 = vunpack.c.l.b16 %v2357
    %v2483 = vunpack.c.h.b16 %v2357
    %v2484 = vunpack.c.l.b16 %v2358
    %v2485 = vunpack.c.h.b16 %v2358
    %v2486 = vunpack.c.l.b16 %v2359
    %v2487 = vunpack.c.h.b16 %v2359
    %v2488 = vpack.c.b16 %v2428, %v2424
    %v2489 = vpack.c.b16 %v2429, %v2425
    %v2490 = vpack.c.b16 %v2430, %v2426
    %v2491 = vpack.c.b16 %v2431, %v2427
    %v2492 = vpack.c.b16 %v2436, %v2432
    %v2493 = vpack.c.b16 %v2437, %v2433
    %v2494 = vpack.c.b16 %v2438, %v2434
    %v2495 = vpack.c.b16 %v2439, %v2435
    %v2496 = vpack.c.b16 %v2444, %v2440
    %v2497 = vpack.c.b16 %v2445, %v2441
    %v2498 = vpack.c.b16 %v2446, %v2442
    %v2499 = vpack.c.b16 %v2447, %v2443
    %v2500 = vpack.c.b16 %v2452, %v2448
    %v2501 = vpack.c.b16 %v2453, %v2449
    %v2502 = vpack.c.b16 %v2454, %v2450
    %v2503 = vpack.c.b16 %v2455, %v2451
    %v2504 = vpack.c.b16 %v2460, %v2456
    %v2505 = vpack.c.b16 %v2461, %v2457
    %v2506 = vpack.c.b16 %v2462, %v2458
    %v2507 = vpack.c.b16 %v2463, %v2459
    %v2508 = vpack.c.b16 %v2468, %v2464
    %v2509 = vpack.c.b16 %v2469, %v2465
    %v2510 = vpack.c.b16 %v2470, %v2466
    %v2511 = vpack.c.b16 %v2471, %v2467
    %v2512 = vpack.c.b16 %v2476, %v2472
    %v2513 = vpack.c.b16 %v2477, %v2473
    %v2514 = vpack.c.b16 %v2478, %v2474
    %v2515 = vpack.c.b16 %v2479, %v2475
    %v2516 = vpack.c.b16 %v2484, %v2480
    %v2517 = vpack.c.b16 %v2485, %v2481
    %v2518 = vpack.c.b16 %v2486, %v2482
    %v2519 = vpack.c.b16 %v2487, %v2483
    %2552 = vmatprep.subr.bf16.mxu0 %v2517
    %2553 = vmatpush1.bf16.msra.mxu0 %v2516
    %2554 = vmatprep.subr.bf16.mxu0 %v2513
    %2555 = vmatpush1.bf16.msra.mxu0 %v2512
    %2556 = vmatprep.subr.bf16.mxu0 %v2509
    %2557 = vmatpush1.bf16.msra.mxu0 %v2508
    %2558 = vmatprep.subr.bf16.mxu0 %v2505
    %2559 = vmatpush1.bf16.msra.mxu0 %v2504
    %2560 = vmatprep.subr.bf16.mxu0 %v2501
    %2561 = vmatpush1.bf16.msra.mxu0 %v2500
    %2562 = vmatprep.subr.bf16.mxu0 %v2497
    %2563 = vmatpush1.bf16.msra.mxu0 %v2496
    %2564 = vmatprep.subr.bf16.mxu0 %v2493
    %2565 = vmatpush1.bf16.msra.mxu0 %v2492
    %2566 = vmatprep.subr.bf16.mxu0 %v2489
    %2567 = vmatpush1.bf16.msra.mxu0 %v2488
    %2568 = vmatprep.subr.bf16.mxu0 0
    %2569 = vmatpush2.bf16.msra.mxu0 0
    %2570 = vmatprep.subr.bf16.mxu0 0
    %2571 = vmatpush2.bf16.msra.mxu0 0
    %2572 = vmatprep.subr.bf16.mxu0 0
    %2573 = vmatpush2.bf16.msra.mxu0 0
    %2574 = vmatprep.subr.bf16.mxu0 0
    %2575 = vmatpush2.bf16.msra.mxu0 0
    %2576 = vmatprep.subr.bf16.mxu0 0
    %2577 = vmatpush2.bf16.msra.mxu0 0
    %2578 = vmatprep.subr.bf16.mxu0 0
    %2579 = vmatpush2.bf16.msra.mxu0 0
    %2580 = vmatprep.subr.bf16.mxu0 0
    %2581 = vmatpush2.bf16.msra.mxu0 0
    %2582 = vmatprep.subr.bf16.mxu0 0
    %2583 = vmatpush2.bf16.msra.mxu0 0
    %2584 = vmatprep.mubr.bf16.mxu0 0
    %2585 = vmatmul.mubr.bf16.gmra.mxu0 %v2390
    %v2586 = vpop.f32.mrf.mxu0
    %v2587 = vadd.f32 0.0, %v2586
    %v2588 = vpop.f32.mrf.mxu0
    %v2589 = vadd.f32 0.0, %v2588
    %v2590 = vpop.f32.mrf.mxu0
    %v2591 = vpop.f32.mrf.mxu0
    %2592 = vdwg.mxu0
    %2593 = vmatprep.subr.bf16.mxu0 %v2519
    %2594 = vmatpush1.bf16.msra.mxu0 %v2518
    %2595 = vmatprep.subr.bf16.mxu0 %v2515
    %2596 = vmatpush1.bf16.msra.mxu0 %v2514
    %2597 = vmatprep.subr.bf16.mxu0 %v2511
    %2598 = vmatpush1.bf16.msra.mxu0 %v2510
    %2599 = vmatprep.subr.bf16.mxu0 %v2507
    %2600 = vmatpush1.bf16.msra.mxu0 %v2506
    %2601 = vmatprep.subr.bf16.mxu0 %v2503
    %2602 = vmatpush1.bf16.msra.mxu0 %v2502
    %2603 = vmatprep.subr.bf16.mxu0 %v2499
    %2604 = vmatpush1.bf16.msra.mxu0 %v2498
    %2605 = vmatprep.subr.bf16.mxu0 %v2495
    %2606 = vmatpush1.bf16.msra.mxu0 %v2494
    %2607 = vmatprep.subr.bf16.mxu0 %v2491
    %2608 = vmatpush1.bf16.msra.mxu0 %v2490
    %2609 = vmatprep.subr.bf16.mxu0 0
    %2610 = vmatpush2.bf16.msra.mxu0 0
    %2611 = vmatprep.subr.bf16.mxu0 0
    %2612 = vmatpush2.bf16.msra.mxu0 0
    %2613 = vmatprep.subr.bf16.mxu0 0
    %2614 = vmatpush2.bf16.msra.mxu0 0
    %2615 = vmatprep.subr.bf16.mxu0 0
    %2616 = vmatpush2.bf16.msra.mxu0 0
    %2617 = vmatprep.subr.bf16.mxu0 0
    %2618 = vmatpush2.bf16.msra.mxu0 0
    %2619 = vmatprep.subr.bf16.mxu0 0
    %2620 = vmatpush2.bf16.msra.mxu0 0
    %2621 = vmatprep.subr.bf16.mxu0 0
    %2622 = vmatpush2.bf16.msra.mxu0 0
    %2623 = vmatprep.subr.bf16.mxu0 0
    %2624 = vmatpush2.bf16.msra.mxu0 0
    %2625 = vmatprep.mubr.bf16.mxu0 0
    %2626 = vmatmul.mubr.bf16.gmra.mxu0 %v2390
    %v2627 = vpop.f32.mrf.mxu0
    %v2628 = vadd.f32 0.0, %v2627
    %v2629 = vpop.f32.mrf.mxu0
    %v2630 = vadd.f32 0.0, %v2629
    %v2631 = vpop.f32.mrf.mxu0
    %v2632 = vpop.f32.mrf.mxu0
    %2633 = vdwg.mxu0
    %v2638 = vcombine.low %v2587, %v2589
    %v2639 = vcombine.high %v2587, %v2589
    %v2640 = vcombine.low %v2628, %v2630
    %v2641 = vcombine.high %v2628, %v2630
    %v2643 = vunpack.c.l.s4 1966171168
    %v2644 = vunpack.c.0.s8 %v2643
    %v2645 = vlaneseq
    %v2646 = vshrl.u32 %v2645, 7
    %v2647 = vsub.s32 %v2644, %v2646
    %v2648 = vrot.slane %v2638, %v2647
    %v2650 = vunpack.c.l.s4 1966171168
    %v2651 = vunpack.c.0.s8 %v2650
    %v2652 = vlaneseq
    %v2653 = vshrl.u32 %v2652, 7
    %v2654 = vsub.s32 %v2651, %v2653
    %v2655 = vrot.slane %v2639, %v2654
    %v2657 = vunpack.c.l.s4 1966171168
    %v2658 = vunpack.c.0.s8 %v2657
    %v2659 = vlaneseq
    %v2660 = vshrl.u32 %v2659, 7
    %v2661 = vsub.s32 %v2658, %v2660
    %v2662 = vrot.slane %v2640, %v2661
    %v2664 = vunpack.c.l.s4 1966171168
    %v2665 = vunpack.c.0.s8 %v2664
    %v2666 = vlaneseq
    %v2667 = vshrl.u32 %v2666, 7
    %v2668 = vsub.s32 %v2665, %v2667
    %v2669 = vrot.slane %v2641, %v2668
    %v2670 = vcombine.low %v2648, %v2662
    %v2671 = vcombine.high %v2648, %v2662
    %v2672 = vcombine.low %v2655, %v2669
    %v2673 = vcombine.high %v2655, %v2669
    %v2675 = vunpack.c.l.s4 1966171168
    %v2676 = vunpack.c.0.s8 %v2675
    %v2677 = vlaneseq
    %v2678 = vshrl.u32 %v2677, 7
    %v2679 = vsub.s32 %v2676, %v2678
    %v2680 = vrot.slane %v2670, %v2679
    %v2682 = vunpack.c.l.s4 1966171168
    %v2683 = vunpack.c.0.s8 %v2682
    %v2684 = vlaneseq
    %v2685 = vshrl.u32 %v2684, 7
    %v2686 = vsub.s32 %v2683, %v2685
    %v2687 = vrot.slane %v2672, %v2686
    %v2689 = vunpack.c.l.s4 1966171168
    %v2690 = vunpack.c.0.s8 %v2689
    %v2691 = vlaneseq
    %v2692 = vshrl.u32 %v2691, 7
    %v2693 = vsub.s32 %v2690, %v2692
    %v2694 = vrot.slane %v2671, %v2693
    %v2696 = vunpack.c.l.s4 1966171168
    %v2697 = vunpack.c.0.s8 %v2696
    %v2698 = vlaneseq
    %v2699 = vshrl.u32 %v2698, 7
    %v2700 = vsub.s32 %v2697, %v2699
    %v2701 = vrot.slane %v2673, %v2700
    %v2702 = vcombine.high %v2680, %v2680
    %v2703 = vcombine.high %v2687, %v2687
    %v2704 = vcombine.high %v2694, %v2694
    %v2705 = vcombine.high %v2701, %v2701
    %v2714 = vadd.f32 %v2305, %v2680
    %v2715 = vadd.f32 %v2307, %v2694
    %v2716 = vadd.f32 %v2309, %v2702
    %v2717 = vadd.f32 %v2311, %v2704
    %v2718 = vadd.f32 %v2313, %v2687
    %v2719 = vadd.f32 %v2315, %v2701
    %v2720 = vadd.f32 %v2317, %v2703
    %v2721 = vadd.f32 %v2319, %v2705
    %v2722 = vxor.u32 %v2714, 2147483648
    %v2723 = vxor.u32 %v2715, 2147483648
    %v2724 = vxor.u32 %v2716, 2147483648
    %v2725 = vxor.u32 %v2717, 2147483648
    %v2726 = vxor.u32 %v2718, 2147483648
    %v2727 = vxor.u32 %v2719, 2147483648
    %v2728 = vxor.u32 %v2720, 2147483648
    %v2729 = vxor.u32 %v2721, 2147483648
    %v2730 = vmul.f32 %v2722, 1.442695
    %v2731 = vpow.pop %v2730
    %v2732 = vmul.f32 %v2723, 1.442695
    %v2733 = vpow.pop %v2732
    %v2734 = vmul.f32 %v2724, 1.442695
    %v2735 = vpow.pop %v2734
    %v2736 = vmul.f32 %v2725, 1.442695
    %v2737 = vpow.pop %v2736
    %v2738 = vmul.f32 %v2726, 1.442695
    %v2739 = vpow.pop %v2738
    %v2740 = vmul.f32 %v2727, 1.442695
    %v2741 = vpow.pop %v2740
    %v2742 = vmul.f32 %v2728, 1.442695
    %v2743 = vpow.pop %v2742
    %v2744 = vmul.f32 %v2729, 1.442695
    %v2745 = vpow.pop %v2744
    %v2746 = vadd.f32 %v2731, 1.0
    %v2747 = vadd.f32 %v2733, 1.0
    %v2748 = vadd.f32 %v2735, 1.0
    %v2749 = vadd.f32 %v2737, 1.0
    %v2750 = vadd.f32 %v2739, 1.0
    %v2751 = vadd.f32 %v2741, 1.0
    %v2752 = vadd.f32 %v2743, 1.0
    %v2753 = vadd.f32 %v2745, 1.0
    %v2754 = vrcp.pop %v2746
    %v2755 = vmul.f32 1.0, %v2754
    %v2756 = vrcp.pop %v2747
    %v2757 = vmul.f32 1.0, %v2756
    %v2758 = vrcp.pop %v2748
    %v2759 = vmul.f32 1.0, %v2758
    %v2760 = vrcp.pop %v2749
    %v2761 = vmul.f32 1.0, %v2760
    %v2762 = vrcp.pop %v2750
    %v2763 = vmul.f32 1.0, %v2762
    %v2764 = vrcp.pop %v2751
    %v2765 = vmul.f32 1.0, %v2764
    %v2766 = vrcp.pop %v2752
    %v2767 = vmul.f32 1.0, %v2766
    %v2768 = vrcp.pop %v2753
    %v2769 = vmul.f32 1.0, %v2768
    %v2778 = vrot.slane %v2714, 3
    %v2779 = vrot.slane %v2715, 3
    %v2780 = vrot.slane %v2716, 3
    %v2781 = vrot.slane %v2717, 3
    %v2782 = vrot.slane %v2718, 3
    %v2783 = vrot.slane %v2719, 3
    %v2784 = vrot.slane %v2720, 3
    %v2785 = vrot.slane %v2721, 3
    %v2794 = vtanh.pop %v2778
    %v2795 = vtanh.pop %v2779
    %v2796 = vtanh.pop %v2780
    %v2797 = vtanh.pop %v2781
    %v2798 = vtanh.pop %v2782
    %v2799 = vtanh.pop %v2783
    %v2800 = vtanh.pop %v2784
    %v2801 = vtanh.pop %v2785
    %v2810 = vrot.slane %v2755, 1
    %v2811 = vrot.slane %v2757, 1
    %v2812 = vrot.slane %v2759, 1
    %v2813 = vrot.slane %v2761, 1
    %v2814 = vrot.slane %v2763, 1
    %v2815 = vrot.slane %v2765, 1
    %v2816 = vrot.slane %v2767, 1
    %v2817 = vrot.slane %v2769, 1
    %v2826 = vmul.f32 %v2810, %v2205
    %v2827 = vmul.f32 %v2811, %v2206
    %v2828 = vmul.f32 %v2812, %v2207
    %v2829 = vmul.f32 %v2813, %v2208
    %v2830 = vmul.f32 %v2814, %v2209
    %v2831 = vmul.f32 %v2815, %v2210
    %v2832 = vmul.f32 %v2816, %v2211
    %v2833 = vmul.f32 %v2817, %v2212
    %v2834 = vmul.f32 %v2755, %v2794
    %v2835 = vmul.f32 %v2757, %v2795
    %v2836 = vmul.f32 %v2759, %v2796
    %v2837 = vmul.f32 %v2761, %v2797
    %v2838 = vmul.f32 %v2763, %v2798
    %v2839 = vmul.f32 %v2765, %v2799
    %v2840 = vmul.f32 %v2767, %v2800
    %v2841 = vmul.f32 %v2769, %v2801
    %v2842 = vadd.f32 %v2826, %v2834
    %v2843 = vadd.f32 %v2827, %v2835
    %v2844 = vadd.f32 %v2828, %v2836
    %v2845 = vadd.f32 %v2829, %v2837
    %v2846 = vadd.f32 %v2830, %v2838
    %v2847 = vadd.f32 %v2831, %v2839
    %v2848 = vadd.f32 %v2832, %v2840
    %v2849 = vadd.f32 %v2833, %v2841
    %v2850 = vtanh.pop %v2842
    %v2851 = vtanh.pop %v2843
    %v2852 = vtanh.pop %v2844
    %v2853 = vtanh.pop %v2845
    %v2854 = vtanh.pop %v2846
    %v2855 = vtanh.pop %v2847
    %v2856 = vtanh.pop %v2848
    %v2857 = vtanh.pop %v2849
    %v2858 = vrot.slane %v2755, 2
    %v2859 = vrot.slane %v2757, 2
    %v2860 = vrot.slane %v2759, 2
    %v2861 = vrot.slane %v2761, 2
    %v2862 = vrot.slane %v2763, 2
    %v2863 = vrot.slane %v2765, 2
    %v2864 = vrot.slane %v2767, 2
    %v2865 = vrot.slane %v2769, 2
    %v2874 = vmul.f32 %v2858, %v2850
    %v2875 = vmul.f32 %v2859, %v2851
    %v2876 = vmul.f32 %v2860, %v2852
    %v2877 = vmul.f32 %v2861, %v2853
    %v2878 = vmul.f32 %v2862, %v2854
    %v2879 = vmul.f32 %v2863, %v2855
    %v2880 = vmul.f32 %v2864, %v2856
    %v2881 = vmul.f32 %v2865, %v2857
    %v2890 = vcombine.low %v2874, %v2875
    %v2891 = vcombine.low %v2876, %v2877
    %v2892 = vcombine.low %v2878, %v2879
    %v2893 = vcombine.low %v2880, %v2881
    %v2895 = vunpack.c.l.s4 1966171168
    %v2896 = vunpack.c.0.s8 %v2895
    %v2897 = vlaneseq
    %v2898 = vshrl.u32 %v2897, 7
    %v2899 = vsub.s32 %v2896, %v2898
    %v2900 = vrot.slane %v2890, %v2899
    %v2902 = vunpack.c.l.s4 1966171168
    %v2903 = vunpack.c.0.s8 %v2902
    %v2904 = vlaneseq
    %v2905 = vshrl.u32 %v2904, 7
    %v2906 = vsub.s32 %v2903, %v2905
    %v2907 = vrot.slane %v2891, %v2906
    %v2909 = vunpack.c.l.s4 1966171168
    %v2910 = vunpack.c.0.s8 %v2909
    %v2911 = vlaneseq
    %v2912 = vshrl.u32 %v2911, 7
    %v2913 = vsub.s32 %v2910, %v2912
    %v2914 = vrot.slane %v2892, %v2913
    %v2916 = vunpack.c.l.s4 1966171168
    %v2917 = vunpack.c.0.s8 %v2916
    %v2918 = vlaneseq
    %v2919 = vshrl.u32 %v2918, 7
    %v2920 = vsub.s32 %v2917, %v2919
    %v2921 = vrot.slane %v2893, %v2920
    %v2922 = vcombine.low %v2900, %v2907
    %v2923 = vcombine.low %v2914, %v2921
    %v2925 = vunpack.c.l.s4 1966171168
    %v2926 = vunpack.c.0.s8 %v2925
    %v2927 = vlaneseq
    %v2928 = vshrl.u32 %v2927, 7
    %v2929 = vsub.s32 %v2926, %v2928
    %v2930 = vrot.slane %v2922, %v2929
    %v2932 = vunpack.c.l.s4 1966171168
    %v2933 = vunpack.c.0.s8 %v2932
    %v2934 = vlaneseq
    %v2935 = vshrl.u32 %v2934, 7
    %v2936 = vsub.s32 %v2933, %v2935
    %v2937 = vrot.slane %v2923, %v2936
    %v2938 = vcombine.low %v2930, %v2937
    %2940 = vst [vmem:[#allocation14 + $0x18] sm:$0xff] %v2938
    %s2941 = scalar_lea.vmem [#allocation2], 4
    %v2942 = vld [vmem:[%s2941] ss:$8 sm:$0xf]
    %s2943 = scalar_lea.vmem [#allocation2], 36
    %v2944 = vld [vmem:[%s2943] ss:$8 sm:$0xf]
    %s2945 = scalar_lea.vmem [#allocation2], 68
    %v2946 = vld [vmem:[%s2945] ss:$8 sm:$0xf]
    %s2947 = scalar_lea.vmem [#allocation2], 100
    %v2948 = vld [vmem:[%s2947] ss:$8 sm:$0xf]
    %s2949 = scalar_lea.vmem [#allocation2], 132
    %v2950 = vld [vmem:[%s2949] ss:$8 sm:$0xf]
    %s2951 = scalar_lea.vmem [#allocation2], 164
    %v2952 = vld [vmem:[%s2951] ss:$8 sm:$0xf]
    %s2953 = scalar_lea.vmem [#allocation2], 196
    %v2954 = vld [vmem:[%s2953] ss:$8 sm:$0xf]
    %s2955 = scalar_lea.vmem [#allocation2], 228
    %v2956 = vld [vmem:[%s2955] ss:$8 sm:$0xf]
    %v2957 = vpack.c.bf16 %v2874, %v2874
    %v2958 = vpack.c.bf16 %v2875, %v2875
    %v2959 = vpack.c.bf16 %v2876, %v2876
    %v2960 = vpack.c.bf16 %v2877, %v2877
    %v2961 = vpack.c.bf16 %v2878, %v2878
    %v2962 = vpack.c.bf16 %v2879, %v2879
    %v2963 = vpack.c.bf16 %v2880, %v2880
    %v2964 = vpack.c.bf16 %v2881, %v2881
    %v2965 = vld [vmem:[#allocation11] sm:$0xff]
    %v2966 = vld [vmem:[#allocation11 + $0x8] sm:$0xff]
    %v2967 = vld [vmem:[#allocation11 + $0x10] sm:$0xff]
    %v2968 = vld [vmem:[#allocation11 + $0x18] sm:$0xff]
    %v2969 = vld [vmem:[#allocation11 + $0x20] sm:$0xff]
    %v2970 = vld [vmem:[#allocation11 + $0x28] sm:$0xff]
    %v2971 = vld [vmem:[#allocation11 + $0x30] sm:$0xff]
    %v2972 = vld [vmem:[#allocation11 + $0x38] sm:$0xff]
    %v2973 = vld [vmem:[#allocation11 + $0x40] sm:$0xff]
    %v2974 = vld [vmem:[#allocation11 + $0x48] sm:$0xff]
    %v2975 = vld [vmem:[#allocation11 + $0x50] sm:$0xff]
    %v2976 = vld [vmem:[#allocation11 + $0x58] sm:$0xff]
    %v2977 = vld [vmem:[#allocation11 + $0x60] sm:$0xff]
    %v2978 = vld [vmem:[#allocation11 + $0x68] sm:$0xff]
    %v2979 = vld [vmem:[#allocation11 + $0x70] sm:$0xff]
    %v2980 = vld [vmem:[#allocation11 + $0x78] sm:$0xff]
    %v2981 = vld [vmem:[#allocation11 + $0x80] sm:$0xff]
    %v2982 = vld [vmem:[#allocation11 + $0x88] sm:$0xff]
    %v2983 = vld [vmem:[#allocation11 + $0x90] sm:$0xff]
    %v2984 = vld [vmem:[#allocation11 + $0x98] sm:$0xff]
    %v2985 = vld [vmem:[#allocation11 + $0xa0] sm:$0xff]
    %v2986 = vld [vmem:[#allocation11 + $0xa8] sm:$0xff]
    %v2987 = vld [vmem:[#allocation11 + $0xb0] sm:$0xff]
    %v2988 = vld [vmem:[#allocation11 + $0xb8] sm:$0xff]
    %v2989 = vld [vmem:[#allocation11 + $0xc0] sm:$0xff]
    %v2990 = vld [vmem:[#allocation11 + $0xc8] sm:$0xff]
    %v2991 = vld [vmem:[#allocation11 + $0xd0] sm:$0xff]
    %v2992 = vld [vmem:[#allocation11 + $0xd8] sm:$0xff]
    %v2993 = vld [vmem:[#allocation11 + $0xe0] sm:$0xff]
    %v2994 = vld [vmem:[#allocation11 + $0xe8] sm:$0xff]
    %v2995 = vld [vmem:[#allocation11 + $0xf0] sm:$0xff]
    %v2996 = vld [vmem:[#allocation11 + $0xf8] sm:$0xff]
    %v3005 = vunpack.c.l.b16 %v2957
    %v3006 = vunpack.c.l.b16 %v2958
    %v3007 = vunpack.c.l.b16 %v2959
    %v3008 = vunpack.c.l.b16 %v2960
    %v3009 = vunpack.c.l.b16 %v2961
    %v3010 = vunpack.c.l.b16 %v2962
    %v3011 = vunpack.c.l.b16 %v2963
    %v3012 = vunpack.c.l.b16 %v2964
    %v3013 = vrot.slane %v3006, 7
    %v3014 = vsel %vm1096, %v3013, %v3005
    %v3015 = vrot.slane %v3007, 6
    %v3016 = vsel %vm1099, %v3015, %v3014
    %v3017 = vrot.slane %v3008, 5
    %v3018 = vsel %vm1102, %v3017, %v3016
    %v3019 = vrot.slane %v3009, 4
    %v3020 = vsel %vm1105, %v3019, %v3018
    %v3021 = vrot.slane %v3010, 3
    %v3022 = vsel %vm1108, %v3021, %v3020
    %v3023 = vrot.slane %v3011, 2
    %v3024 = vsel %vm1111, %v3023, %v3022
    %v3025 = vrot.slane %v3012, 1
    %v3026 = vsel %vm1114, %v3025, %v3024
    %v3027 = vpack.c.b16 %v3026, %v3026
    %v3061 = vunpack.c.l.b16 %v2965
    %v3062 = vunpack.c.h.b16 %v2965
    %v3063 = vunpack.c.l.b16 %v2966
    %v3064 = vunpack.c.h.b16 %v2966
    %v3065 = vunpack.c.l.b16 %v2967
    %v3066 = vunpack.c.h.b16 %v2967
    %v3067 = vunpack.c.l.b16 %v2968
    %v3068 = vunpack.c.h.b16 %v2968
    %v3069 = vunpack.c.l.b16 %v2969
    %v3070 = vunpack.c.h.b16 %v2969
    %v3071 = vunpack.c.l.b16 %v2970
    %v3072 = vunpack.c.h.b16 %v2970
    %v3073 = vunpack.c.l.b16 %v2971
    %v3074 = vunpack.c.h.b16 %v2971
    %v3075 = vunpack.c.l.b16 %v2972
    %v3076 = vunpack.c.h.b16 %v2972
    %v3077 = vunpack.c.l.b16 %v2973
    %v3078 = vunpack.c.h.b16 %v2973
    %v3079 = vunpack.c.l.b16 %v2974
    %v3080 = vunpack.c.h.b16 %v2974
    %v3081 = vunpack.c.l.b16 %v2975
    %v3082 = vunpack.c.h.b16 %v2975
    %v3083 = vunpack.c.l.b16 %v2976
    %v3084 = vunpack.c.h.b16 %v2976
    %v3085 = vunpack.c.l.b16 %v2977
    %v3086 = vunpack.c.h.b16 %v2977
    %v3087 = vunpack.c.l.b16 %v2978
    %v3088 = vunpack.c.h.b16 %v2978
    %v3089 = vunpack.c.l.b16 %v2979
    %v3090 = vunpack.c.h.b16 %v2979
    %v3091 = vunpack.c.l.b16 %v2980
    %v3092 = vunpack.c.h.b16 %v2980
    %v3093 = vunpack.c.l.b16 %v2981
    %v3094 = vunpack.c.h.b16 %v2981
    %v3095 = vunpack.c.l.b16 %v2982
    %v3096 = vunpack.c.h.b16 %v2982
    %v3097 = vunpack.c.l.b16 %v2983
    %v3098 = vunpack.c.h.b16 %v2983
    %v3099 = vunpack.c.l.b16 %v2984
    %v3100 = vunpack.c.h.b16 %v2984
    %v3101 = vunpack.c.l.b16 %v2985
    %v3102 = vunpack.c.h.b16 %v2985
    %v3103 = vunpack.c.l.b16 %v2986
    %v3104 = vunpack.c.h.b16 %v2986
    %v3105 = vunpack.c.l.b16 %v2987
    %v3106 = vunpack.c.h.b16 %v2987
    %v3107 = vunpack.c.l.b16 %v2988
    %v3108 = vunpack.c.h.b16 %v2988
    %v3109 = vunpack.c.l.b16 %v2989
    %v3110 = vunpack.c.h.b16 %v2989
    %v3111 = vunpack.c.l.b16 %v2990
    %v3112 = vunpack.c.h.b16 %v2990
    %v3113 = vunpack.c.l.b16 %v2991
    %v3114 = vunpack.c.h.b16 %v2991
    %v3115 = vunpack.c.l.b16 %v2992
    %v3116 = vunpack.c.h.b16 %v2992
    %v3117 = vunpack.c.l.b16 %v2993
    %v3118 = vunpack.c.h.b16 %v2993
    %v3119 = vunpack.c.l.b16 %v2994
    %v3120 = vunpack.c.h.b16 %v2994
    %v3121 = vunpack.c.l.b16 %v2995
    %v3122 = vunpack.c.h.b16 %v2995
    %v3123 = vunpack.c.l.b16 %v2996
    %v3124 = vunpack.c.h.b16 %v2996
    %v3125 = vpack.c.b16 %v3065, %v3061
    %v3126 = vpack.c.b16 %v3066, %v3062
    %v3127 = vpack.c.b16 %v3067, %v3063
    %v3128 = vpack.c.b16 %v3068, %v3064
    %v3129 = vpack.c.b16 %v3073, %v3069
    %v3130 = vpack.c.b16 %v3074, %v3070
    %v3131 = vpack.c.b16 %v3075, %v3071
    %v3132 = vpack.c.b16 %v3076, %v3072
    %v3133 = vpack.c.b16 %v3081, %v3077
    %v3134 = vpack.c.b16 %v3082, %v3078
    %v3135 = vpack.c.b16 %v3083, %v3079
    %v3136 = vpack.c.b16 %v3084, %v3080
    %v3137 = vpack.c.b16 %v3089, %v3085
    %v3138 = vpack.c.b16 %v3090, %v3086
    %v3139 = vpack.c.b16 %v3091, %v3087
    %v3140 = vpack.c.b16 %v3092, %v3088
    %v3141 = vpack.c.b16 %v3097, %v3093
    %v3142 = vpack.c.b16 %v3098, %v3094
    %v3143 = vpack.c.b16 %v3099, %v3095
    %v3144 = vpack.c.b16 %v3100, %v3096
    %v3145 = vpack.c.b16 %v3105, %v3101
    %v3146 = vpack.c.b16 %v3106, %v3102
    %v3147 = vpack.c.b16 %v3107, %v3103
    %v3148 = vpack.c.b16 %v3108, %v3104
    %v3149 = vpack.c.b16 %v3113, %v3109
    %v3150 = vpack.c.b16 %v3114, %v3110
    %v3151 = vpack.c.b16 %v3115, %v3111
    %v3152 = vpack.c.b16 %v3116, %v3112
    %v3153 = vpack.c.b16 %v3121, %v3117
    %v3154 = vpack.c.b16 %v3122, %v3118
    %v3155 = vpack.c.b16 %v3123, %v3119
    %v3156 = vpack.c.b16 %v3124, %v3120
    %3189 = vmatprep.subr.bf16.mxu0 %v3154
    %3190 = vmatpush1.bf16.msra.mxu0 %v3153
    %3191 = vmatprep.subr.bf16.mxu0 %v3150
    %3192 = vmatpush1.bf16.msra.mxu0 %v3149
    %3193 = vmatprep.subr.bf16.mxu0 %v3146
    %3194 = vmatpush1.bf16.msra.mxu0 %v3145
    %3195 = vmatprep.subr.bf16.mxu0 %v3142
    %3196 = vmatpush1.bf16.msra.mxu0 %v3141
    %3197 = vmatprep.subr.bf16.mxu0 %v3138
    %3198 = vmatpush1.bf16.msra.mxu0 %v3137
    %3199 = vmatprep.subr.bf16.mxu0 %v3134
    %3200 = vmatpush1.bf16.msra.mxu0 %v3133
    %3201 = vmatprep.subr.bf16.mxu0 %v3130
    %3202 = vmatpush1.bf16.msra.mxu0 %v3129
    %3203 = vmatprep.subr.bf16.mxu0 %v3126
    %3204 = vmatpush1.bf16.msra.mxu0 %v3125
    %3205 = vmatprep.subr.bf16.mxu0 0
    %3206 = vmatpush2.bf16.msra.mxu0 0
    %3207 = vmatprep.subr.bf16.mxu0 0
    %3208 = vmatpush2.bf16.msra.mxu0 0
    %3209 = vmatprep.subr.bf16.mxu0 0
    %3210 = vmatpush2.bf16.msra.mxu0 0
    %3211 = vmatprep.subr.bf16.mxu0 0
    %3212 = vmatpush2.bf16.msra.mxu0 0
    %3213 = vmatprep.subr.bf16.mxu0 0
    %3214 = vmatpush2.bf16.msra.mxu0 0
    %3215 = vmatprep.subr.bf16.mxu0 0
    %3216 = vmatpush2.bf16.msra.mxu0 0
    %3217 = vmatprep.subr.bf16.mxu0 0
    %3218 = vmatpush2.bf16.msra.mxu0 0
    %3219 = vmatprep.subr.bf16.mxu0 0
    %3220 = vmatpush2.bf16.msra.mxu0 0
    %3221 = vmatprep.mubr.bf16.mxu0 0
    %3222 = vmatmul.mubr.bf16.gmra.mxu0 %v3027
    %v3223 = vpop.f32.mrf.mxu0
    %v3224 = vadd.f32 0.0, %v3223
    %v3225 = vpop.f32.mrf.mxu0
    %v3226 = vadd.f32 0.0, %v3225
    %v3227 = vpop.f32.mrf.mxu0
    %v3228 = vpop.f32.mrf.mxu0
    %3229 = vdwg.mxu0
    %3230 = vmatprep.subr.bf16.mxu0 %v3156
    %3231 = vmatpush1.bf16.msra.mxu0 %v3155
    %3232 = vmatprep.subr.bf16.mxu0 %v3152
    %3233 = vmatpush1.bf16.msra.mxu0 %v3151
    %3234 = vmatprep.subr.bf16.mxu0 %v3148
    %3235 = vmatpush1.bf16.msra.mxu0 %v3147
    %3236 = vmatprep.subr.bf16.mxu0 %v3144
    %3237 = vmatpush1.bf16.msra.mxu0 %v3143
    %3238 = vmatprep.subr.bf16.mxu0 %v3140
    %3239 = vmatpush1.bf16.msra.mxu0 %v3139
    %3240 = vmatprep.subr.bf16.mxu0 %v3136
    %3241 = vmatpush1.bf16.msra.mxu0 %v3135
    %3242 = vmatprep.subr.bf16.mxu0 %v3132
    %3243 = vmatpush1.bf16.msra.mxu0 %v3131
    %3244 = vmatprep.subr.bf16.mxu0 %v3128
    %3245 = vmatpush1.bf16.msra.mxu0 %v3127
    %3246 = vmatprep.subr.bf16.mxu0 0
    %3247 = vmatpush2.bf16.msra.mxu0 0
    %3248 = vmatprep.subr.bf16.mxu0 0
    %3249 = vmatpush2.bf16.msra.mxu0 0
    %3250 = vmatprep.subr.bf16.mxu0 0
    %3251 = vmatpush2.bf16.msra.mxu0 0
    %3252 = vmatprep.subr.bf16.mxu0 0
    %3253 = vmatpush2.bf16.msra.mxu0 0
    %3254 = vmatprep.subr.bf16.mxu0 0
    %3255 = vmatpush2.bf16.msra.mxu0 0
    %3256 = vmatprep.subr.bf16.mxu0 0
    %3257 = vmatpush2.bf16.msra.mxu0 0
    %3258 = vmatprep.subr.bf16.mxu0 0
    %3259 = vmatpush2.bf16.msra.mxu0 0
    %3260 = vmatprep.subr.bf16.mxu0 0
    %3261 = vmatpush2.bf16.msra.mxu0 0
    %3262 = vmatprep.mubr.bf16.mxu0 0
    %3263 = vmatmul.mubr.bf16.gmra.mxu0 %v3027
    %v3264 = vpop.f32.mrf.mxu0
    %v3265 = vadd.f32 0.0, %v3264
    %v3266 = vpop.f32.mrf.mxu0
    %v3267 = vadd.f32 0.0, %v3266
    %v3268 = vpop.f32.mrf.mxu0
    %v3269 = vpop.f32.mrf.mxu0
    %3270 = vdwg.mxu0
    %v3275 = vcombine.low %v3224, %v3226
    %v3276 = vcombine.high %v3224, %v3226
    %v3277 = vcombine.low %v3265, %v3267
    %v3278 = vcombine.high %v3265, %v3267
    %v3280 = vunpack.c.l.s4 1966171168
    %v3281 = vunpack.c.0.s8 %v3280
    %v3282 = vlaneseq
    %v3283 = vshrl.u32 %v3282, 7
    %v3284 = vsub.s32 %v3281, %v3283
    %v3285 = vrot.slane %v3275, %v3284
    %v3287 = vunpack.c.l.s4 1966171168
    %v3288 = vunpack.c.0.s8 %v3287
    %v3289 = vlaneseq
    %v3290 = vshrl.u32 %v3289, 7
    %v3291 = vsub.s32 %v3288, %v3290
    %v3292 = vrot.slane %v3276, %v3291
    %v3294 = vunpack.c.l.s4 1966171168
    %v3295 = vunpack.c.0.s8 %v3294
    %v3296 = vlaneseq
    %v3297 = vshrl.u32 %v3296, 7
    %v3298 = vsub.s32 %v3295, %v3297
    %v3299 = vrot.slane %v3277, %v3298
    %v3301 = vunpack.c.l.s4 1966171168
    %v3302 = vunpack.c.0.s8 %v3301
    %v3303 = vlaneseq
    %v3304 = vshrl.u32 %v3303, 7
    %v3305 = vsub.s32 %v3302, %v3304
    %v3306 = vrot.slane %v3278, %v3305
    %v3307 = vcombine.low %v3285, %v3299
    %v3308 = vcombine.high %v3285, %v3299
    %v3309 = vcombine.low %v3292, %v3306
    %v3310 = vcombine.high %v3292, %v3306
    %v3312 = vunpack.c.l.s4 1966171168
    %v3313 = vunpack.c.0.s8 %v3312
    %v3314 = vlaneseq
    %v3315 = vshrl.u32 %v3314, 7
    %v3316 = vsub.s32 %v3313, %v3315
    %v3317 = vrot.slane %v3307, %v3316
    %v3319 = vunpack.c.l.s4 1966171168
    %v3320 = vunpack.c.0.s8 %v3319
    %v3321 = vlaneseq
    %v3322 = vshrl.u32 %v3321, 7
    %v3323 = vsub.s32 %v3320, %v3322
    %v3324 = vrot.slane %v3309, %v3323
    %v3326 = vunpack.c.l.s4 1966171168
    %v3327 = vunpack.c.0.s8 %v3326
    %v3328 = vlaneseq
    %v3329 = vshrl.u32 %v3328, 7
    %v3330 = vsub.s32 %v3327, %v3329
    %v3331 = vrot.slane %v3308, %v3330
    %v3333 = vunpack.c.l.s4 1966171168
    %v3334 = vunpack.c.0.s8 %v3333
    %v3335 = vlaneseq
    %v3336 = vshrl.u32 %v3335, 7
    %v3337 = vsub.s32 %v3334, %v3336
    %v3338 = vrot.slane %v3310, %v3337
    %v3339 = vcombine.high %v3317, %v3317
    %v3340 = vcombine.high %v3324, %v3324
    %v3341 = vcombine.high %v3331, %v3331
    %v3342 = vcombine.high %v3338, %v3338
    %v3351 = vadd.f32 %v2942, %v3317
    %v3352 = vadd.f32 %v2944, %v3331
    %v3353 = vadd.f32 %v2946, %v3339
    %v3354 = vadd.f32 %v2948, %v3341
    %v3355 = vadd.f32 %v2950, %v3324
    %v3356 = vadd.f32 %v2952, %v3338
    %v3357 = vadd.f32 %v2954, %v3340
    %v3358 = vadd.f32 %v2956, %v3342
    %v3359 = vxor.u32 %v3351, 2147483648
    %v3360 = vxor.u32 %v3352, 2147483648
    %v3361 = vxor.u32 %v3353, 2147483648
    %v3362 = vxor.u32 %v3354, 2147483648
    %v3363 = vxor.u32 %v3355, 2147483648
    %v3364 = vxor.u32 %v3356, 2147483648
    %v3365 = vxor.u32 %v3357, 2147483648
    %v3366 = vxor.u32 %v3358, 2147483648
    %v3367 = vmul.f32 %v3359, 1.442695
    %v3368 = vpow.pop %v3367
    %v3369 = vmul.f32 %v3360, 1.442695
    %v3370 = vpow.pop %v3369
    %v3371 = vmul.f32 %v3361, 1.442695
    %v3372 = vpow.pop %v3371
    %v3373 = vmul.f32 %v3362, 1.442695
    %v3374 = vpow.pop %v3373
    %v3375 = vmul.f32 %v3363, 1.442695
    %v3376 = vpow.pop %v3375
    %v3377 = vmul.f32 %v3364, 1.442695
    %v3378 = vpow.pop %v3377
    %v3379 = vmul.f32 %v3365, 1.442695
    %v3380 = vpow.pop %v3379
    %v3381 = vmul.f32 %v3366, 1.442695
    %v3382 = vpow.pop %v3381
    %v3383 = vadd.f32 %v3368, 1.0
    %v3384 = vadd.f32 %v3370, 1.0
    %v3385 = vadd.f32 %v3372, 1.0
    %v3386 = vadd.f32 %v3374, 1.0
    %v3387 = vadd.f32 %v3376, 1.0
    %v3388 = vadd.f32 %v3378, 1.0
    %v3389 = vadd.f32 %v3380, 1.0
    %v3390 = vadd.f32 %v3382, 1.0
    %v3391 = vrcp.pop %v3383
    %v3392 = vmul.f32 1.0, %v3391
    %v3393 = vrcp.pop %v3384
    %v3394 = vmul.f32 1.0, %v3393
    %v3395 = vrcp.pop %v3385
    %v3396 = vmul.f32 1.0, %v3395
    %v3397 = vrcp.pop %v3386
    %v3398 = vmul.f32 1.0, %v3397
    %v3399 = vrcp.pop %v3387
    %v3400 = vmul.f32 1.0, %v3399
    %v3401 = vrcp.pop %v3388
    %v3402 = vmul.f32 1.0, %v3401
    %v3403 = vrcp.pop %v3389
    %v3404 = vmul.f32 1.0, %v3403
    %v3405 = vrcp.pop %v3390
    %v3406 = vmul.f32 1.0, %v3405
    %v3415 = vrot.slane %v3351, 3
    %v3416 = vrot.slane %v3352, 3
    %v3417 = vrot.slane %v3353, 3
    %v3418 = vrot.slane %v3354, 3
    %v3419 = vrot.slane %v3355, 3
    %v3420 = vrot.slane %v3356, 3
    %v3421 = vrot.slane %v3357, 3
    %v3422 = vrot.slane %v3358, 3
    %v3431 = vtanh.pop %v3415
    %v3432 = vtanh.pop %v3416
    %v3433 = vtanh.pop %v3417
    %v3434 = vtanh.pop %v3418
    %v3435 = vtanh.pop %v3419
    %v3436 = vtanh.pop %v3420
    %v3437 = vtanh.pop %v3421
    %v3438 = vtanh.pop %v3422
    %v3447 = vrot.slane %v3392, 1
    %v3448 = vrot.slane %v3394, 1
    %v3449 = vrot.slane %v3396, 1
    %v3450 = vrot.slane %v3398, 1
    %v3451 = vrot.slane %v3400, 1
    %v3452 = vrot.slane %v3402, 1
    %v3453 = vrot.slane %v3404, 1
    %v3454 = vrot.slane %v3406, 1
    %v3463 = vmul.f32 %v3447, %v2842
    %v3464 = vmul.f32 %v3448, %v2843
    %v3465 = vmul.f32 %v3449, %v2844
    %v3466 = vmul.f32 %v3450, %v2845
    %v3467 = vmul.f32 %v3451, %v2846
    %v3468 = vmul.f32 %v3452, %v2847
    %v3469 = vmul.f32 %v3453, %v2848
    %v3470 = vmul.f32 %v3454, %v2849
    %v3471 = vmul.f32 %v3392, %v3431
    %v3472 = vmul.f32 %v3394, %v3432
    %v3473 = vmul.f32 %v3396, %v3433
    %v3474 = vmul.f32 %v3398, %v3434
    %v3475 = vmul.f32 %v3400, %v3435
    %v3476 = vmul.f32 %v3402, %v3436
    %v3477 = vmul.f32 %v3404, %v3437
    %v3478 = vmul.f32 %v3406, %v3438
    %v3479 = vadd.f32 %v3463, %v3471
    %v3480 = vadd.f32 %v3464, %v3472
    %v3481 = vadd.f32 %v3465, %v3473
    %v3482 = vadd.f32 %v3466, %v3474
    %v3483 = vadd.f32 %v3467, %v3475
    %v3484 = vadd.f32 %v3468, %v3476
    %v3485 = vadd.f32 %v3469, %v3477
    %v3486 = vadd.f32 %v3470, %v3478
    %v3487 = vtanh.pop %v3479
    %v3488 = vtanh.pop %v3480
    %v3489 = vtanh.pop %v3481
    %v3490 = vtanh.pop %v3482
    %v3491 = vtanh.pop %v3483
    %v3492 = vtanh.pop %v3484
    %v3493 = vtanh.pop %v3485
    %v3494 = vtanh.pop %v3486
    %v3495 = vrot.slane %v3392, 2
    %v3496 = vrot.slane %v3394, 2
    %v3497 = vrot.slane %v3396, 2
    %v3498 = vrot.slane %v3398, 2
    %v3499 = vrot.slane %v3400, 2
    %v3500 = vrot.slane %v3402, 2
    %v3501 = vrot.slane %v3404, 2
    %v3502 = vrot.slane %v3406, 2
    %v3511 = vmul.f32 %v3495, %v3487
    %v3512 = vmul.f32 %v3496, %v3488
    %v3513 = vmul.f32 %v3497, %v3489
    %v3514 = vmul.f32 %v3498, %v3490
    %v3515 = vmul.f32 %v3499, %v3491
    %v3516 = vmul.f32 %v3500, %v3492
    %v3517 = vmul.f32 %v3501, %v3493
    %v3518 = vmul.f32 %v3502, %v3494
    %v3527 = vcombine.low %v3511, %v3512
    %v3528 = vcombine.low %v3513, %v3514
    %v3529 = vcombine.low %v3515, %v3516
    %v3530 = vcombine.low %v3517, %v3518
    %v3532 = vunpack.c.l.s4 1966171168
    %v3533 = vunpack.c.0.s8 %v3532
    %v3534 = vlaneseq
    %v3535 = vshrl.u32 %v3534, 7
    %v3536 = vsub.s32 %v3533, %v3535
    %v3537 = vrot.slane %v3527, %v3536
    %v3539 = vunpack.c.l.s4 1966171168
    %v3540 = vunpack.c.0.s8 %v3539
    %v3541 = vlaneseq
    %v3542 = vshrl.u32 %v3541, 7
    %v3543 = vsub.s32 %v3540, %v3542
    %v3544 = vrot.slane %v3528, %v3543
    %v3546 = vunpack.c.l.s4 1966171168
    %v3547 = vunpack.c.0.s8 %v3546
    %v3548 = vlaneseq
    %v3549 = vshrl.u32 %v3548, 7
    %v3550 = vsub.s32 %v3547, %v3549
    %v3551 = vrot.slane %v3529, %v3550
    %v3553 = vunpack.c.l.s4 1966171168
    %v3554 = vunpack.c.0.s8 %v3553
    %v3555 = vlaneseq
    %v3556 = vshrl.u32 %v3555, 7
    %v3557 = vsub.s32 %v3554, %v3556
    %v3558 = vrot.slane %v3530, %v3557
    %v3559 = vcombine.low %v3537, %v3544
    %v3560 = vcombine.low %v3551, %v3558
    %v3562 = vunpack.c.l.s4 1966171168
    %v3563 = vunpack.c.0.s8 %v3562
    %v3564 = vlaneseq
    %v3565 = vshrl.u32 %v3564, 7
    %v3566 = vsub.s32 %v3563, %v3565
    %v3567 = vrot.slane %v3559, %v3566
    %v3569 = vunpack.c.l.s4 1966171168
    %v3570 = vunpack.c.0.s8 %v3569
    %v3571 = vlaneseq
    %v3572 = vshrl.u32 %v3571, 7
    %v3573 = vsub.s32 %v3570, %v3572
    %v3574 = vrot.slane %v3560, %v3573
    %v3575 = vcombine.low %v3567, %v3574
    %3577 = vst [vmem:[#allocation14 + $0x20] sm:$0xff] %v3575
    %s3578 = scalar_lea.vmem [#allocation2], 5
    %v3579 = vld [vmem:[%s3578] ss:$8 sm:$0xf]
    %s3580 = scalar_lea.vmem [#allocation2], 37
    %v3581 = vld [vmem:[%s3580] ss:$8 sm:$0xf]
    %s3582 = scalar_lea.vmem [#allocation2], 69
    %v3583 = vld [vmem:[%s3582] ss:$8 sm:$0xf]
    %s3584 = scalar_lea.vmem [#allocation2], 101
    %v3585 = vld [vmem:[%s3584] ss:$8 sm:$0xf]
    %s3586 = scalar_lea.vmem [#allocation2], 133
    %v3587 = vld [vmem:[%s3586] ss:$8 sm:$0xf]
    %s3588 = scalar_lea.vmem [#allocation2], 165
    %v3589 = vld [vmem:[%s3588] ss:$8 sm:$0xf]
    %s3590 = scalar_lea.vmem [#allocation2], 197
    %v3591 = vld [vmem:[%s3590] ss:$8 sm:$0xf]
    %s3592 = scalar_lea.vmem [#allocation2], 229
    %v3593 = vld [vmem:[%s3592] ss:$8 sm:$0xf]
    %v3594 = vpack.c.bf16 %v3511, %v3511
    %v3595 = vpack.c.bf16 %v3512, %v3512
    %v3596 = vpack.c.bf16 %v3513, %v3513
    %v3597 = vpack.c.bf16 %v3514, %v3514
    %v3598 = vpack.c.bf16 %v3515, %v3515
    %v3599 = vpack.c.bf16 %v3516, %v3516
    %v3600 = vpack.c.bf16 %v3517, %v3517
    %v3601 = vpack.c.bf16 %v3518, %v3518
    %v3602 = vld [vmem:[#allocation11] sm:$0xff]
    %v3603 = vld [vmem:[#allocation11 + $0x8] sm:$0xff]
    %v3604 = vld [vmem:[#allocation11 + $0x10] sm:$0xff]
    %v3605 = vld [vmem:[#allocation11 + $0x18] sm:$0xff]
    %v3606 = vld [vmem:[#allocation11 + $0x20] sm:$0xff]
    %v3607 = vld [vmem:[#allocation11 + $0x28] sm:$0xff]
    %v3608 = vld [vmem:[#allocation11 + $0x30] sm:$0xff]
    %v3609 = vld [vmem:[#allocation11 + $0x38] sm:$0xff]
    %v3610 = vld [vmem:[#allocation11 + $0x40] sm:$0xff]
    %v3611 = vld [vmem:[#allocation11 + $0x48] sm:$0xff]
    %v3612 = vld [vmem:[#allocation11 + $0x50] sm:$0xff]
    %v3613 = vld [vmem:[#allocation11 + $0x58] sm:$0xff]
    %v3614 = vld [vmem:[#allocation11 + $0x60] sm:$0xff]
    %v3615 = vld [vmem:[#allocation11 + $0x68] sm:$0xff]
    %v3616 = vld [vmem:[#allocation11 + $0x70] sm:$0xff]
    %v3617 = vld [vmem:[#allocation11 + $0x78] sm:$0xff]
    %v3618 = vld [vmem:[#allocation11 + $0x80] sm:$0xff]
    %v3619 = vld [vmem:[#allocation11 + $0x88] sm:$0xff]
    %v3620 = vld [vmem:[#allocation11 + $0x90] sm:$0xff]
    %v3621 = vld [vmem:[#allocation11 + $0x98] sm:$0xff]
    %v3622 = vld [vmem:[#allocation11 + $0xa0] sm:$0xff]
    %v3623 = vld [vmem:[#allocation11 + $0xa8] sm:$0xff]
    %v3624 = vld [vmem:[#allocation11 + $0xb0] sm:$0xff]
    %v3625 = vld [vmem:[#allocation11 + $0xb8] sm:$0xff]
    %v3626 = vld [vmem:[#allocation11 + $0xc0] sm:$0xff]
    %v3627 = vld [vmem:[#allocation11 + $0xc8] sm:$0xff]
    %v3628 = vld [vmem:[#allocation11 + $0xd0] sm:$0xff]
    %v3629 = vld [vmem:[#allocation11 + $0xd8] sm:$0xff]
    %v3630 = vld [vmem:[#allocation11 + $0xe0] sm:$0xff]
    %v3631 = vld [vmem:[#allocation11 + $0xe8] sm:$0xff]
    %v3632 = vld [vmem:[#allocation11 + $0xf0] sm:$0xff]
    %v3633 = vld [vmem:[#allocation11 + $0xf8] sm:$0xff]
    %v3642 = vunpack.c.l.b16 %v3594
    %v3643 = vunpack.c.l.b16 %v3595
    %v3644 = vunpack.c.l.b16 %v3596
    %v3645 = vunpack.c.l.b16 %v3597
    %v3646 = vunpack.c.l.b16 %v3598
    %v3647 = vunpack.c.l.b16 %v3599
    %v3648 = vunpack.c.l.b16 %v3600
    %v3649 = vunpack.c.l.b16 %v3601
    %v3650 = vrot.slane %v3643, 7
    %v3651 = vsel %vm1096, %v3650, %v3642
    %v3652 = vrot.slane %v3644, 6
    %v3653 = vsel %vm1099, %v3652, %v3651
    %v3654 = vrot.slane %v3645, 5
    %v3655 = vsel %vm1102, %v3654, %v3653
    %v3656 = vrot.slane %v3646, 4
    %v3657 = vsel %vm1105, %v3656, %v3655
    %v3658 = vrot.slane %v3647, 3
    %v3659 = vsel %vm1108, %v3658, %v3657
    %v3660 = vrot.slane %v3648, 2
    %v3661 = vsel %vm1111, %v3660, %v3659
    %v3662 = vrot.slane %v3649, 1
    %v3663 = vsel %vm1114, %v3662, %v3661
    %v3664 = vpack.c.b16 %v3663, %v3663
    %v3698 = vunpack.c.l.b16 %v3602
    %v3699 = vunpack.c.h.b16 %v3602
    %v3700 = vunpack.c.l.b16 %v3603
    %v3701 = vunpack.c.h.b16 %v3603
    %v3702 = vunpack.c.l.b16 %v3604
    %v3703 = vunpack.c.h.b16 %v3604
    %v3704 = vunpack.c.l.b16 %v3605
    %v3705 = vunpack.c.h.b16 %v3605
    %v3706 = vunpack.c.l.b16 %v3606
    %v3707 = vunpack.c.h.b16 %v3606
    %v3708 = vunpack.c.l.b16 %v3607
    %v3709 = vunpack.c.h.b16 %v3607
    %v3710 = vunpack.c.l.b16 %v3608
    %v3711 = vunpack.c.h.b16 %v3608
    %v3712 = vunpack.c.l.b16 %v3609
    %v3713 = vunpack.c.h.b16 %v3609
    %v3714 = vunpack.c.l.b16 %v3610
    %v3715 = vunpack.c.h.b16 %v3610
    %v3716 = vunpack.c.l.b16 %v3611
    %v3717 = vunpack.c.h.b16 %v3611
    %v3718 = vunpack.c.l.b16 %v3612
    %v3719 = vunpack.c.h.b16 %v3612
    %v3720 = vunpack.c.l.b16 %v3613
    %v3721 = vunpack.c.h.b16 %v3613
    %v3722 = vunpack.c.l.b16 %v3614
    %v3723 = vunpack.c.h.b16 %v3614
    %v3724 = vunpack.c.l.b16 %v3615
    %v3725 = vunpack.c.h.b16 %v3615
    %v3726 = vunpack.c.l.b16 %v3616
    %v3727 = vunpack.c.h.b16 %v3616
    %v3728 = vunpack.c.l.b16 %v3617
    %v3729 = vunpack.c.h.b16 %v3617
    %v3730 = vunpack.c.l.b16 %v3618
    %v3731 = vunpack.c.h.b16 %v3618
    %v3732 = vunpack.c.l.b16 %v3619
    %v3733 = vunpack.c.h.b16 %v3619
    %v3734 = vunpack.c.l.b16 %v3620
    %v3735 = vunpack.c.h.b16 %v3620
    %v3736 = vunpack.c.l.b16 %v3621
    %v3737 = vunpack.c.h.b16 %v3621
    %v3738 = vunpack.c.l.b16 %v3622
    %v3739 = vunpack.c.h.b16 %v3622
    %v3740 = vunpack.c.l.b16 %v3623
    %v3741 = vunpack.c.h.b16 %v3623
    %v3742 = vunpack.c.l.b16 %v3624
    %v3743 = vunpack.c.h.b16 %v3624
    %v3744 = vunpack.c.l.b16 %v3625
    %v3745 = vunpack.c.h.b16 %v3625
    %v3746 = vunpack.c.l.b16 %v3626
    %v3747 = vunpack.c.h.b16 %v3626
    %v3748 = vunpack.c.l.b16 %v3627
    %v3749 = vunpack.c.h.b16 %v3627
    %v3750 = vunpack.c.l.b16 %v3628
    %v3751 = vunpack.c.h.b16 %v3628
    %v3752 = vunpack.c.l.b16 %v3629
    %v3753 = vunpack.c.h.b16 %v3629
    %v3754 = vunpack.c.l.b16 %v3630
    %v3755 = vunpack.c.h.b16 %v3630
    %v3756 = vunpack.c.l.b16 %v3631
    %v3757 = vunpack.c.h.b16 %v3631
    %v3758 = vunpack.c.l.b16 %v3632
    %v3759 = vunpack.c.h.b16 %v3632
    %v3760 = vunpack.c.l.b16 %v3633
    %v3761 = vunpack.c.h.b16 %v3633
    %v3762 = vpack.c.b16 %v3702, %v3698
    %v3763 = vpack.c.b16 %v3703, %v3699
    %v3764 = vpack.c.b16 %v3704, %v3700
    %v3765 = vpack.c.b16 %v3705, %v3701
    %v3766 = vpack.c.b16 %v3710, %v3706
    %v3767 = vpack.c.b16 %v3711, %v3707
    %v3768 = vpack.c.b16 %v3712, %v3708
    %v3769 = vpack.c.b16 %v3713, %v3709
    %v3770 = vpack.c.b16 %v3718, %v3714
    %v3771 = vpack.c.b16 %v3719, %v3715
    %v3772 = vpack.c.b16 %v3720, %v3716
    %v3773 = vpack.c.b16 %v3721, %v3717
    %v3774 = vpack.c.b16 %v3726, %v3722
    %v3775 = vpack.c.b16 %v3727, %v3723
    %v3776 = vpack.c.b16 %v3728, %v3724
    %v3777 = vpack.c.b16 %v3729, %v3725
    %v3778 = vpack.c.b16 %v3734, %v3730
    %v3779 = vpack.c.b16 %v3735, %v3731
    %v3780 = vpack.c.b16 %v3736, %v3732
    %v3781 = vpack.c.b16 %v3737, %v3733
    %v3782 = vpack.c.b16 %v3742, %v3738
    %v3783 = vpack.c.b16 %v3743, %v3739
    %v3784 = vpack.c.b16 %v3744, %v3740
    %v3785 = vpack.c.b16 %v3745, %v3741
    %v3786 = vpack.c.b16 %v3750, %v3746
    %v3787 = vpack.c.b16 %v3751, %v3747
    %v3788 = vpack.c.b16 %v3752, %v3748
    %v3789 = vpack.c.b16 %v3753, %v3749
    %v3790 = vpack.c.b16 %v3758, %v3754
    %v3791 = vpack.c.b16 %v3759, %v3755
    %v3792 = vpack.c.b16 %v3760, %v3756
    %v3793 = vpack.c.b16 %v3761, %v3757
    %3826 = vmatprep.subr.bf16.mxu0 %v3791
    %3827 = vmatpush1.bf16.msra.mxu0 %v3790
    %3828 = vmatprep.subr.bf16.mxu0 %v3787
    %3829 = vmatpush1.bf16.msra.mxu0 %v3786
    %3830 = vmatprep.subr.bf16.mxu0 %v3783
    %3831 = vmatpush1.bf16.msra.mxu0 %v3782
    %3832 = vmatprep.subr.bf16.mxu0 %v3779
    %3833 = vmatpush1.bf16.msra.mxu0 %v3778
    %3834 = vmatprep.subr.bf16.mxu0 %v3775
    %3835 = vmatpush1.bf16.msra.mxu0 %v3774
    %3836 = vmatprep.subr.bf16.mxu0 %v3771
    %3837 = vmatpush1.bf16.msra.mxu0 %v3770
    %3838 = vmatprep.subr.bf16.mxu0 %v3767
    %3839 = vmatpush1.bf16.msra.mxu0 %v3766
    %3840 = vmatprep.subr.bf16.mxu0 %v3763
    %3841 = vmatpush1.bf16.msra.mxu0 %v3762
    %3842 = vmatprep.subr.bf16.mxu0 0
    %3843 = vmatpush2.bf16.msra.mxu0 0
    %3844 = vmatprep.subr.bf16.mxu0 0
    %3845 = vmatpush2.bf16.msra.mxu0 0
    %3846 = vmatprep.subr.bf16.mxu0 0
    %3847 = vmatpush2.bf16.msra.mxu0 0
    %3848 = vmatprep.subr.bf16.mxu0 0
    %3849 = vmatpush2.bf16.msra.mxu0 0
    %3850 = vmatprep.subr.bf16.mxu0 0
    %3851 = vmatpush2.bf16.msra.mxu0 0
    %3852 = vmatprep.subr.bf16.mxu0 0
    %3853 = vmatpush2.bf16.msra.mxu0 0
    %3854 = vmatprep.subr.bf16.mxu0 0
    %3855 = vmatpush2.bf16.msra.mxu0 0
    %3856 = vmatprep.subr.bf16.mxu0 0
    %3857 = vmatpush2.bf16.msra.mxu0 0
    %3858 = vmatprep.mubr.bf16.mxu0 0
    %3859 = vmatmul.mubr.bf16.gmra.mxu0 %v3664
    %v3860 = vpop.f32.mrf.mxu0
    %v3861 = vadd.f32 0.0, %v3860
    %v3862 = vpop.f32.mrf.mxu0
    %v3863 = vadd.f32 0.0, %v3862
    %v3864 = vpop.f32.mrf.mxu0
    %v3865 = vpop.f32.mrf.mxu0
    %3866 = vdwg.mxu0
    %3867 = vmatprep.subr.bf16.mxu0 %v3793
    %3868 = vmatpush1.bf16.msra.mxu0 %v3792
    %3869 = vmatprep.subr.bf16.mxu0 %v3789
    %3870 = vmatpush1.bf16.msra.mxu0 %v3788
    %3871 = vmatprep.subr.bf16.mxu0 %v3785
    %3872 = vmatpush1.bf16.msra.mxu0 %v3784
    %3873 = vmatprep.subr.bf16.mxu0 %v3781
    %3874 = vmatpush1.bf16.msra.mxu0 %v3780
    %3875 = vmatprep.subr.bf16.mxu0 %v3777
    %3876 = vmatpush1.bf16.msra.mxu0 %v3776
    %3877 = vmatprep.subr.bf16.mxu0 %v3773
    %3878 = vmatpush1.bf16.msra.mxu0 %v3772
    %3879 = vmatprep.subr.bf16.mxu0 %v3769
    %3880 = vmatpush1.bf16.msra.mxu0 %v3768
    %3881 = vmatprep.subr.bf16.mxu0 %v3765
    %3882 = vmatpush1.bf16.msra.mxu0 %v3764
    %3883 = vmatprep.subr.bf16.mxu0 0
    %3884 = vmatpush2.bf16.msra.mxu0 0
    %3885 = vmatprep.subr.bf16.mxu0 0
    %3886 = vmatpush2.bf16.msra.mxu0 0
    %3887 = vmatprep.subr.bf16.mxu0 0
    %3888 = vmatpush2.bf16.msra.mxu0 0
    %3889 = vmatprep.subr.bf16.mxu0 0
    %3890 = vmatpush2.bf16.msra.mxu0 0
    %3891 = vmatprep.subr.bf16.mxu0 0
    %3892 = vmatpush2.bf16.msra.mxu0 0
    %3893 = vmatprep.subr.bf16.mxu0 0
    %3894 = vmatpush2.bf16.msra.mxu0 0
    %3895 = vmatprep.subr.bf16.mxu0 0
    %3896 = vmatpush2.bf16.msra.mxu0 0
    %3897 = vmatprep.subr.bf16.mxu0 0
    %3898 = vmatpush2.bf16.msra.mxu0 0
    %3899 = vmatprep.mubr.bf16.mxu0 0
    %3900 = vmatmul.mubr.bf16.gmra.mxu0 %v3664
    %v3901 = vpop.f32.mrf.mxu0
    %v3902 = vadd.f32 0.0, %v3901
    %v3903 = vpop.f32.mrf.mxu0
    %v3904 = vadd.f32 0.0, %v3903
    %v3905 = vpop.f32.mrf.mxu0
    %v3906 = vpop.f32.mrf.mxu0
    %3907 = vdwg.mxu0
    %v3912 = vcombine.low %v3861, %v3863
    %v3913 = vcombine.high %v3861, %v3863
    %v3914 = vcombine.low %v3902, %v3904
    %v3915 = vcombine.high %v3902, %v3904
    %v3917 = vunpack.c.l.s4 1966171168
    %v3918 = vunpack.c.0.s8 %v3917
    %v3919 = vlaneseq
    %v3920 = vshrl.u32 %v3919, 7
    %v3921 = vsub.s32 %v3918, %v3920
    %v3922 = vrot.slane %v3912, %v3921
    %v3924 = vunpack.c.l.s4 1966171168
    %v3925 = vunpack.c.0.s8 %v3924
    %v3926 = vlaneseq
    %v3927 = vshrl.u32 %v3926, 7
    %v3928 = vsub.s32 %v3925, %v3927
    %v3929 = vrot.slane %v3913, %v3928
    %v3931 = vunpack.c.l.s4 1966171168
    %v3932 = vunpack.c.0.s8 %v3931
    %v3933 = vlaneseq
    %v3934 = vshrl.u32 %v3933, 7
    %v3935 = vsub.s32 %v3932, %v3934
    %v3936 = vrot.slane %v3914, %v3935
    %v3938 = vunpack.c.l.s4 1966171168
    %v3939 = vunpack.c.0.s8 %v3938
    %v3940 = vlaneseq
    %v3941 = vshrl.u32 %v3940, 7
    %v3942 = vsub.s32 %v3939, %v3941
    %v3943 = vrot.slane %v3915, %v3942
    %v3944 = vcombine.low %v3922, %v3936
    %v3945 = vcombine.high %v3922, %v3936
    %v3946 = vcombine.low %v3929, %v3943
    %v3947 = vcombine.high %v3929, %v3943
    %v3949 = vunpack.c.l.s4 1966171168
    %v3950 = vunpack.c.0.s8 %v3949
    %v3951 = vlaneseq
    %v3952 = vshrl.u32 %v3951, 7
    %v3953 = vsub.s32 %v3950, %v3952
    %v3954 = vrot.slane %v3944, %v3953
    %v3956 = vunpack.c.l.s4 1966171168
    %v3957 = vunpack.c.0.s8 %v3956
    %v3958 = vlaneseq
    %v3959 = vshrl.u32 %v3958, 7
    %v3960 = vsub.s32 %v3957, %v3959
    %v3961 = vrot.slane %v3946, %v3960
    %v3963 = vunpack.c.l.s4 1966171168
    %v3964 = vunpack.c.0.s8 %v3963
    %v3965 = vlaneseq
    %v3966 = vshrl.u32 %v3965, 7
    %v3967 = vsub.s32 %v3964, %v3966
    %v3968 = vrot.slane %v3945, %v3967
    %v3970 = vunpack.c.l.s4 1966171168
    %v3971 = vunpack.c.0.s8 %v3970
    %v3972 = vlaneseq
    %v3973 = vshrl.u32 %v3972, 7
    %v3974 = vsub.s32 %v3971, %v3973
    %v3975 = vrot.slane %v3947, %v3974
    %v3976 = vcombine.high %v3954, %v3954
    %v3977 = vcombine.high %v3961, %v3961
    %v3978 = vcombine.high %v3968, %v3968
    %v3979 = vcombine.high %v3975, %v3975
    %v3988 = vadd.f32 %v3579, %v3954
    %v3989 = vadd.f32 %v3581, %v3968
    %v3990 = vadd.f32 %v3583, %v3976
    %v3991 = vadd.f32 %v3585, %v3978
    %v3992 = vadd.f32 %v3587, %v3961
    %v3993 = vadd.f32 %v3589, %v3975
    %v3994 = vadd.f32 %v3591, %v3977
    %v3995 = vadd.f32 %v3593, %v3979
    %v3996 = vxor.u32 %v3988, 2147483648
    %v3997 = vxor.u32 %v3989, 2147483648
    %v3998 = vxor.u32 %v3990, 2147483648
    %v3999 = vxor.u32 %v3991, 2147483648
    %v4000 = vxor.u32 %v3992, 2147483648
    %v4001 = vxor.u32 %v3993, 2147483648
    %v4002 = vxor.u32 %v3994, 2147483648
    %v4003 = vxor.u32 %v3995, 2147483648
    %v4004 = vmul.f32 %v3996, 1.442695
    %v4005 = vpow.pop %v4004
    %v4006 = vmul.f32 %v3997, 1.442695
    %v4007 = vpow.pop %v4006
    %v4008 = vmul.f32 %v3998, 1.442695
    %v4009 = vpow.pop %v4008
    %v4010 = vmul.f32 %v3999, 1.442695
    %v4011 = vpow.pop %v4010
    %v4012 = vmul.f32 %v4000, 1.442695
    %v4013 = vpow.pop %v4012
    %v4014 = vmul.f32 %v4001, 1.442695
    %v4015 = vpow.pop %v4014
    %v4016 = vmul.f32 %v4002, 1.442695
    %v4017 = vpow.pop %v4016
    %v4018 = vmul.f32 %v4003, 1.442695
    %v4019 = vpow.pop %v4018
    %v4020 = vadd.f32 %v4005, 1.0
    %v4021 = vadd.f32 %v4007, 1.0
    %v4022 = vadd.f32 %v4009, 1.0
    %v4023 = vadd.f32 %v4011, 1.0
    %v4024 = vadd.f32 %v4013, 1.0
    %v4025 = vadd.f32 %v4015, 1.0
    %v4026 = vadd.f32 %v4017, 1.0
    %v4027 = vadd.f32 %v4019, 1.0
    %v4028 = vrcp.pop %v4020
    %v4029 = vmul.f32 1.0, %v4028
    %v4030 = vrcp.pop %v4021
    %v4031 = vmul.f32 1.0, %v4030
    %v4032 = vrcp.pop %v4022
    %v4033 = vmul.f32 1.0, %v4032
    %v4034 = vrcp.pop %v4023
    %v4035 = vmul.f32 1.0, %v4034
    %v4036 = vrcp.pop %v4024
    %v4037 = vmul.f32 1.0, %v4036
    %v4038 = vrcp.pop %v4025
    %v4039 = vmul.f32 1.0, %v4038
    %v4040 = vrcp.pop %v4026
    %v4041 = vmul.f32 1.0, %v4040
    %v4042 = vrcp.pop %v4027
    %v4043 = vmul.f32 1.0, %v4042
    %v4052 = vrot.slane %v3988, 3
    %v4053 = vrot.slane %v3989, 3
    %v4054 = vrot.slane %v3990, 3
    %v4055 = vrot.slane %v3991, 3
    %v4056 = vrot.slane %v3992, 3
    %v4057 = vrot.slane %v3993, 3
    %v4058 = vrot.slane %v3994, 3
    %v4059 = vrot.slane %v3995, 3
    %v4068 = vtanh.pop %v4052
    %v4069 = vtanh.pop %v4053
    %v4070 = vtanh.pop %v4054
    %v4071 = vtanh.pop %v4055
    %v4072 = vtanh.pop %v4056
    %v4073 = vtanh.pop %v4057
    %v4074 = vtanh.pop %v4058
    %v4075 = vtanh.pop %v4059
    %v4084 = vrot.slane %v4029, 1
    %v4085 = vrot.slane %v4031, 1
    %v4086 = vrot.slane %v4033, 1
    %v4087 = vrot.slane %v4035, 1
    %v4088 = vrot.slane %v4037, 1
    %v4089 = vrot.slane %v4039, 1
    %v4090 = vrot.slane %v4041, 1
    %v4091 = vrot.slane %v4043, 1
    %v4100 = vmul.f32 %v4084, %v3479
    %v4101 = vmul.f32 %v4085, %v3480
    %v4102 = vmul.f32 %v4086, %v3481
    %v4103 = vmul.f32 %v4087, %v3482
    %v4104 = vmul.f32 %v4088, %v3483
    %v4105 = vmul.f32 %v4089, %v3484
    %v4106 = vmul.f32 %v4090, %v3485
    %v4107 = vmul.f32 %v4091, %v3486
    %v4108 = vmul.f32 %v4029, %v4068
    %v4109 = vmul.f32 %v4031, %v4069
    %v4110 = vmul.f32 %v4033, %v4070
    %v4111 = vmul.f32 %v4035, %v4071
    %v4112 = vmul.f32 %v4037, %v4072
    %v4113 = vmul.f32 %v4039, %v4073
    %v4114 = vmul.f32 %v4041, %v4074
    %v4115 = vmul.f32 %v4043, %v4075
    %v4116 = vadd.f32 %v4100, %v4108
    %v4117 = vadd.f32 %v4101, %v4109
    %v4118 = vadd.f32 %v4102, %v4110
    %v4119 = vadd.f32 %v4103, %v4111
    %v4120 = vadd.f32 %v4104, %v4112
    %v4121 = vadd.f32 %v4105, %v4113
    %v4122 = vadd.f32 %v4106, %v4114
    %v4123 = vadd.f32 %v4107, %v4115
    %v4124 = vtanh.pop %v4116
    %v4125 = vtanh.pop %v4117
    %v4126 = vtanh.pop %v4118
    %v4127 = vtanh.pop %v4119
    %v4128 = vtanh.pop %v4120
    %v4129 = vtanh.pop %v4121
    %v4130 = vtanh.pop %v4122
    %v4131 = vtanh.pop %v4123
    %v4132 = vrot.slane %v4029, 2
    %v4133 = vrot.slane %v4031, 2
    %v4134 = vrot.slane %v4033, 2
    %v4135 = vrot.slane %v4035, 2
    %v4136 = vrot.slane %v4037, 2
    %v4137 = vrot.slane %v4039, 2
    %v4138 = vrot.slane %v4041, 2
    %v4139 = vrot.slane %v4043, 2
    %v4148 = vmul.f32 %v4132, %v4124
    %v4149 = vmul.f32 %v4133, %v4125
    %v4150 = vmul.f32 %v4134, %v4126
    %v4151 = vmul.f32 %v4135, %v4127
    %v4152 = vmul.f32 %v4136, %v4128
    %v4153 = vmul.f32 %v4137, %v4129
    %v4154 = vmul.f32 %v4138, %v4130
    %v4155 = vmul.f32 %v4139, %v4131
    %v4164 = vcombine.low %v4148, %v4149
    %v4165 = vcombine.low %v4150, %v4151
    %v4166 = vcombine.low %v4152, %v4153
    %v4167 = vcombine.low %v4154, %v4155
    %v4169 = vunpack.c.l.s4 1966171168
    %v4170 = vunpack.c.0.s8 %v4169
    %v4171 = vlaneseq
    %v4172 = vshrl.u32 %v4171, 7
    %v4173 = vsub.s32 %v4170, %v4172
    %v4174 = vrot.slane %v4164, %v4173
    %v4176 = vunpack.c.l.s4 1966171168
    %v4177 = vunpack.c.0.s8 %v4176
    %v4178 = vlaneseq
    %v4179 = vshrl.u32 %v4178, 7
    %v4180 = vsub.s32 %v4177, %v4179
    %v4181 = vrot.slane %v4165, %v4180
    %v4183 = vunpack.c.l.s4 1966171168
    %v4184 = vunpack.c.0.s8 %v4183
    %v4185 = vlaneseq
    %v4186 = vshrl.u32 %v4185, 7
    %v4187 = vsub.s32 %v4184, %v4186
    %v4188 = vrot.slane %v4166, %v4187
    %v4190 = vunpack.c.l.s4 1966171168
    %v4191 = vunpack.c.0.s8 %v4190
    %v4192 = vlaneseq
    %v4193 = vshrl.u32 %v4192, 7
    %v4194 = vsub.s32 %v4191, %v4193
    %v4195 = vrot.slane %v4167, %v4194
    %v4196 = vcombine.low %v4174, %v4181
    %v4197 = vcombine.low %v4188, %v4195
    %v4199 = vunpack.c.l.s4 1966171168
    %v4200 = vunpack.c.0.s8 %v4199
    %v4201 = vlaneseq
    %v4202 = vshrl.u32 %v4201, 7
    %v4203 = vsub.s32 %v4200, %v4202
    %v4204 = vrot.slane %v4196, %v4203
    %v4206 = vunpack.c.l.s4 1966171168
    %v4207 = vunpack.c.0.s8 %v4206
    %v4208 = vlaneseq
    %v4209 = vshrl.u32 %v4208, 7
    %v4210 = vsub.s32 %v4207, %v4209
    %v4211 = vrot.slane %v4197, %v4210
    %v4212 = vcombine.low %v4204, %v4211
    %4214 = vst [vmem:[#allocation14 + $0x28] sm:$0xff] %v4212
    %s4215 = scalar_lea.vmem [#allocation2], 6
    %v4216 = vld [vmem:[%s4215] ss:$8 sm:$0xf]
    %s4217 = scalar_lea.vmem [#allocation2], 38
    %v4218 = vld [vmem:[%s4217] ss:$8 sm:$0xf]
    %s4219 = scalar_lea.vmem [#allocation2], 70
    %v4220 = vld [vmem:[%s4219] ss:$8 sm:$0xf]
    %s4221 = scalar_lea.vmem [#allocation2], 102
    %v4222 = vld [vmem:[%s4221] ss:$8 sm:$0xf]
    %s4223 = scalar_lea.vmem [#allocation2], 134
    %v4224 = vld [vmem:[%s4223] ss:$8 sm:$0xf]
    %s4225 = scalar_lea.vmem [#allocation2], 166
    %v4226 = vld [vmem:[%s4225] ss:$8 sm:$0xf]
    %s4227 = scalar_lea.vmem [#allocation2], 198
    %v4228 = vld [vmem:[%s4227] ss:$8 sm:$0xf]
    %s4229 = scalar_lea.vmem [#allocation2], 230
    %v4230 = vld [vmem:[%s4229] ss:$8 sm:$0xf]
    %v4231 = vpack.c.bf16 %v4148, %v4148
    %v4232 = vpack.c.bf16 %v4149, %v4149
    %v4233 = vpack.c.bf16 %v4150, %v4150
    %v4234 = vpack.c.bf16 %v4151, %v4151
    %v4235 = vpack.c.bf16 %v4152, %v4152
    %v4236 = vpack.c.bf16 %v4153, %v4153
    %v4237 = vpack.c.bf16 %v4154, %v4154
    %v4238 = vpack.c.bf16 %v4155, %v4155
    %v4239 = vld [vmem:[#allocation11] sm:$0xff]
    %v4240 = vld [vmem:[#allocation11 + $0x8] sm:$0xff]
    %v4241 = vld [vmem:[#allocation11 + $0x10] sm:$0xff]
    %v4242 = vld [vmem:[#allocation11 + $0x18] sm:$0xff]
    %v4243 = vld [vmem:[#allocation11 + $0x20] sm:$0xff]
    %v4244 = vld [vmem:[#allocation11 + $0x28] sm:$0xff]
    %v4245 = vld [vmem:[#allocation11 + $0x30] sm:$0xff]
    %v4246 = vld [vmem:[#allocation11 + $0x38] sm:$0xff]
    %v4247 = vld [vmem:[#allocation11 + $0x40] sm:$0xff]
    %v4248 = vld [vmem:[#allocation11 + $0x48] sm:$0xff]
    %v4249 = vld [vmem:[#allocation11 + $0x50] sm:$0xff]
    %v4250 = vld [vmem:[#allocation11 + $0x58] sm:$0xff]
    %v4251 = vld [vmem:[#allocation11 + $0x60] sm:$0xff]
    %v4252 = vld [vmem:[#allocation11 + $0x68] sm:$0xff]
    %v4253 = vld [vmem:[#allocation11 + $0x70] sm:$0xff]
    %v4254 = vld [vmem:[#allocation11 + $0x78] sm:$0xff]
    %v4255 = vld [vmem:[#allocation11 + $0x80] sm:$0xff]
    %v4256 = vld [vmem:[#allocation11 + $0x88] sm:$0xff]
    %v4257 = vld [vmem:[#allocation11 + $0x90] sm:$0xff]
    %v4258 = vld [vmem:[#allocation11 + $0x98] sm:$0xff]
    %v4259 = vld [vmem:[#allocation11 + $0xa0] sm:$0xff]
    %v4260 = vld [vmem:[#allocation11 + $0xa8] sm:$0xff]
    %v4261 = vld [vmem:[#allocation11 + $0xb0] sm:$0xff]
    %v4262 = vld [vmem:[#allocation11 + $0xb8] sm:$0xff]
    %v4263 = vld [vmem:[#allocation11 + $0xc0] sm:$0xff]
    %v4264 = vld [vmem:[#allocation11 + $0xc8] sm:$0xff]
    %v4265 = vld [vmem:[#allocation11 + $0xd0] sm:$0xff]
    %v4266 = vld [vmem:[#allocation11 + $0xd8] sm:$0xff]
    %v4267 = vld [vmem:[#allocation11 + $0xe0] sm:$0xff]
    %v4268 = vld [vmem:[#allocation11 + $0xe8] sm:$0xff]
    %v4269 = vld [vmem:[#allocation11 + $0xf0] sm:$0xff]
    %v4270 = vld [vmem:[#allocation11 + $0xf8] sm:$0xff]
    %v4279 = vunpack.c.l.b16 %v4231
    %v4280 = vunpack.c.l.b16 %v4232
    %v4281 = vunpack.c.l.b16 %v4233
    %v4282 = vunpack.c.l.b16 %v4234
    %v4283 = vunpack.c.l.b16 %v4235
    %v4284 = vunpack.c.l.b16 %v4236
    %v4285 = vunpack.c.l.b16 %v4237
    %v4286 = vunpack.c.l.b16 %v4238
    %v4287 = vrot.slane %v4280, 7
    %v4288 = vsel %vm1096, %v4287, %v4279
    %v4289 = vrot.slane %v4281, 6
    %v4290 = vsel %vm1099, %v4289, %v4288
    %v4291 = vrot.slane %v4282, 5
    %v4292 = vsel %vm1102, %v4291, %v4290
    %v4293 = vrot.slane %v4283, 4
    %v4294 = vsel %vm1105, %v4293, %v4292
    %v4295 = vrot.slane %v4284, 3
    %v4296 = vsel %vm1108, %v4295, %v4294
    %v4297 = vrot.slane %v4285, 2
    %v4298 = vsel %vm1111, %v4297, %v4296
    %v4299 = vrot.slane %v4286, 1
    %v4300 = vsel %vm1114, %v4299, %v4298
    %v4301 = vpack.c.b16 %v4300, %v4300
    %v4335 = vunpack.c.l.b16 %v4239
    %v4336 = vunpack.c.h.b16 %v4239
    %v4337 = vunpack.c.l.b16 %v4240
    %v4338 = vunpack.c.h.b16 %v4240
    %v4339 = vunpack.c.l.b16 %v4241
    %v4340 = vunpack.c.h.b16 %v4241
    %v4341 = vunpack.c.l.b16 %v4242
    %v4342 = vunpack.c.h.b16 %v4242
    %v4343 = vunpack.c.l.b16 %v4243
    %v4344 = vunpack.c.h.b16 %v4243
    %v4345 = vunpack.c.l.b16 %v4244
    %v4346 = vunpack.c.h.b16 %v4244
    %v4347 = vunpack.c.l.b16 %v4245
    %v4348 = vunpack.c.h.b16 %v4245
    %v4349 = vunpack.c.l.b16 %v4246
    %v4350 = vunpack.c.h.b16 %v4246
    %v4351 = vunpack.c.l.b16 %v4247
    %v4352 = vunpack.c.h.b16 %v4247
    %v4353 = vunpack.c.l.b16 %v4248
    %v4354 = vunpack.c.h.b16 %v4248
    %v4355 = vunpack.c.l.b16 %v4249
    %v4356 = vunpack.c.h.b16 %v4249
    %v4357 = vunpack.c.l.b16 %v4250
    %v4358 = vunpack.c.h.b16 %v4250
    %v4359 = vunpack.c.l.b16 %v4251
    %v4360 = vunpack.c.h.b16 %v4251
    %v4361 = vunpack.c.l.b16 %v4252
    %v4362 = vunpack.c.h.b16 %v4252
    %v4363 = vunpack.c.l.b16 %v4253
    %v4364 = vunpack.c.h.b16 %v4253
    %v4365 = vunpack.c.l.b16 %v4254
    %v4366 = vunpack.c.h.b16 %v4254
    %v4367 = vunpack.c.l.b16 %v4255
    %v4368 = vunpack.c.h.b16 %v4255
    %v4369 = vunpack.c.l.b16 %v4256
    %v4370 = vunpack.c.h.b16 %v4256
    %v4371 = vunpack.c.l.b16 %v4257
    %v4372 = vunpack.c.h.b16 %v4257
    %v4373 = vunpack.c.l.b16 %v4258
    %v4374 = vunpack.c.h.b16 %v4258
    %v4375 = vunpack.c.l.b16 %v4259
    %v4376 = vunpack.c.h.b16 %v4259
    %v4377 = vunpack.c.l.b16 %v4260
    %v4378 = vunpack.c.h.b16 %v4260
    %v4379 = vunpack.c.l.b16 %v4261
    %v4380 = vunpack.c.h.b16 %v4261
    %v4381 = vunpack.c.l.b16 %v4262
    %v4382 = vunpack.c.h.b16 %v4262
    %v4383 = vunpack.c.l.b16 %v4263
    %v4384 = vunpack.c.h.b16 %v4263
    %v4385 = vunpack.c.l.b16 %v4264
    %v4386 = vunpack.c.h.b16 %v4264
    %v4387 = vunpack.c.l.b16 %v4265
    %v4388 = vunpack.c.h.b16 %v4265
    %v4389 = vunpack.c.l.b16 %v4266
    %v4390 = vunpack.c.h.b16 %v4266
    %v4391 = vunpack.c.l.b16 %v4267
    %v4392 = vunpack.c.h.b16 %v4267
    %v4393 = vunpack.c.l.b16 %v4268
    %v4394 = vunpack.c.h.b16 %v4268
    %v4395 = vunpack.c.l.b16 %v4269
    %v4396 = vunpack.c.h.b16 %v4269
    %v4397 = vunpack.c.l.b16 %v4270
    %v4398 = vunpack.c.h.b16 %v4270
    %v4399 = vpack.c.b16 %v4339, %v4335
    %v4400 = vpack.c.b16 %v4340, %v4336
    %v4401 = vpack.c.b16 %v4341, %v4337
    %v4402 = vpack.c.b16 %v4342, %v4338
    %v4403 = vpack.c.b16 %v4347, %v4343
    %v4404 = vpack.c.b16 %v4348, %v4344
    %v4405 = vpack.c.b16 %v4349, %v4345
    %v4406 = vpack.c.b16 %v4350, %v4346
    %v4407 = vpack.c.b16 %v4355, %v4351
    %v4408 = vpack.c.b16 %v4356, %v4352
    %v4409 = vpack.c.b16 %v4357, %v4353
    %v4410 = vpack.c.b16 %v4358, %v4354
    %v4411 = vpack.c.b16 %v4363, %v4359
    %v4412 = vpack.c.b16 %v4364, %v4360
    %v4413 = vpack.c.b16 %v4365, %v4361
    %v4414 = vpack.c.b16 %v4366, %v4362
    %v4415 = vpack.c.b16 %v4371, %v4367
    %v4416 = vpack.c.b16 %v4372, %v4368
    %v4417 = vpack.c.b16 %v4373, %v4369
    %v4418 = vpack.c.b16 %v4374, %v4370
    %v4419 = vpack.c.b16 %v4379, %v4375
    %v4420 = vpack.c.b16 %v4380, %v4376
    %v4421 = vpack.c.b16 %v4381, %v4377
    %v4422 = vpack.c.b16 %v4382, %v4378
    %v4423 = vpack.c.b16 %v4387, %v4383
    %v4424 = vpack.c.b16 %v4388, %v4384
    %v4425 = vpack.c.b16 %v4389, %v4385
    %v4426 = vpack.c.b16 %v4390, %v4386
    %v4427 = vpack.c.b16 %v4395, %v4391
    %v4428 = vpack.c.b16 %v4396, %v4392
    %v4429 = vpack.c.b16 %v4397, %v4393
    %v4430 = vpack.c.b16 %v4398, %v4394
    %4463 = vmatprep.subr.bf16.mxu0 %v4428
    %4464 = vmatpush1.bf16.msra.mxu0 %v4427
    %4465 = vmatprep.subr.bf16.mxu0 %v4424
    %4466 = vmatpush1.bf16.msra.mxu0 %v4423
    %4467 = vmatprep.subr.bf16.mxu0 %v4420
    %4468 = vmatpush1.bf16.msra.mxu0 %v4419
    %4469 = vmatprep.subr.bf16.mxu0 %v4416
    %4470 = vmatpush1.bf16.msra.mxu0 %v4415
    %4471 = vmatprep.subr.bf16.mxu0 %v4412
    %4472 = vmatpush1.bf16.msra.mxu0 %v4411
    %4473 = vmatprep.subr.bf16.mxu0 %v4408
    %4474 = vmatpush1.bf16.msra.mxu0 %v4407
    %4475 = vmatprep.subr.bf16.mxu0 %v4404
    %4476 = vmatpush1.bf16.msra.mxu0 %v4403
    %4477 = vmatprep.subr.bf16.mxu0 %v4400
    %4478 = vmatpush1.bf16.msra.mxu0 %v4399
    %4479 = vmatprep.subr.bf16.mxu0 0
    %4480 = vmatpush2.bf16.msra.mxu0 0
    %4481 = vmatprep.subr.bf16.mxu0 0
    %4482 = vmatpush2.bf16.msra.mxu0 0
    %4483 = vmatprep.subr.bf16.mxu0 0
    %4484 = vmatpush2.bf16.msra.mxu0 0
    %4485 = vmatprep.subr.bf16.mxu0 0
    %4486 = vmatpush2.bf16.msra.mxu0 0
    %4487 = vmatprep.subr.bf16.mxu0 0
    %4488 = vmatpush2.bf16.msra.mxu0 0
    %4489 = vmatprep.subr.bf16.mxu0 0
    %4490 = vmatpush2.bf16.msra.mxu0 0
    %4491 = vmatprep.subr.bf16.mxu0 0
    %4492 = vmatpush2.bf16.msra.mxu0 0
    %4493 = vmatprep.subr.bf16.mxu0 0
    %4494 = vmatpush2.bf16.msra.mxu0 0
    %4495 = vmatprep.mubr.bf16.mxu0 0
    %4496 = vmatmul.mubr.bf16.gmra.mxu0 %v4301
    %v4497 = vpop.f32.mrf.mxu0
    %v4498 = vadd.f32 0.0, %v4497
    %v4499 = vpop.f32.mrf.mxu0
    %v4500 = vadd.f32 0.0, %v4499
    %v4501 = vpop.f32.mrf.mxu0
    %v4502 = vpop.f32.mrf.mxu0
    %4503 = vdwg.mxu0
    %4504 = vmatprep.subr.bf16.mxu0 %v4430
    %4505 = vmatpush1.bf16.msra.mxu0 %v4429
    %4506 = vmatprep.subr.bf16.mxu0 %v4426
    %4507 = vmatpush1.bf16.msra.mxu0 %v4425
    %4508 = vmatprep.subr.bf16.mxu0 %v4422
    %4509 = vmatpush1.bf16.msra.mxu0 %v4421
    %4510 = vmatprep.subr.bf16.mxu0 %v4418
    %4511 = vmatpush1.bf16.msra.mxu0 %v4417
    %4512 = vmatprep.subr.bf16.mxu0 %v4414
    %4513 = vmatpush1.bf16.msra.mxu0 %v4413
    %4514 = vmatprep.subr.bf16.mxu0 %v4410
    %4515 = vmatpush1.bf16.msra.mxu0 %v4409
    %4516 = vmatprep.subr.bf16.mxu0 %v4406
    %4517 = vmatpush1.bf16.msra.mxu0 %v4405
    %4518 = vmatprep.subr.bf16.mxu0 %v4402
    %4519 = vmatpush1.bf16.msra.mxu0 %v4401
    %4520 = vmatprep.subr.bf16.mxu0 0
    %4521 = vmatpush2.bf16.msra.mxu0 0
    %4522 = vmatprep.subr.bf16.mxu0 0
    %4523 = vmatpush2.bf16.msra.mxu0 0
    %4524 = vmatprep.subr.bf16.mxu0 0
    %4525 = vmatpush2.bf16.msra.mxu0 0
    %4526 = vmatprep.subr.bf16.mxu0 0
    %4527 = vmatpush2.bf16.msra.mxu0 0
    %4528 = vmatprep.subr.bf16.mxu0 0
    %4529 = vmatpush2.bf16.msra.mxu0 0
    %4530 = vmatprep.subr.bf16.mxu0 0
    %4531 = vmatpush2.bf16.msra.mxu0 0
    %4532 = vmatprep.subr.bf16.mxu0 0
    %4533 = vmatpush2.bf16.msra.mxu0 0
    %4534 = vmatprep.subr.bf16.mxu0 0
    %4535 = vmatpush2.bf16.msra.mxu0 0
    %4536 = vmatprep.mubr.bf16.mxu0 0
    %4537 = vmatmul.mubr.bf16.gmra.mxu0 %v4301
    %v4538 = vpop.f32.mrf.mxu0
    %v4539 = vadd.f32 0.0, %v4538
    %v4540 = vpop.f32.mrf.mxu0
    %v4541 = vadd.f32 0.0, %v4540
    %v4542 = vpop.f32.mrf.mxu0
    %v4543 = vpop.f32.mrf.mxu0
    %4544 = vdwg.mxu0
    %v4549 = vcombine.low %v4498, %v4500
    %v4550 = vcombine.high %v4498, %v4500
    %v4551 = vcombine.low %v4539, %v4541
    %v4552 = vcombine.high %v4539, %v4541
    %v4554 = vunpack.c.l.s4 1966171168
    %v4555 = vunpack.c.0.s8 %v4554
    %v4556 = vlaneseq
    %v4557 = vshrl.u32 %v4556, 7
    %v4558 = vsub.s32 %v4555, %v4557
    %v4559 = vrot.slane %v4549, %v4558
    %v4561 = vunpack.c.l.s4 1966171168
    %v4562 = vunpack.c.0.s8 %v4561
    %v4563 = vlaneseq
    %v4564 = vshrl.u32 %v4563, 7
    %v4565 = vsub.s32 %v4562, %v4564
    %v4566 = vrot.slane %v4550, %v4565
    %v4568 = vunpack.c.l.s4 1966171168
    %v4569 = vunpack.c.0.s8 %v4568
    %v4570 = vlaneseq
    %v4571 = vshrl.u32 %v4570, 7
    %v4572 = vsub.s32 %v4569, %v4571
    %v4573 = vrot.slane %v4551, %v4572
    %v4575 = vunpack.c.l.s4 1966171168
    %v4576 = vunpack.c.0.s8 %v4575
    %v4577 = vlaneseq
    %v4578 = vshrl.u32 %v4577, 7
    %v4579 = vsub.s32 %v4576, %v4578
    %v4580 = vrot.slane %v4552, %v4579
    %v4581 = vcombine.low %v4559, %v4573
    %v4582 = vcombine.high %v4559, %v4573
    %v4583 = vcombine.low %v4566, %v4580
    %v4584 = vcombine.high %v4566, %v4580
    %v4586 = vunpack.c.l.s4 1966171168
    %v4587 = vunpack.c.0.s8 %v4586
    %v4588 = vlaneseq
    %v4589 = vshrl.u32 %v4588, 7
    %v4590 = vsub.s32 %v4587, %v4589
    %v4591 = vrot.slane %v4581, %v4590
    %v4593 = vunpack.c.l.s4 1966171168
    %v4594 = vunpack.c.0.s8 %v4593
    %v4595 = vlaneseq
    %v4596 = vshrl.u32 %v4595, 7
    %v4597 = vsub.s32 %v4594, %v4596
    %v4598 = vrot.slane %v4583, %v4597
    %v4600 = vunpack.c.l.s4 1966171168
    %v4601 = vunpack.c.0.s8 %v4600
    %v4602 = vlaneseq
    %v4603 = vshrl.u32 %v4602, 7
    %v4604 = vsub.s32 %v4601, %v4603
    %v4605 = vrot.slane %v4582, %v4604
    %v4607 = vunpack.c.l.s4 1966171168
    %v4608 = vunpack.c.0.s8 %v4607
    %v4609 = vlaneseq
    %v4610 = vshrl.u32 %v4609, 7
    %v4611 = vsub.s32 %v4608, %v4610
    %v4612 = vrot.slane %v4584, %v4611
    %v4613 = vcombine.high %v4591, %v4591
    %v4614 = vcombine.high %v4598, %v4598
    %v4615 = vcombine.high %v4605, %v4605
    %v4616 = vcombine.high %v4612, %v4612
    %v4625 = vadd.f32 %v4216, %v4591
    %v4626 = vadd.f32 %v4218, %v4605
    %v4627 = vadd.f32 %v4220, %v4613
    %v4628 = vadd.f32 %v4222, %v4615
    %v4629 = vadd.f32 %v4224, %v4598
    %v4630 = vadd.f32 %v4226, %v4612
    %v4631 = vadd.f32 %v4228, %v4614
    %v4632 = vadd.f32 %v4230, %v4616
    %v4633 = vxor.u32 %v4625, 2147483648
    %v4634 = vxor.u32 %v4626, 2147483648
    %v4635 = vxor.u32 %v4627, 2147483648
    %v4636 = vxor.u32 %v4628, 2147483648
    %v4637 = vxor.u32 %v4629, 2147483648
    %v4638 = vxor.u32 %v4630, 2147483648
    %v4639 = vxor.u32 %v4631, 2147483648
    %v4640 = vxor.u32 %v4632, 2147483648
    %v4641 = vmul.f32 %v4633, 1.442695
    %v4642 = vpow.pop %v4641
    %v4643 = vmul.f32 %v4634, 1.442695
    %v4644 = vpow.pop %v4643
    %v4645 = vmul.f32 %v4635, 1.442695
    %v4646 = vpow.pop %v4645
    %v4647 = vmul.f32 %v4636, 1.442695
    %v4648 = vpow.pop %v4647
    %v4649 = vmul.f32 %v4637, 1.442695
    %v4650 = vpow.pop %v4649
    %v4651 = vmul.f32 %v4638, 1.442695
    %v4652 = vpow.pop %v4651
    %v4653 = vmul.f32 %v4639, 1.442695
    %v4654 = vpow.pop %v4653
    %v4655 = vmul.f32 %v4640, 1.442695
    %v4656 = vpow.pop %v4655
    %v4657 = vadd.f32 %v4642, 1.0
    %v4658 = vadd.f32 %v4644, 1.0
    %v4659 = vadd.f32 %v4646, 1.0
    %v4660 = vadd.f32 %v4648, 1.0
    %v4661 = vadd.f32 %v4650, 1.0
    %v4662 = vadd.f32 %v4652, 1.0
    %v4663 = vadd.f32 %v4654, 1.0
    %v4664 = vadd.f32 %v4656, 1.0
    %v4665 = vrcp.pop %v4657
    %v4666 = vmul.f32 1.0, %v4665
    %v4667 = vrcp.pop %v4658
    %v4668 = vmul.f32 1.0, %v4667
    %v4669 = vrcp.pop %v4659
    %v4670 = vmul.f32 1.0, %v4669
    %v4671 = vrcp.pop %v4660
    %v4672 = vmul.f32 1.0, %v4671
    %v4673 = vrcp.pop %v4661
    %v4674 = vmul.f32 1.0, %v4673
    %v4675 = vrcp.pop %v4662
    %v4676 = vmul.f32 1.0, %v4675
    %v4677 = vrcp.pop %v4663
    %v4678 = vmul.f32 1.0, %v4677
    %v4679 = vrcp.pop %v4664
    %v4680 = vmul.f32 1.0, %v4679
    %v4689 = vrot.slane %v4625, 3
    %v4690 = vrot.slane %v4626, 3
    %v4691 = vrot.slane %v4627, 3
    %v4692 = vrot.slane %v4628, 3
    %v4693 = vrot.slane %v4629, 3
    %v4694 = vrot.slane %v4630, 3
    %v4695 = vrot.slane %v4631, 3
    %v4696 = vrot.slane %v4632, 3
    %v4705 = vtanh.pop %v4689
    %v4706 = vtanh.pop %v4690
    %v4707 = vtanh.pop %v4691
    %v4708 = vtanh.pop %v4692
    %v4709 = vtanh.pop %v4693
    %v4710 = vtanh.pop %v4694
    %v4711 = vtanh.pop %v4695
    %v4712 = vtanh.pop %v4696
    %v4721 = vrot.slane %v4666, 1
    %v4722 = vrot.slane %v4668, 1
    %v4723 = vrot.slane %v4670, 1
    %v4724 = vrot.slane %v4672, 1
    %v4725 = vrot.slane %v4674, 1
    %v4726 = vrot.slane %v4676, 1
    %v4727 = vrot.slane %v4678, 1
    %v4728 = vrot.slane %v4680, 1
    %v4737 = vmul.f32 %v4721, %v4116
    %v4738 = vmul.f32 %v4722, %v4117
    %v4739 = vmul.f32 %v4723, %v4118
    %v4740 = vmul.f32 %v4724, %v4119
    %v4741 = vmul.f32 %v4725, %v4120
    %v4742 = vmul.f32 %v4726, %v4121
    %v4743 = vmul.f32 %v4727, %v4122
    %v4744 = vmul.f32 %v4728, %v4123
    %v4745 = vmul.f32 %v4666, %v4705
    %v4746 = vmul.f32 %v4668, %v4706
    %v4747 = vmul.f32 %v4670, %v4707
    %v4748 = vmul.f32 %v4672, %v4708
    %v4749 = vmul.f32 %v4674, %v4709
    %v4750 = vmul.f32 %v4676, %v4710
    %v4751 = vmul.f32 %v4678, %v4711
    %v4752 = vmul.f32 %v4680, %v4712
    %v4753 = vadd.f32 %v4737, %v4745
    %v4754 = vadd.f32 %v4738, %v4746
    %v4755 = vadd.f32 %v4739, %v4747
    %v4756 = vadd.f32 %v4740, %v4748
    %v4757 = vadd.f32 %v4741, %v4749
    %v4758 = vadd.f32 %v4742, %v4750
    %v4759 = vadd.f32 %v4743, %v4751
    %v4760 = vadd.f32 %v4744, %v4752
    %v4761 = vtanh.pop %v4753
    %v4762 = vtanh.pop %v4754
    %v4763 = vtanh.pop %v4755
    %v4764 = vtanh.pop %v4756
    %v4765 = vtanh.pop %v4757
    %v4766 = vtanh.pop %v4758
    %v4767 = vtanh.pop %v4759
    %v4768 = vtanh.pop %v4760
    %v4769 = vrot.slane %v4666, 2
    %v4770 = vrot.slane %v4668, 2
    %v4771 = vrot.slane %v4670, 2
    %v4772 = vrot.slane %v4672, 2
    %v4773 = vrot.slane %v4674, 2
    %v4774 = vrot.slane %v4676, 2
    %v4775 = vrot.slane %v4678, 2
    %v4776 = vrot.slane %v4680, 2
    %v4785 = vmul.f32 %v4769, %v4761
    %v4786 = vmul.f32 %v4770, %v4762
    %v4787 = vmul.f32 %v4771, %v4763
    %v4788 = vmul.f32 %v4772, %v4764
    %v4789 = vmul.f32 %v4773, %v4765
    %v4790 = vmul.f32 %v4774, %v4766
    %v4791 = vmul.f32 %v4775, %v4767
    %v4792 = vmul.f32 %v4776, %v4768
    %v4801 = vcombine.low %v4785, %v4786
    %v4802 = vcombine.low %v4787, %v4788
    %v4803 = vcombine.low %v4789, %v4790
    %v4804 = vcombine.low %v4791, %v4792
    %v4806 = vunpack.c.l.s4 1966171168
    %v4807 = vunpack.c.0.s8 %v4806
    %v4808 = vlaneseq
    %v4809 = vshrl.u32 %v4808, 7
    %v4810 = vsub.s32 %v4807, %v4809
    %v4811 = vrot.slane %v4801, %v4810
    %v4813 = vunpack.c.l.s4 1966171168
    %v4814 = vunpack.c.0.s8 %v4813
    %v4815 = vlaneseq
    %v4816 = vshrl.u32 %v4815, 7
    %v4817 = vsub.s32 %v4814, %v4816
    %v4818 = vrot.slane %v4802, %v4817
    %v4820 = vunpack.c.l.s4 1966171168
    %v4821 = vunpack.c.0.s8 %v4820
    %v4822 = vlaneseq
    %v4823 = vshrl.u32 %v4822, 7
    %v4824 = vsub.s32 %v4821, %v4823
    %v4825 = vrot.slane %v4803, %v4824
    %v4827 = vunpack.c.l.s4 1966171168
    %v4828 = vunpack.c.0.s8 %v4827
    %v4829 = vlaneseq
    %v4830 = vshrl.u32 %v4829, 7
    %v4831 = vsub.s32 %v4828, %v4830
    %v4832 = vrot.slane %v4804, %v4831
    %v4833 = vcombine.low %v4811, %v4818
    %v4834 = vcombine.low %v4825, %v4832
    %v4836 = vunpack.c.l.s4 1966171168
    %v4837 = vunpack.c.0.s8 %v4836
    %v4838 = vlaneseq
    %v4839 = vshrl.u32 %v4838, 7
    %v4840 = vsub.s32 %v4837, %v4839
    %v4841 = vrot.slane %v4833, %v4840
    %v4843 = vunpack.c.l.s4 1966171168
    %v4844 = vunpack.c.0.s8 %v4843
    %v4845 = vlaneseq
    %v4846 = vshrl.u32 %v4845, 7
    %v4847 = vsub.s32 %v4844, %v4846
    %v4848 = vrot.slane %v4834, %v4847
    %v4849 = vcombine.low %v4841, %v4848
    %4851 = vst [vmem:[#allocation14 + $0x30] sm:$0xff] %v4849
    %s4852 = scalar_lea.vmem [#allocation2], 7
    %v4853 = vld [vmem:[%s4852] ss:$8 sm:$0xf]
    %s4854 = scalar_lea.vmem [#allocation2], 39
    %v4855 = vld [vmem:[%s4854] ss:$8 sm:$0xf]
    %s4856 = scalar_lea.vmem [#allocation2], 71
    %v4857 = vld [vmem:[%s4856] ss:$8 sm:$0xf]
    %s4858 = scalar_lea.vmem [#allocation2], 103
    %v4859 = vld [vmem:[%s4858] ss:$8 sm:$0xf]
    %s4860 = scalar_lea.vmem [#allocation2], 135
    %v4861 = vld [vmem:[%s4860] ss:$8 sm:$0xf]
    %s4862 = scalar_lea.vmem [#allocation2], 167
    %v4863 = vld [vmem:[%s4862] ss:$8 sm:$0xf]
    %s4864 = scalar_lea.vmem [#allocation2], 199
    %v4865 = vld [vmem:[%s4864] ss:$8 sm:$0xf]
    %s4866 = scalar_lea.vmem [#allocation2], 231
    %v4867 = vld [vmem:[%s4866] ss:$8 sm:$0xf]
    %v4868 = vpack.c.bf16 %v4785, %v4785
    %v4869 = vpack.c.bf16 %v4786, %v4786
    %v4870 = vpack.c.bf16 %v4787, %v4787
    %v4871 = vpack.c.bf16 %v4788, %v4788
    %v4872 = vpack.c.bf16 %v4789, %v4789
    %v4873 = vpack.c.bf16 %v4790, %v4790
    %v4874 = vpack.c.bf16 %v4791, %v4791
    %v4875 = vpack.c.bf16 %v4792, %v4792
    %v4876 = vld [vmem:[#allocation11] sm:$0xff]
    %v4877 = vld [vmem:[#allocation11 + $0x8] sm:$0xff]
    %v4878 = vld [vmem:[#allocation11 + $0x10] sm:$0xff]
    %v4879 = vld [vmem:[#allocation11 + $0x18] sm:$0xff]
    %v4880 = vld [vmem:[#allocation11 + $0x20] sm:$0xff]
    %v4881 = vld [vmem:[#allocation11 + $0x28] sm:$0xff]
    %v4882 = vld [vmem:[#allocation11 + $0x30] sm:$0xff]
    %v4883 = vld [vmem:[#allocation11 + $0x38] sm:$0xff]
    %v4884 = vld [vmem:[#allocation11 + $0x40] sm:$0xff]
    %v4885 = vld [vmem:[#allocation11 + $0x48] sm:$0xff]
    %v4886 = vld [vmem:[#allocation11 + $0x50] sm:$0xff]
    %v4887 = vld [vmem:[#allocation11 + $0x58] sm:$0xff]
    %v4888 = vld [vmem:[#allocation11 + $0x60] sm:$0xff]
    %v4889 = vld [vmem:[#allocation11 + $0x68] sm:$0xff]
    %v4890 = vld [vmem:[#allocation11 + $0x70] sm:$0xff]
    %v4891 = vld [vmem:[#allocation11 + $0x78] sm:$0xff]
    %v4892 = vld [vmem:[#allocation11 + $0x80] sm:$0xff]
    %v4893 = vld [vmem:[#allocation11 + $0x88] sm:$0xff]
    %v4894 = vld [vmem:[#allocation11 + $0x90] sm:$0xff]
    %v4895 = vld [vmem:[#allocation11 + $0x98] sm:$0xff]
    %v4896 = vld [vmem:[#allocation11 + $0xa0] sm:$0xff]
    %v4897 = vld [vmem:[#allocation11 + $0xa8] sm:$0xff]
    %v4898 = vld [vmem:[#allocation11 + $0xb0] sm:$0xff]
    %v4899 = vld [vmem:[#allocation11 + $0xb8] sm:$0xff]
    %v4900 = vld [vmem:[#allocation11 + $0xc0] sm:$0xff]
    %v4901 = vld [vmem:[#allocation11 + $0xc8] sm:$0xff]
    %v4902 = vld [vmem:[#allocation11 + $0xd0] sm:$0xff]
    %v4903 = vld [vmem:[#allocation11 + $0xd8] sm:$0xff]
    %v4904 = vld [vmem:[#allocation11 + $0xe0] sm:$0xff]
    %v4905 = vld [vmem:[#allocation11 + $0xe8] sm:$0xff]
    %v4906 = vld [vmem:[#allocation11 + $0xf0] sm:$0xff]
    %v4907 = vld [vmem:[#allocation11 + $0xf8] sm:$0xff]
    %v4916 = vunpack.c.l.b16 %v4868
    %v4917 = vunpack.c.l.b16 %v4869
    %v4918 = vunpack.c.l.b16 %v4870
    %v4919 = vunpack.c.l.b16 %v4871
    %v4920 = vunpack.c.l.b16 %v4872
    %v4921 = vunpack.c.l.b16 %v4873
    %v4922 = vunpack.c.l.b16 %v4874
    %v4923 = vunpack.c.l.b16 %v4875
    %v4924 = vrot.slane %v4917, 7
    %v4925 = vsel %vm1096, %v4924, %v4916
    %v4926 = vrot.slane %v4918, 6
    %v4927 = vsel %vm1099, %v4926, %v4925
    %v4928 = vrot.slane %v4919, 5
    %v4929 = vsel %vm1102, %v4928, %v4927
    %v4930 = vrot.slane %v4920, 4
    %v4931 = vsel %vm1105, %v4930, %v4929
    %v4932 = vrot.slane %v4921, 3
    %v4933 = vsel %vm1108, %v4932, %v4931
    %v4934 = vrot.slane %v4922, 2
    %v4935 = vsel %vm1111, %v4934, %v4933
    %v4936 = vrot.slane %v4923, 1
    %v4937 = vsel %vm1114, %v4936, %v4935
    %v4938 = vpack.c.b16 %v4937, %v4937
    %v4972 = vunpack.c.l.b16 %v4876
    %v4973 = vunpack.c.h.b16 %v4876
    %v4974 = vunpack.c.l.b16 %v4877
    %v4975 = vunpack.c.h.b16 %v4877
    %v4976 = vunpack.c.l.b16 %v4878
    %v4977 = vunpack.c.h.b16 %v4878
    %v4978 = vunpack.c.l.b16 %v4879
    %v4979 = vunpack.c.h.b16 %v4879
    %v4980 = vunpack.c.l.b16 %v4880
    %v4981 = vunpack.c.h.b16 %v4880
    %v4982 = vunpack.c.l.b16 %v4881
    %v4983 = vunpack.c.h.b16 %v4881
    %v4984 = vunpack.c.l.b16 %v4882
    %v4985 = vunpack.c.h.b16 %v4882
    %v4986 = vunpack.c.l.b16 %v4883
    %v4987 = vunpack.c.h.b16 %v4883
    %v4988 = vunpack.c.l.b16 %v4884
    %v4989 = vunpack.c.h.b16 %v4884
    %v4990 = vunpack.c.l.b16 %v4885
    %v4991 = vunpack.c.h.b16 %v4885
    %v4992 = vunpack.c.l.b16 %v4886
    %v4993 = vunpack.c.h.b16 %v4886
    %v4994 = vunpack.c.l.b16 %v4887
    %v4995 = vunpack.c.h.b16 %v4887
    %v4996 = vunpack.c.l.b16 %v4888
    %v4997 = vunpack.c.h.b16 %v4888
    %v4998 = vunpack.c.l.b16 %v4889
    %v4999 = vunpack.c.h.b16 %v4889
    %v5000 = vunpack.c.l.b16 %v4890
    %v5001 = vunpack.c.h.b16 %v4890
    %v5002 = vunpack.c.l.b16 %v4891
    %v5003 = vunpack.c.h.b16 %v4891
    %v5004 = vunpack.c.l.b16 %v4892
    %v5005 = vunpack.c.h.b16 %v4892
    %v5006 = vunpack.c.l.b16 %v4893
    %v5007 = vunpack.c.h.b16 %v4893
    %v5008 = vunpack.c.l.b16 %v4894
    %v5009 = vunpack.c.h.b16 %v4894
    %v5010 = vunpack.c.l.b16 %v4895
    %v5011 = vunpack.c.h.b16 %v4895
    %v5012 = vunpack.c.l.b16 %v4896
    %v5013 = vunpack.c.h.b16 %v4896
    %v5014 = vunpack.c.l.b16 %v4897
    %v5015 = vunpack.c.h.b16 %v4897
    %v5016 = vunpack.c.l.b16 %v4898
    %v5017 = vunpack.c.h.b16 %v4898
    %v5018 = vunpack.c.l.b16 %v4899
    %v5019 = vunpack.c.h.b16 %v4899
    %v5020 = vunpack.c.l.b16 %v4900
    %v5021 = vunpack.c.h.b16 %v4900
    %v5022 = vunpack.c.l.b16 %v4901
    %v5023 = vunpack.c.h.b16 %v4901
    %v5024 = vunpack.c.l.b16 %v4902
    %v5025 = vunpack.c.h.b16 %v4902
    %v5026 = vunpack.c.l.b16 %v4903
    %v5027 = vunpack.c.h.b16 %v4903
    %v5028 = vunpack.c.l.b16 %v4904
    %v5029 = vunpack.c.h.b16 %v4904
    %v5030 = vunpack.c.l.b16 %v4905
    %v5031 = vunpack.c.h.b16 %v4905
    %v5032 = vunpack.c.l.b16 %v4906
    %v5033 = vunpack.c.h.b16 %v4906
    %v5034 = vunpack.c.l.b16 %v4907
    %v5035 = vunpack.c.h.b16 %v4907
    %v5036 = vpack.c.b16 %v4976, %v4972
    %v5037 = vpack.c.b16 %v4977, %v4973
    %v5038 = vpack.c.b16 %v4978, %v4974
    %v5039 = vpack.c.b16 %v4979, %v4975
    %v5040 = vpack.c.b16 %v4984, %v4980
    %v5041 = vpack.c.b16 %v4985, %v4981
    %v5042 = vpack.c.b16 %v4986, %v4982
    %v5043 = vpack.c.b16 %v4987, %v4983
    %v5044 = vpack.c.b16 %v4992, %v4988
    %v5045 = vpack.c.b16 %v4993, %v4989
    %v5046 = vpack.c.b16 %v4994, %v4990
    %v5047 = vpack.c.b16 %v4995, %v4991
    %v5048 = vpack.c.b16 %v5000, %v4996
    %v5049 = vpack.c.b16 %v5001, %v4997
    %v5050 = vpack.c.b16 %v5002, %v4998
    %v5051 = vpack.c.b16 %v5003, %v4999
    %v5052 = vpack.c.b16 %v5008, %v5004
    %v5053 = vpack.c.b16 %v5009, %v5005
    %v5054 = vpack.c.b16 %v5010, %v5006
    %v5055 = vpack.c.b16 %v5011, %v5007
    %v5056 = vpack.c.b16 %v5016, %v5012
    %v5057 = vpack.c.b16 %v5017, %v5013
    %v5058 = vpack.c.b16 %v5018, %v5014
    %v5059 = vpack.c.b16 %v5019, %v5015
    %v5060 = vpack.c.b16 %v5024, %v5020
    %v5061 = vpack.c.b16 %v5025, %v5021
    %v5062 = vpack.c.b16 %v5026, %v5022
    %v5063 = vpack.c.b16 %v5027, %v5023
    %v5064 = vpack.c.b16 %v5032, %v5028
    %v5065 = vpack.c.b16 %v5033, %v5029
    %v5066 = vpack.c.b16 %v5034, %v5030
    %v5067 = vpack.c.b16 %v5035, %v5031
    %5100 = vmatprep.subr.bf16.mxu0 %v5065
    %5101 = vmatpush1.bf16.msra.mxu0 %v5064
    %5102 = vmatprep.subr.bf16.mxu0 %v5061
    %5103 = vmatpush1.bf16.msra.mxu0 %v5060
    %5104 = vmatprep.subr.bf16.mxu0 %v5057
    %5105 = vmatpush1.bf16.msra.mxu0 %v5056
    %5106 = vmatprep.subr.bf16.mxu0 %v5053
    %5107 = vmatpush1.bf16.msra.mxu0 %v5052
    %5108 = vmatprep.subr.bf16.mxu0 %v5049
    %5109 = vmatpush1.bf16.msra.mxu0 %v5048
    %5110 = vmatprep.subr.bf16.mxu0 %v5045
    %5111 = vmatpush1.bf16.msra.mxu0 %v5044
    %5112 = vmatprep.subr.bf16.mxu0 %v5041
    %5113 = vmatpush1.bf16.msra.mxu0 %v5040
    %5114 = vmatprep.subr.bf16.mxu0 %v5037
    %5115 = vmatpush1.bf16.msra.mxu0 %v5036
    %5116 = vmatprep.subr.bf16.mxu0 0
    %5117 = vmatpush2.bf16.msra.mxu0 0
    %5118 = vmatprep.subr.bf16.mxu0 0
    %5119 = vmatpush2.bf16.msra.mxu0 0
    %5120 = vmatprep.subr.bf16.mxu0 0
    %5121 = vmatpush2.bf16.msra.mxu0 0
    %5122 = vmatprep.subr.bf16.mxu0 0
    %5123 = vmatpush2.bf16.msra.mxu0 0
    %5124 = vmatprep.subr.bf16.mxu0 0
    %5125 = vmatpush2.bf16.msra.mxu0 0
    %5126 = vmatprep.subr.bf16.mxu0 0
    %5127 = vmatpush2.bf16.msra.mxu0 0
    %5128 = vmatprep.subr.bf16.mxu0 0
    %5129 = vmatpush2.bf16.msra.mxu0 0
    %5130 = vmatprep.subr.bf16.mxu0 0
    %5131 = vmatpush2.bf16.msra.mxu0 0
    %5132 = vmatprep.mubr.bf16.mxu0 0
    %5133 = vmatmul.mubr.bf16.gmra.mxu0 %v4938
    %v5134 = vpop.f32.mrf.mxu0
    %v5135 = vadd.f32 0.0, %v5134
    %v5136 = vpop.f32.mrf.mxu0
    %v5137 = vadd.f32 0.0, %v5136
    %v5138 = vpop.f32.mrf.mxu0
    %v5139 = vpop.f32.mrf.mxu0
    %5140 = vdwg.mxu0
    %5141 = vmatprep.subr.bf16.mxu0 %v5067
    %5142 = vmatpush1.bf16.msra.mxu0 %v5066
    %5143 = vmatprep.subr.bf16.mxu0 %v5063
    %5144 = vmatpush1.bf16.msra.mxu0 %v5062
    %5145 = vmatprep.subr.bf16.mxu0 %v5059
    %5146 = vmatpush1.bf16.msra.mxu0 %v5058
    %5147 = vmatprep.subr.bf16.mxu0 %v5055
    %5148 = vmatpush1.bf16.msra.mxu0 %v5054
    %5149 = vmatprep.subr.bf16.mxu0 %v5051
    %5150 = vmatpush1.bf16.msra.mxu0 %v5050
    %5151 = vmatprep.subr.bf16.mxu0 %v5047
    %5152 = vmatpush1.bf16.msra.mxu0 %v5046
    %5153 = vmatprep.subr.bf16.mxu0 %v5043
    %5154 = vmatpush1.bf16.msra.mxu0 %v5042
    %5155 = vmatprep.subr.bf16.mxu0 %v5039
    %5156 = vmatpush1.bf16.msra.mxu0 %v5038
    %5157 = vmatprep.subr.bf16.mxu0 0
    %5158 = vmatpush2.bf16.msra.mxu0 0
    %5159 = vmatprep.subr.bf16.mxu0 0
    %5160 = vmatpush2.bf16.msra.mxu0 0
    %5161 = vmatprep.subr.bf16.mxu0 0
    %5162 = vmatpush2.bf16.msra.mxu0 0
    %5163 = vmatprep.subr.bf16.mxu0 0
    %5164 = vmatpush2.bf16.msra.mxu0 0
    %5165 = vmatprep.subr.bf16.mxu0 0
    %5166 = vmatpush2.bf16.msra.mxu0 0
    %5167 = vmatprep.subr.bf16.mxu0 0
    %5168 = vmatpush2.bf16.msra.mxu0 0
    %5169 = vmatprep.subr.bf16.mxu0 0
    %5170 = vmatpush2.bf16.msra.mxu0 0
    %5171 = vmatprep.subr.bf16.mxu0 0
    %5172 = vmatpush2.bf16.msra.mxu0 0
    %5173 = vmatprep.mubr.bf16.mxu0 0
    %5174 = vmatmul.mubr.bf16.gmra.mxu0 %v4938
    %v5175 = vpop.f32.mrf.mxu0
    %v5176 = vadd.f32 0.0, %v5175
    %v5177 = vpop.f32.mrf.mxu0
    %v5178 = vadd.f32 0.0, %v5177
    %v5179 = vpop.f32.mrf.mxu0
    %v5180 = vpop.f32.mrf.mxu0
    %5181 = vdwg.mxu0
    %v5186 = vcombine.low %v5135, %v5137
    %v5187 = vcombine.high %v5135, %v5137
    %v5188 = vcombine.low %v5176, %v5178
    %v5189 = vcombine.high %v5176, %v5178
    %v5191 = vunpack.c.l.s4 1966171168
    %v5192 = vunpack.c.0.s8 %v5191
    %v5193 = vlaneseq
    %v5194 = vshrl.u32 %v5193, 7
    %v5195 = vsub.s32 %v5192, %v5194
    %v5196 = vrot.slane %v5186, %v5195
    %v5198 = vunpack.c.l.s4 1966171168
    %v5199 = vunpack.c.0.s8 %v5198
    %v5200 = vlaneseq
    %v5201 = vshrl.u32 %v5200, 7
    %v5202 = vsub.s32 %v5199, %v5201
    %v5203 = vrot.slane %v5187, %v5202
    %v5205 = vunpack.c.l.s4 1966171168
    %v5206 = vunpack.c.0.s8 %v5205
    %v5207 = vlaneseq
    %v5208 = vshrl.u32 %v5207, 7
    %v5209 = vsub.s32 %v5206, %v5208
    %v5210 = vrot.slane %v5188, %v5209
    %v5212 = vunpack.c.l.s4 1966171168
    %v5213 = vunpack.c.0.s8 %v5212
    %v5214 = vlaneseq
    %v5215 = vshrl.u32 %v5214, 7
    %v5216 = vsub.s32 %v5213, %v5215
    %v5217 = vrot.slane %v5189, %v5216
    %v5218 = vcombine.low %v5196, %v5210
    %v5219 = vcombine.high %v5196, %v5210
    %v5220 = vcombine.low %v5203, %v5217
    %v5221 = vcombine.high %v5203, %v5217
    %v5223 = vunpack.c.l.s4 1966171168
    %v5224 = vunpack.c.0.s8 %v5223
    %v5225 = vlaneseq
    %v5226 = vshrl.u32 %v5225, 7
    %v5227 = vsub.s32 %v5224, %v5226
    %v5228 = vrot.slane %v5218, %v5227
    %v5230 = vunpack.c.l.s4 1966171168
    %v5231 = vunpack.c.0.s8 %v5230
    %v5232 = vlaneseq
    %v5233 = vshrl.u32 %v5232, 7
    %v5234 = vsub.s32 %v5231, %v5233
    %v5235 = vrot.slane %v5220, %v5234
    %v5237 = vunpack.c.l.s4 1966171168
    %v5238 = vunpack.c.0.s8 %v5237
    %v5239 = vlaneseq
    %v5240 = vshrl.u32 %v5239, 7
    %v5241 = vsub.s32 %v5238, %v5240
    %v5242 = vrot.slane %v5219, %v5241
    %v5244 = vunpack.c.l.s4 1966171168
    %v5245 = vunpack.c.0.s8 %v5244
    %v5246 = vlaneseq
    %v5247 = vshrl.u32 %v5246, 7
    %v5248 = vsub.s32 %v5245, %v5247
    %v5249 = vrot.slane %v5221, %v5248
    %v5250 = vcombine.high %v5228, %v5228
    %v5251 = vcombine.high %v5235, %v5235
    %v5252 = vcombine.high %v5242, %v5242
    %v5253 = vcombine.high %v5249, %v5249
    %v5262 = vadd.f32 %v4853, %v5228
    %v5263 = vadd.f32 %v4855, %v5242
    %v5264 = vadd.f32 %v4857, %v5250
    %v5265 = vadd.f32 %v4859, %v5252
    %v5266 = vadd.f32 %v4861, %v5235
    %v5267 = vadd.f32 %v4863, %v5249
    %v5268 = vadd.f32 %v4865, %v5251
    %v5269 = vadd.f32 %v4867, %v5253
    %v5270 = vxor.u32 %v5262, 2147483648
    %v5271 = vxor.u32 %v5263, 2147483648
    %v5272 = vxor.u32 %v5264, 2147483648
    %v5273 = vxor.u32 %v5265, 2147483648
    %v5274 = vxor.u32 %v5266, 2147483648
    %v5275 = vxor.u32 %v5267, 2147483648
    %v5276 = vxor.u32 %v5268, 2147483648
    %v5277 = vxor.u32 %v5269, 2147483648
    %v5278 = vmul.f32 %v5270, 1.442695
    %v5279 = vpow.pop %v5278
    %v5280 = vmul.f32 %v5271, 1.442695
    %v5281 = vpow.pop %v5280
    %v5282 = vmul.f32 %v5272, 1.442695
    %v5283 = vpow.pop %v5282
    %v5284 = vmul.f32 %v5273, 1.442695
    %v5285 = vpow.pop %v5284
    %v5286 = vmul.f32 %v5274, 1.442695
    %v5287 = vpow.pop %v5286
    %v5288 = vmul.f32 %v5275, 1.442695
    %v5289 = vpow.pop %v5288
    %v5290 = vmul.f32 %v5276, 1.442695
    %v5291 = vpow.pop %v5290
    %v5292 = vmul.f32 %v5277, 1.442695
    %v5293 = vpow.pop %v5292
    %v5294 = vadd.f32 %v5279, 1.0
    %v5295 = vadd.f32 %v5281, 1.0
    %v5296 = vadd.f32 %v5283, 1.0
    %v5297 = vadd.f32 %v5285, 1.0
    %v5298 = vadd.f32 %v5287, 1.0
    %v5299 = vadd.f32 %v5289, 1.0
    %v5300 = vadd.f32 %v5291, 1.0
    %v5301 = vadd.f32 %v5293, 1.0
    %v5302 = vrcp.pop %v5294
    %v5303 = vmul.f32 1.0, %v5302
    %v5304 = vrcp.pop %v5295
    %v5305 = vmul.f32 1.0, %v5304
    %v5306 = vrcp.pop %v5296
    %v5307 = vmul.f32 1.0, %v5306
    %v5308 = vrcp.pop %v5297
    %v5309 = vmul.f32 1.0, %v5308
    %v5310 = vrcp.pop %v5298
    %v5311 = vmul.f32 1.0, %v5310
    %v5312 = vrcp.pop %v5299
    %v5313 = vmul.f32 1.0, %v5312
    %v5314 = vrcp.pop %v5300
    %v5315 = vmul.f32 1.0, %v5314
    %v5316 = vrcp.pop %v5301
    %v5317 = vmul.f32 1.0, %v5316
    %v5326 = vrot.slane %v5262, 3
    %v5327 = vrot.slane %v5263, 3
    %v5328 = vrot.slane %v5264, 3
    %v5329 = vrot.slane %v5265, 3
    %v5330 = vrot.slane %v5266, 3
    %v5331 = vrot.slane %v5267, 3
    %v5332 = vrot.slane %v5268, 3
    %v5333 = vrot.slane %v5269, 3
    %v5342 = vtanh.pop %v5326
    %v5343 = vtanh.pop %v5327
    %v5344 = vtanh.pop %v5328
    %v5345 = vtanh.pop %v5329
    %v5346 = vtanh.pop %v5330
    %v5347 = vtanh.pop %v5331
    %v5348 = vtanh.pop %v5332
    %v5349 = vtanh.pop %v5333
    %v5358 = vrot.slane %v5303, 1
    %v5359 = vrot.slane %v5305, 1
    %v5360 = vrot.slane %v5307, 1
    %v5361 = vrot.slane %v5309, 1
    %v5362 = vrot.slane %v5311, 1
    %v5363 = vrot.slane %v5313, 1
    %v5364 = vrot.slane %v5315, 1
    %v5365 = vrot.slane %v5317, 1
    %v5374 = vmul.f32 %v5358, %v4753
    %v5375 = vmul.f32 %v5359, %v4754
    %v5376 = vmul.f32 %v5360, %v4755
    %v5377 = vmul.f32 %v5361, %v4756
    %v5378 = vmul.f32 %v5362, %v4757
    %v5379 = vmul.f32 %v5363, %v4758
    %v5380 = vmul.f32 %v5364, %v4759
    %v5381 = vmul.f32 %v5365, %v4760
    %v5382 = vmul.f32 %v5303, %v5342
    %v5383 = vmul.f32 %v5305, %v5343
    %v5384 = vmul.f32 %v5307, %v5344
    %v5385 = vmul.f32 %v5309, %v5345
    %v5386 = vmul.f32 %v5311, %v5346
    %v5387 = vmul.f32 %v5313, %v5347
    %v5388 = vmul.f32 %v5315, %v5348
    %v5389 = vmul.f32 %v5317, %v5349
    %v5390 = vadd.f32 %v5374, %v5382
    %v5391 = vadd.f32 %v5375, %v5383
    %v5392 = vadd.f32 %v5376, %v5384
    %v5393 = vadd.f32 %v5377, %v5385
    %v5394 = vadd.f32 %v5378, %v5386
    %v5395 = vadd.f32 %v5379, %v5387
    %v5396 = vadd.f32 %v5380, %v5388
    %v5397 = vadd.f32 %v5381, %v5389
    %v5398 = vtanh.pop %v5390
    %v5399 = vtanh.pop %v5391
    %v5400 = vtanh.pop %v5392
    %v5401 = vtanh.pop %v5393
    %v5402 = vtanh.pop %v5394
    %v5403 = vtanh.pop %v5395
    %v5404 = vtanh.pop %v5396
    %v5405 = vtanh.pop %v5397
    %v5406 = vrot.slane %v5303, 2
    %v5407 = vrot.slane %v5305, 2
    %v5408 = vrot.slane %v5307, 2
    %v5409 = vrot.slane %v5309, 2
    %v5410 = vrot.slane %v5311, 2
    %v5411 = vrot.slane %v5313, 2
    %v5412 = vrot.slane %v5315, 2
    %v5413 = vrot.slane %v5317, 2
    %v5422 = vmul.f32 %v5406, %v5398
    %v5423 = vmul.f32 %v5407, %v5399
    %v5424 = vmul.f32 %v5408, %v5400
    %v5425 = vmul.f32 %v5409, %v5401
    %v5426 = vmul.f32 %v5410, %v5402
    %v5427 = vmul.f32 %v5411, %v5403
    %v5428 = vmul.f32 %v5412, %v5404
    %v5429 = vmul.f32 %v5413, %v5405
    %v5438 = vcombine.low %v5422, %v5423
    %v5439 = vcombine.low %v5424, %v5425
    %v5440 = vcombine.low %v5426, %v5427
    %v5441 = vcombine.low %v5428, %v5429
    %v5443 = vunpack.c.l.s4 1966171168
    %v5444 = vunpack.c.0.s8 %v5443
    %v5445 = vlaneseq
    %v5446 = vshrl.u32 %v5445, 7
    %v5447 = vsub.s32 %v5444, %v5446
    %v5448 = vrot.slane %v5438, %v5447
    %v5450 = vunpack.c.l.s4 1966171168
    %v5451 = vunpack.c.0.s8 %v5450
    %v5452 = vlaneseq
    %v5453 = vshrl.u32 %v5452, 7
    %v5454 = vsub.s32 %v5451, %v5453
    %v5455 = vrot.slane %v5439, %v5454
    %v5457 = vunpack.c.l.s4 1966171168
    %v5458 = vunpack.c.0.s8 %v5457
    %v5459 = vlaneseq
    %v5460 = vshrl.u32 %v5459, 7
    %v5461 = vsub.s32 %v5458, %v5460
    %v5462 = vrot.slane %v5440, %v5461
    %v5464 = vunpack.c.l.s4 1966171168
    %v5465 = vunpack.c.0.s8 %v5464
    %v5466 = vlaneseq
    %v5467 = vshrl.u32 %v5466, 7
    %v5468 = vsub.s32 %v5465, %v5467
    %v5469 = vrot.slane %v5441, %v5468
    %v5470 = vcombine.low %v5448, %v5455
    %v5471 = vcombine.low %v5462, %v5469
    %v5473 = vunpack.c.l.s4 1966171168
    %v5474 = vunpack.c.0.s8 %v5473
    %v5475 = vlaneseq
    %v5476 = vshrl.u32 %v5475, 7
    %v5477 = vsub.s32 %v5474, %v5476
    %v5478 = vrot.slane %v5470, %v5477
    %v5480 = vunpack.c.l.s4 1966171168
    %v5481 = vunpack.c.0.s8 %v5480
    %v5482 = vlaneseq
    %v5483 = vshrl.u32 %v5482, 7
    %v5484 = vsub.s32 %v5481, %v5483
    %v5485 = vrot.slane %v5471, %v5484
    %v5486 = vcombine.low %v5478, %v5485
    %5488 = vst [vmem:[#allocation14 + $0x38] sm:$0xff] %v5486
    %5489 = vst [vmem:[#allocation3] sm:$0xff] %v5486
    %v5498 = vcombine.low %v5390, %v5391
    %v5499 = vcombine.low %v5392, %v5393
    %v5500 = vcombine.low %v5394, %v5395
    %v5501 = vcombine.low %v5396, %v5397
    %v5503 = vunpack.c.l.s4 1966171168
    %v5504 = vunpack.c.0.s8 %v5503
    %v5505 = vlaneseq
    %v5506 = vshrl.u32 %v5505, 7
    %v5507 = vsub.s32 %v5504, %v5506
    %v5508 = vrot.slane %v5498, %v5507
    %v5510 = vunpack.c.l.s4 1966171168
    %v5511 = vunpack.c.0.s8 %v5510
    %v5512 = vlaneseq
    %v5513 = vshrl.u32 %v5512, 7
    %v5514 = vsub.s32 %v5511, %v5513
    %v5515 = vrot.slane %v5499, %v5514
    %v5517 = vunpack.c.l.s4 1966171168
    %v5518 = vunpack.c.0.s8 %v5517
    %v5519 = vlaneseq
    %v5520 = vshrl.u32 %v5519, 7
    %v5521 = vsub.s32 %v5518, %v5520
    %v5522 = vrot.slane %v5500, %v5521
    %v5524 = vunpack.c.l.s4 1966171168
    %v5525 = vunpack.c.0.s8 %v5524
    %v5526 = vlaneseq
    %v5527 = vshrl.u32 %v5526, 7
    %v5528 = vsub.s32 %v5525, %v5527
    %v5529 = vrot.slane %v5501, %v5528
    %v5530 = vcombine.low %v5508, %v5515
    %v5531 = vcombine.low %v5522, %v5529
    %v5533 = vunpack.c.l.s4 1966171168
    %v5534 = vunpack.c.0.s8 %v5533
    %v5535 = vlaneseq
    %v5536 = vshrl.u32 %v5535, 7
    %v5537 = vsub.s32 %v5534, %v5536
    %v5538 = vrot.slane %v5530, %v5537
    %v5540 = vunpack.c.l.s4 1966171168
    %v5541 = vunpack.c.0.s8 %v5540
    %v5542 = vlaneseq
    %v5543 = vshrl.u32 %v5542, 7
    %v5544 = vsub.s32 %v5541, %v5543
    %v5545 = vrot.slane %v5531, %v5544
    %v5546 = vcombine.low %v5538, %v5545
    %5548 = vst [vmem:[#allocation4] sm:$0xff] %v5546
    %5549 = vst [vmem:[#allocation15] sm:$0xff] %v5486
    %5550 = vst [vmem:[#allocation17] sm:$0xff] %v5546
    // Predicated region
    $region50: #{tpu_custom_call.1} parent=1 // pred_check
      _
    $region51: #{tpu_custom_call.1} parent=1 // pred_check_branch
      %5552 = sbr.rel (0) target = $region53
    $region52: #{tpu_custom_call.1} parent=1 // pred_region
      %s5554 = ssub.s32 1024, 1024
      %5555 = vsyncadd [#allocation7], %s5554
      %s5557 = sshll.u32 [#allocation14], 4
      %s5558 = int_to_ptr.vmem [resolvable:$true] %s5557
      %5560 = dma.vmem_to_hbm [thread:$0]  %s5558, 1024, %s6, [#allocation7]
    $region53: #{tpu_custom_call.1} parent=1 // pred_fallthru
      _
    // Predicated region
    $region54: #{tpu_custom_call.1} parent=1 // pred_check
      _
    $region55: #{tpu_custom_call.1} parent=1 // pred_check_branch
      %5562 = sbr.rel (0) target = $region57
    $region56: #{tpu_custom_call.1} parent=1 // pred_region
      %s5564 = ssub.s32 128, 128
      %5565 = vsyncadd [#allocation16], %s5564
      %s5567 = sshll.u32 [#allocation15], 4
      %s5568 = int_to_ptr.vmem [resolvable:$true] %s5567
      %5570 = dma.vmem_to_hbm [thread:$0]  %s5568, 128, %s7, [#allocation16]
    $region57: #{tpu_custom_call.1} parent=1 // pred_fallthru
      _
    // Predicated region
    $region58: #{tpu_custom_call.1} parent=1 // pred_check
      _
    $region59: #{tpu_custom_call.1} parent=1 // pred_check_branch
      %5572 = sbr.rel (0) target = $region61
    $region60: #{tpu_custom_call.1} parent=1 // pred_region
      %s5574 = ssub.s32 128, 128
      %5575 = vsyncadd [#allocation16], %s5574
      %s5577 = sshll.u32 [#allocation17], 4
      %s5578 = int_to_ptr.vmem [resolvable:$true] %s5577
      %5580 = dma.vmem_to_hbm [thread:$0]  %s5578, 128, %s8, [#allocation16]
    $region61: #{tpu_custom_call.1} parent=1 // pred_fallthru
      _
    // Predicated region
    $region62: #{tpu_custom_call.1} parent=1 // pred_check
      _
    $region63: #{tpu_custom_call.1} parent=1 // pred_check_branch
      %5582 = sbr.rel (0) target = $region65
    $region64: #{tpu_custom_call.1} parent=1 // pred_region
      %5583 = dma.done [#allocation7], 1024
    $region65: #{tpu_custom_call.1} parent=1 // pred_fallthru
      _
    // Predicated region
    $region66: #{tpu_custom_call.1} parent=1 // pred_check
      _
    $region67: #{tpu_custom_call.1} parent=1 // pred_check_branch
      %5585 = sbr.rel (0) target = $region69
    $region68: #{tpu_custom_call.1} parent=1 // pred_region
      %5586 = dma.done [#allocation16], 128
    $region69: #{tpu_custom_call.1} parent=1 // pred_fallthru
      _
    // Predicated region
    $region70: #{tpu_custom_call.1} parent=1 // pred_check
      _
    $region71: #{tpu_custom_call.1} parent=1 // pred_check_branch
      %5588 = sbr.rel (0) target = $region73
    $region72: #{tpu_custom_call.1} parent=1 // pred_region
      %5589 = dma.done [#allocation16], 128
    $region73: #{tpu_custom_call.1} parent=1 // pred_fallthru
      _
    %5590 = vsyncpa [#allocation6], 1
    %5591 = vsyncpa [#allocation9], 1
    %5592 = vsyncpa [#allocation12], 1
    %5593 = vsyncpa [#allocation7], 1
    %5594 = vsyncpa [#allocation16], 1

</llo_original>
